<compile_context>
chip_gen: v7x
topology: tpu7x:2x2x1
jax: 0.10.0
libtpu: 0.0.40
codegen_flags: <defaults>
</compile_context>

<pallas_src>
import jax
import jax.numpy as jnp
from jax.experimental import pallas as pl
from jax.experimental.pallas import tpu as pltpu

BF16 = jnp.bfloat16
F32 = jnp.float32


# ------------------------------- Pallas kernel ------------------------------

def _lenet_kernel(
    x_ref,
    c1_ref, b1_ref, re1_ref, ro1_ref, ce1_ref, co1_ref,
    c2_ref, b2_ref, re2_ref, ro2_ref, ce2_ref, co2_ref,
    f1_ref, fb1_ref, f2_ref, fb2_ref, f3_ref, fb3_ref,
    out_ref,
):
    pb = out_ref.shape[0]        # images in this grid step
    m1 = pb * 32                 # stacked rows, per-image stride 32 (conv1)
    m2 = pb * 14                 # stacked rows, per-image stride 14 (conv2)

    # --- conv1 + ReLU: (pb*32, 32) -> packed (pb*32, 6*28), [b*32+oh, oc*28+ow]
    # out[r] = sum_i x[r+i] @ C1[i]; the vertical shift is a sublane roll
    # (roll(x, m1-i)[r] == x[r+i]); rows with oh >= 28 are junk and never read
    # again (the pool-1 row selectors only pick oh in [0, 28)).
    x = x_ref[...]                                             # (pb*32, 32) f32
    acc = jnp.dot(x.astype(BF16), c1_ref[0], preferred_element_type=F32)
    for i in range(1, 5):
        xi = pltpu.roll(x, shift=m1 - i, axis=0)
        acc += jnp.dot(xi.astype(BF16), c1_ref[i], preferred_element_type=F32)
    h = jnp.maximum(acc + b1_ref[...], 0.0)                    # (pb*32, 168)

    # --- maxpool1 2x2 -> (pb*14, 6*14): rows via block-diagonal 0/1 selector
    # matmuls (batch-major, q-minor output rows), cols via per-channel selectors.
    hb = h.astype(BF16)
    rmax = jnp.maximum(
        jnp.dot(re1_ref[...], hb, preferred_element_type=F32),
        jnp.dot(ro1_ref[...], hb, preferred_element_type=F32))  # (pb*14, 168)
    rb = rmax.astype(BF16)
    h = jnp.maximum(
        jnp.dot(rb, ce1_ref[...], preferred_element_type=F32),
        jnp.dot(rb, co1_ref[...], preferred_element_type=F32))  # (pb*14, 84)

    # --- conv2 + ReLU: (pb*14, 84) -> packed (pb*14, 16*10); rows oh >= 10 junk.
    acc = jnp.dot(h.astype(BF16), c2_ref[0], preferred_element_type=F32)
    for i in range(1, 5):
        hi = pltpu.roll(h, shift=m2 - i, axis=0)
        acc += jnp.dot(hi.astype(BF16), c2_ref[i], preferred_element_type=F32)
    h = jnp.maximum(acc + b2_ref[...], 0.0)                    # (pb*14, 160)

    # --- maxpool2 2x2 -> (5*pb, 16*5) with PH-MAJOR rows: row p = ph*pb + b.
    # ph-major ordering makes the fc1 per-ph slices land on pb-row (8-aligned)
    # boundaries -> free sublane views, no gather.
    hb = h.astype(BF16)
    rmax = jnp.maximum(
        jnp.dot(re2_ref[...], hb, preferred_element_type=F32),
        jnp.dot(ro2_ref[...], hb, preferred_element_type=F32))  # (5*pb, 160)
    rb = rmax.astype(BF16)
    hp = jnp.maximum(
        jnp.dot(rb, ce2_ref[...], preferred_element_type=F32),
        jnp.dot(rb, co2_ref[...], preferred_element_type=F32))  # (5*pb, 80)

    # --- fc1 + ReLU: sum over ph of aligned (pb, 80) @ (80, 120) matmuls.
    acc = jnp.dot(hp[0:pb, :].astype(BF16), f1_ref[0],
                  preferred_element_type=F32)
    for ph in range(1, 5):
        blk = hp[ph * pb:(ph + 1) * pb, :]                     # aligned view
        acc += jnp.dot(blk.astype(BF16), f1_ref[ph],
                       preferred_element_type=F32)
    h = jnp.maximum(acc + fb1_ref[...], 0.0)                   # (pb, 120)

    # --- fc2 + ReLU ----------------------------------------------------------
    h = jnp.dot(h.astype(BF16), f2_ref[...], preferred_element_type=F32)
    h = jnp.maximum(h + fb2_ref[...], 0.0)                     # (pb, 84)

    # --- fc3 + softmax (exact reciprocal) -------------------------------------
    z = jnp.dot(h.astype(BF16), f3_ref[...], preferred_element_type=F32)
    z = z + fb3_ref[...]
    z = z - jnp.max(z, axis=-1, keepdims=True)
    e = jnp.exp(z)
    out_ref[...] = e * pl.reciprocal(jnp.sum(e, axis=-1, keepdims=True))


# --------------------- one-time weight / selector prep ----------------------
# These transform only the *parameters* (tiny, done once per call under jit);
# no activation glue happens outside the kernel.

def _banded_conv_weight(w, in_w, out_w):
    """(OC, IC, KH, KW) -> (KH, IC*in_w, OC*out_w) banded weight matrices so
    that conv_out[oh, oc*out_w + ow] = sum_i (act[oh+i, :] @ out[i])[...] with
    the activation packed as [row, ic*in_w + col]."""
    oc_n, ic_n, kh, kw = w.shape
    i_ = jnp.arange(kh)[:, None, None]
    r_ = jnp.arange(ic_n * in_w)[None, :, None]
    c_ = jnp.arange(oc_n * out_w)[None, None, :]
    ic_, wi_ = r_ // in_w, r_ % in_w
    oc_, ow_ = c_ // out_w, c_ % out_w
    j_ = wi_ - ow_
    valid = (j_ >= 0) & (j_ < kw)
    vals = w[oc_, ic_, i_, jnp.clip(j_, 0, kw - 1)]
    return jnp.where(valid, vals, 0.0).astype(BF16)


def _row_pool_selectors(pb, h_in, h_out, ph_major):
    """Block-diagonal batched row selectors (pb*h_out, pb*h_in) for 2x stride-2
    row pooling of a batch-stacked activation (per-image row stride h_in).
    ph_major=False -> output row p = b*h_out + q; True -> p = q*pb + b."""
    p = jnp.arange(pb * h_out)[:, None]
    r = jnp.arange(pb * h_in)[None, :]
    if ph_major:
        b_out, q = p % pb, p // pb
    else:
        b_out, q = p // h_out, p % h_out
    b_in, rr = r // h_in, r % h_in
    same = b_out == b_in
    even = same & (rr == 2 * q)
    odd = same & (rr == 2 * q + 1)
    return even.astype(BF16), odd.astype(BF16)


def _col_pool_selectors(n_ch, w_in):
    w_out = w_in // 2
    r = jnp.arange(n_ch * w_in)[:, None]
    c = jnp.arange(n_ch * w_out)[None, :]
    same = (r // w_in) == (c // w_out)
    even = same & ((r % w_in) == 2 * (c % w_out))
    odd = same & ((r % w_in) == 2 * (c % w_out) + 1)
    return even.astype(BF16), odd.astype(BF16)


def _fc1_permuted(fc1_w):
    """(120, 400) -> (5, 80, 120) so fc1 consumes the packed pooled layout
    [ph, oc*5 + pw] directly (PyTorch flatten order is oc*25 + ph*5 + pw)."""
    ph = jnp.arange(5)[:, None, None]
    r_ = jnp.arange(80)[None, :, None]
    k_ = jnp.arange(120)[None, None, :]
    oc_, pw_ = r_ // 5, r_ % 5
    return fc1_w[k_, oc_ * 25 + ph * 5 + pw_].astype(BF16)


def _prep_operands(params, pb):
    c1 = _banded_conv_weight(params["conv1_w"], 32, 28)           # (5, 32, 168)
    b1 = jnp.repeat(params["conv1_b"], 28)[None, :].astype(F32)   # (1, 168)
    re1, ro1 = _row_pool_selectors(pb, 32, 14, ph_major=False)    # (pb*14, pb*32)
    ce1, co1 = _col_pool_selectors(6, 28)                         # (168, 84)
    c2 = _banded_conv_weight(params["conv2_w"], 14, 10)           # (5, 84, 160)
    b2 = jnp.repeat(params["conv2_b"], 10)[None, :].astype(F32)   # (1, 160)
    re2, ro2 = _row_pool_selectors(pb, 14, 5, ph_major=True)      # (5*pb, pb*14)
    ce2, co2 = _col_pool_selectors(16, 10)                        # (160, 80)
    f1 = _fc1_permuted(params["fc1_w"])                           # (5, 80, 120)
    fb1 = params["fc1_b"][None, :].astype(F32)
    f2 = params["fc2_w"].T.astype(BF16)                           # (120, 84)
    fb2 = params["fc2_b"][None, :].astype(F32)
    f3 = params["fc3_w"].T.astype(BF16)                           # (84, 10)
    fb3 = params["fc3_b"][None, :].astype(F32)
    return (c1, b1, re1, ro1, ce1, co1,
            c2, b2, re2, ro2, ce2, co2,
            f1, fb1, f2, fb2, f3, fb3)


# ------------------------------- entry point --------------------------------

def cnn_forward(x, params, *, batch_tile=8):
    """x: (B, 1, 32, 32) float32 NCHW -> (B, 10) softmax probabilities."""
    assert x.ndim == 4 and x.shape[1:] == (1, 32, 32)
    assert batch_tile % 8 == 0, "batch_tile must be a multiple of 8"
    bsz = x.shape[0]
    pb = batch_tile
    n_tiles = -(-bsz // pb)
    b_pad = n_tiles * pb

    # Stack images along the sublane axis: (B,1,32,32) -> (B*32, 32); pad the
    # batch up to a multiple of the batch tile (padded rows produce junk
    # outputs that are sliced off below).
    x2 = x.reshape(bsz * 32, 32)
    if b_pad != bsz:
        x2 = jnp.pad(x2, ((0, (b_pad - bsz) * 32), (0, 0)))

    ops = _prep_operands(params, pb)
    in_specs = [pl.BlockSpec((pb * 32, 32), lambda b: (b, 0))]
    for op in ops:  # weights / selectors: full block, resident across the grid
        in_specs.append(pl.BlockSpec(op.shape, lambda b, nd=op.ndim: (0,) * nd))

    out = pl.pallas_call(
        _lenet_kernel,
        out_shape=jax.ShapeDtypeStruct((b_pad, 10), F32),
        grid=(n_tiles,),
        in_specs=in_specs,
        out_specs=pl.BlockSpec((pb, 10), lambda b: (b, 0)),
        compiler_params=pltpu.CompilerParams(
            dimension_semantics=("parallel",),
            vmem_limit_bytes=32 * 1024 * 1024),
    )(x2, *ops)
    return out[:bsz]


# ------------------------- pure-JAX reference check --------------------------

def _reference_forward(x, params):
    def conv(v, w, b):
        y = jax.lax.conv_general_dilated(
            v, w, window_strides=(1, 1), padding="VALID",
            dimension_numbers=("NCHW", "OIHW", "NCHW"))
        return jax.nn.relu(y + b[None, :, None, None])

    def pool(v):
        b, c, h, w = v.shape
        return jnp.max(v.reshape(b, c, h // 2, 2, w // 2, 2), axis=(3, 5))

    y = pool(conv(x, params["conv1_w"], params["conv1_b"]))
    y = pool(conv(y, params["conv2_w"], params["conv2_b"]))
    y = y.reshape(y.shape[0], -1)
    y = jax.nn.relu(y @ params["fc1_w"].T + params["fc1_b"])
    y = jax.nn.relu(y @ params["fc2_w"].T + params["fc2_b"])
    return jax.nn.softmax(y @ params["fc3_w"].T + params["fc3_b"], axis=-1)


def init_params(key):
    ks = jax.random.split(key, 10)
    return {
        "conv1_w": 0.1 * jax.random.normal(ks[0], (6, 1, 5, 5), F32),
        "conv1_b": 0.01 * jax.random.normal(ks[1], (6,), F32),
        "conv2_w": 0.1 * jax.random.normal(ks[2], (16, 6, 5, 5), F32),
        "conv2_b": 0.01 * jax.random.normal(ks[3], (16,), F32),
        "fc1_w": 0.05 * jax.random.normal(ks[4], (120, 400), F32),
        "fc1_b": 0.01 * jax.random.normal(ks[5], (120,), F32),
        "fc2_w": 0.05 * jax.random.normal(ks[6], (84, 120), F32),
        "fc2_b": 0.01 * jax.random.normal(ks[7], (84,), F32),
        "fc3_w": 0.05 * jax.random.normal(ks[8], (10, 84), F32),
        "fc3_b": 0.01 * jax.random.normal(ks[9], (10,), F32),
    }


if __name__ == "__main__":
    key = jax.random.PRNGKey(0)
    kx, kp = jax.random.split(key)
    # LeNet geometry requires 32x32 single-channel input (16*5*5 = 400 flatten).
    # Batch 16 with an 8-image batch tile -> 2 grid steps (both v7x TCs active).
    x = jax.random.normal(kx, (16, 1, 32, 32), F32)
    params = init_params(kp)

    out = jax.block_until_ready(jax.jit(cnn_forward)(x, params))

    assert out.shape == (16, 10)
    # Exact-reciprocal softmax: rows sum to 1 within f32 rounding.
    assert bool(jnp.all(jnp.abs(jnp.sum(out, axis=1) - 1.0) < 1e-3))
    # Match the plain-JAX (f32) reference within bf16-matmul tolerance.
    ref = _reference_forward(x, params)
    assert bool(jnp.max(jnp.abs(out - ref)) < 5e-2)
    print("KERNEL_OK")
</pallas_src>

<mosaic_0001>
module attributes {stable_mosaic.version = 11 : i64} {
  func.func @_lenet_kernel(%arg0: i32, %arg1: memref<256x32xf32, #tpu.memory_space<vmem>>, %arg2: memref<5x32x168xbf16, #tpu.memory_space<vmem>>, %arg3: memref<1x168xf32, #tpu.memory_space<vmem>>, %arg4: memref<112x256xbf16, #tpu.memory_space<vmem>>, %arg5: memref<112x256xbf16, #tpu.memory_space<vmem>>, %arg6: memref<168x84xbf16, #tpu.memory_space<vmem>>, %arg7: memref<168x84xbf16, #tpu.memory_space<vmem>>, %arg8: memref<5x84x160xbf16, #tpu.memory_space<vmem>>, %arg9: memref<1x160xf32, #tpu.memory_space<vmem>>, %arg10: memref<40x112xbf16, #tpu.memory_space<vmem>>, %arg11: memref<40x112xbf16, #tpu.memory_space<vmem>>, %arg12: memref<160x80xbf16, #tpu.memory_space<vmem>>, %arg13: memref<160x80xbf16, #tpu.memory_space<vmem>>, %arg14: memref<5x80x120xbf16, #tpu.memory_space<vmem>>, %arg15: memref<1x120xf32, #tpu.memory_space<vmem>>, %arg16: memref<120x84xbf16, #tpu.memory_space<vmem>>, %arg17: memref<1x84xf32, #tpu.memory_space<vmem>>, %arg18: memref<84x10xbf16, #tpu.memory_space<vmem>>, %arg19: memref<1x10xf32, #tpu.memory_space<vmem>>, %arg20: memref<8x10xf32, #tpu.memory_space<vmem>>) attributes {dimension_semantics = [#tpu.dimension_semantics<parallel>], iteration_bounds = array<i64: 2>, scalar_prefetch = 0 : i64, scratch_operands = 0 : i64, tpu.core_type = #tpu.core_type<tc>, window_params = [{transform_indices = @transform_0, window_bounds = array<i64: 256, 32>}, {pipeline_mode = #tpu.pipeline_mode<synchronous>, transform_indices = @transform_1, window_bounds = array<i64: 5, 32, 168>}, {pipeline_mode = #tpu.pipeline_mode<synchronous>, transform_indices = @transform_2, window_bounds = array<i64: 1, 168>}, {pipeline_mode = #tpu.pipeline_mode<synchronous>, transform_indices = @transform_3, window_bounds = array<i64: 112, 256>}, {pipeline_mode = #tpu.pipeline_mode<synchronous>, transform_indices = @transform_4, window_bounds = array<i64: 112, 256>}, {pipeline_mode = #tpu.pipeline_mode<synchronous>, transform_indices = @transform_5, window_bounds = array<i64: 168, 84>}, {pipeline_mode = #tpu.pipeline_mode<synchronous>, transform_indices = @transform_6, window_bounds = array<i64: 168, 84>}, {pipeline_mode = #tpu.pipeline_mode<synchronous>, transform_indices = @transform_7, window_bounds = array<i64: 5, 84, 160>}, {pipeline_mode = #tpu.pipeline_mode<synchronous>, transform_indices = @transform_8, window_bounds = array<i64: 1, 160>}, {pipeline_mode = #tpu.pipeline_mode<synchronous>, transform_indices = @transform_9, window_bounds = array<i64: 40, 112>}, {pipeline_mode = #tpu.pipeline_mode<synchronous>, transform_indices = @transform_10, window_bounds = array<i64: 40, 112>}, {pipeline_mode = #tpu.pipeline_mode<synchronous>, transform_indices = @transform_11, window_bounds = array<i64: 160, 80>}, {pipeline_mode = #tpu.pipeline_mode<synchronous>, transform_indices = @transform_12, window_bounds = array<i64: 160, 80>}, {pipeline_mode = #tpu.pipeline_mode<synchronous>, transform_indices = @transform_13, window_bounds = array<i64: 5, 80, 120>}, {pipeline_mode = #tpu.pipeline_mode<synchronous>, transform_indices = @transform_14, window_bounds = array<i64: 1, 120>}, {pipeline_mode = #tpu.pipeline_mode<synchronous>, transform_indices = @transform_15, window_bounds = array<i64: 120, 84>}, {pipeline_mode = #tpu.pipeline_mode<synchronous>, transform_indices = @transform_16, window_bounds = array<i64: 1, 84>}, {pipeline_mode = #tpu.pipeline_mode<synchronous>, transform_indices = @transform_17, window_bounds = array<i64: 84, 10>}, {pipeline_mode = #tpu.pipeline_mode<synchronous>, transform_indices = @transform_18, window_bounds = array<i64: 1, 10>}, {transform_indices = @transform_19, window_bounds = array<i64: 8, 10>}]} {
    %c0 = arith.constant 0 : index
    %c0_0 = arith.constant 0 : index
    %0 = vector.load %arg1[%c0, %c0_0] : memref<256x32xf32, #tpu.memory_space<vmem>>, vector<256x32xf32>
    %1 = arith.truncf %0 : vector<256x32xf32> to vector<256x32xbf16>
    %c0_1 = arith.constant 0 : index
    %c0_2 = arith.constant 0 : index
    %c0_3 = arith.constant 0 : index
    %2 = vector.load %arg2[%c0_1, %c0_2, %c0_3] : memref<5x32x168xbf16, #tpu.memory_space<vmem>>, vector<1x32x168xbf16>
    %3 = vector.shape_cast %2 : vector<1x32x168xbf16> to vector<32x168xbf16>
    %cst = arith.constant dense<0.000000e+00> : vector<256x168xf32>
    %4 = tpu.matmul %1, %3, %cst {dimension_numbers = #tpu.dot_dimension_numbers<[1], [0], [0], [1], [0, 0, 1, 1], [], []>} : vector<256x32xbf16>, vector<32x168xbf16>, vector<256x168xf32> -> vector<256x168xf32>
    %c255_i32 = arith.constant 255 : i32
    %5 = tpu.dynamic_rotate %0 by %c255_i32 dim 0 : vector<256x32xf32>, i32 -> vector<256x32xf32>
    %6 = arith.truncf %5 : vector<256x32xf32> to vector<256x32xbf16>
    %c1 = arith.constant 1 : index
    %c0_4 = arith.constant 0 : index
    %c0_5 = arith.constant 0 : index
    %7 = vector.load %arg2[%c1, %c0_4, %c0_5] : memref<5x32x168xbf16, #tpu.memory_space<vmem>>, vector<1x32x168xbf16>
    %8 = vector.shape_cast %7 : vector<1x32x168xbf16> to vector<32x168xbf16>
    %cst_6 = arith.constant dense<0.000000e+00> : vector<256x168xf32>
    %9 = tpu.matmul %6, %8, %cst_6 {dimension_numbers = #tpu.dot_dimension_numbers<[1], [0], [0], [1], [0, 0, 1, 1], [], []>} : vector<256x32xbf16>, vector<32x168xbf16>, vector<256x168xf32> -> vector<256x168xf32>
    %10 = arith.addf %4, %9 : vector<256x168xf32>
    %c254_i32 = arith.constant 254 : i32
    %11 = tpu.dynamic_rotate %0 by %c254_i32 dim 0 : vector<256x32xf32>, i32 -> vector<256x32xf32>
    %12 = arith.truncf %11 : vector<256x32xf32> to vector<256x32xbf16>
    %c2 = arith.constant 2 : index
    %c0_7 = arith.constant 0 : index
    %c0_8 = arith.constant 0 : index
    %13 = vector.load %arg2[%c2, %c0_7, %c0_8] : memref<5x32x168xbf16, #tpu.memory_space<vmem>>, vector<1x32x168xbf16>
    %14 = vector.shape_cast %13 : vector<1x32x168xbf16> to vector<32x168xbf16>
    %cst_9 = arith.constant dense<0.000000e+00> : vector<256x168xf32>
    %15 = tpu.matmul %12, %14, %cst_9 {dimension_numbers = #tpu.dot_dimension_numbers<[1], [0], [0], [1], [0, 0, 1, 1], [], []>} : vector<256x32xbf16>, vector<32x168xbf16>, vector<256x168xf32> -> vector<256x168xf32>
    %16 = arith.addf %10, %15 : vector<256x168xf32>
    %c253_i32 = arith.constant 253 : i32
    %17 = tpu.dynamic_rotate %0 by %c253_i32 dim 0 : vector<256x32xf32>, i32 -> vector<256x32xf32>
    %18 = arith.truncf %17 : vector<256x32xf32> to vector<256x32xbf16>
    %c3 = arith.constant 3 : index
    %c0_10 = arith.constant 0 : index
    %c0_11 = arith.constant 0 : index
    %19 = vector.load %arg2[%c3, %c0_10, %c0_11] : memref<5x32x168xbf16, #tpu.memory_space<vmem>>, vector<1x32x168xbf16>
    %20 = vector.shape_cast %19 : vector<1x32x168xbf16> to vector<32x168xbf16>
    %cst_12 = arith.constant dense<0.000000e+00> : vector<256x168xf32>
    %21 = tpu.matmul %18, %20, %cst_12 {dimension_numbers = #tpu.dot_dimension_numbers<[1], [0], [0], [1], [0, 0, 1, 1], [], []>} : vector<256x32xbf16>, vector<32x168xbf16>, vector<256x168xf32> -> vector<256x168xf32>
    %22 = arith.addf %16, %21 : vector<256x168xf32>
    %c252_i32 = arith.constant 252 : i32
    %23 = tpu.dynamic_rotate %0 by %c252_i32 dim 0 : vector<256x32xf32>, i32 -> vector<256x32xf32>
    %24 = arith.truncf %23 : vector<256x32xf32> to vector<256x32xbf16>
    %c4 = arith.constant 4 : index
    %c0_13 = arith.constant 0 : index
    %c0_14 = arith.constant 0 : index
    %25 = vector.load %arg2[%c4, %c0_13, %c0_14] : memref<5x32x168xbf16, #tpu.memory_space<vmem>>, vector<1x32x168xbf16>
    %26 = vector.shape_cast %25 : vector<1x32x168xbf16> to vector<32x168xbf16>
    %cst_15 = arith.constant dense<0.000000e+00> : vector<256x168xf32>
    %27 = tpu.matmul %24, %26, %cst_15 {dimension_numbers = #tpu.dot_dimension_numbers<[1], [0], [0], [1], [0, 0, 1, 1], [], []>} : vector<256x32xbf16>, vector<32x168xbf16>, vector<256x168xf32> -> vector<256x168xf32>
    %28 = arith.addf %22, %27 : vector<256x168xf32>
    %c0_16 = arith.constant 0 : index
    %c0_17 = arith.constant 0 : index
    %29 = vector.load %arg3[%c0_16, %c0_17] : memref<1x168xf32, #tpu.memory_space<vmem>>, vector<1x168xf32>
    %30 = vector.broadcast %29 : vector<1x168xf32> to vector<256x168xf32>
    %31 = arith.addf %28, %30 : vector<256x168xf32>
    %cst_18 = arith.constant 0.000000e+00 : f32
    %32 = vector.broadcast %cst_18 : f32 to vector<256x168xf32>
    %33 = arith.maximumf %31, %32 : vector<256x168xf32>
    %34 = arith.truncf %33 : vector<256x168xf32> to vector<256x168xbf16>
    %c0_19 = arith.constant 0 : index
    %c0_20 = arith.constant 0 : index
    %35 = vector.load %arg4[%c0_19, %c0_20] : memref<112x256xbf16, #tpu.memory_space<vmem>>, vector<112x256xbf16>
    %cst_21 = arith.constant dense<0.000000e+00> : vector<112x168xf32>
    %36 = tpu.matmul %35, %34, %cst_21 {dimension_numbers = #tpu.dot_dimension_numbers<[1], [0], [0], [1], [0, 0, 1, 1], [], []>} : vector<112x256xbf16>, vector<256x168xbf16>, vector<112x168xf32> -> vector<112x168xf32>
    %c0_22 = arith.constant 0 : index
    %c0_23 = arith.constant 0 : index
    %37 = vector.load %arg5[%c0_22, %c0_23] : memref<112x256xbf16, #tpu.memory_space<vmem>>, vector<112x256xbf16>
    %cst_24 = arith.constant dense<0.000000e+00> : vector<112x168xf32>
    %38 = tpu.matmul %37, %34, %cst_24 {dimension_numbers = #tpu.dot_dimension_numbers<[1], [0], [0], [1], [0, 0, 1, 1], [], []>} : vector<112x256xbf16>, vector<256x168xbf16>, vector<112x168xf32> -> vector<112x168xf32>
    %39 = arith.maximumf %36, %38 : vector<112x168xf32>
    %40 = arith.truncf %39 : vector<112x168xf32> to vector<112x168xbf16>
    %c0_25 = arith.constant 0 : index
    %c0_26 = arith.constant 0 : index
    %41 = vector.load %arg6[%c0_25, %c0_26] : memref<168x84xbf16, #tpu.memory_space<vmem>>, vector<168x84xbf16>
    %cst_27 = arith.constant dense<0.000000e+00> : vector<112x84xf32>
    %42 = tpu.matmul %40, %41, %cst_27 {dimension_numbers = #tpu.dot_dimension_numbers<[1], [0], [0], [1], [0, 0, 1, 1], [], []>} : vector<112x168xbf16>, vector<168x84xbf16>, vector<112x84xf32> -> vector<112x84xf32>
    %c0_28 = arith.constant 0 : index
    %c0_29 = arith.constant 0 : index
    %43 = vector.load %arg7[%c0_28, %c0_29] : memref<168x84xbf16, #tpu.memory_space<vmem>>, vector<168x84xbf16>
    %cst_30 = arith.constant dense<0.000000e+00> : vector<112x84xf32>
    %44 = tpu.matmul %40, %43, %cst_30 {dimension_numbers = #tpu.dot_dimension_numbers<[1], [0], [0], [1], [0, 0, 1, 1], [], []>} : vector<112x168xbf16>, vector<168x84xbf16>, vector<112x84xf32> -> vector<112x84xf32>
    %45 = arith.maximumf %42, %44 : vector<112x84xf32>
    %46 = arith.truncf %45 : vector<112x84xf32> to vector<112x84xbf16>
    %c0_31 = arith.constant 0 : index
    %c0_32 = arith.constant 0 : index
    %c0_33 = arith.constant 0 : index
    %47 = vector.load %arg8[%c0_31, %c0_32, %c0_33] : memref<5x84x160xbf16, #tpu.memory_space<vmem>>, vector<1x84x160xbf16>
    %48 = vector.shape_cast %47 : vector<1x84x160xbf16> to vector<84x160xbf16>
    %cst_34 = arith.constant dense<0.000000e+00> : vector<112x160xf32>
    %49 = tpu.matmul %46, %48, %cst_34 {dimension_numbers = #tpu.dot_dimension_numbers<[1], [0], [0], [1], [0, 0, 1, 1], [], []>} : vector<112x84xbf16>, vector<84x160xbf16>, vector<112x160xf32> -> vector<112x160xf32>
    %c111_i32 = arith.constant 111 : i32
    %50 = tpu.dynamic_rotate %45 by %c111_i32 dim 0 : vector<112x84xf32>, i32 -> vector<112x84xf32>
    %51 = arith.truncf %50 : vector<112x84xf32> to vector<112x84xbf16>
    %c1_35 = arith.constant 1 : index
    %c0_36 = arith.constant 0 : index
    %c0_37 = arith.constant 0 : index
    %52 = vector.load %arg8[%c1_35, %c0_36, %c0_37] : memref<5x84x160xbf16, #tpu.memory_space<vmem>>, vector<1x84x160xbf16>
    %53 = vector.shape_cast %52 : vector<1x84x160xbf16> to vector<84x160xbf16>
    %cst_38 = arith.constant dense<0.000000e+00> : vector<112x160xf32>
    %54 = tpu.matmul %51, %53, %cst_38 {dimension_numbers = #tpu.dot_dimension_numbers<[1], [0], [0], [1], [0, 0, 1, 1], [], []>} : vector<112x84xbf16>, vector<84x160xbf16>, vector<112x160xf32> -> vector<112x160xf32>
    %55 = arith.addf %49, %54 : vector<112x160xf32>
    %c110_i32 = arith.constant 110 : i32
    %56 = tpu.dynamic_rotate %45 by %c110_i32 dim 0 : vector<112x84xf32>, i32 -> vector<112x84xf32>
    %57 = arith.truncf %56 : vector<112x84xf32> to vector<112x84xbf16>
    %c2_39 = arith.constant 2 : index
    %c0_40 = arith.constant 0 : index
    %c0_41 = arith.constant 0 : index
    %58 = vector.load %arg8[%c2_39, %c0_40, %c0_41] : memref<5x84x160xbf16, #tpu.memory_space<vmem>>, vector<1x84x160xbf16>
    %59 = vector.shape_cast %58 : vector<1x84x160xbf16> to vector<84x160xbf16>
    %cst_42 = arith.constant dense<0.000000e+00> : vector<112x160xf32>
    %60 = tpu.matmul %57, %59, %cst_42 {dimension_numbers = #tpu.dot_dimension_numbers<[1], [0], [0], [1], [0, 0, 1, 1], [], []>} : vector<112x84xbf16>, vector<84x160xbf16>, vector<112x160xf32> -> vector<112x160xf32>
    %61 = arith.addf %55, %60 : vector<112x160xf32>
    %c109_i32 = arith.constant 109 : i32
    %62 = tpu.dynamic_rotate %45 by %c109_i32 dim 0 : vector<112x84xf32>, i32 -> vector<112x84xf32>
    %63 = arith.truncf %62 : vector<112x84xf32> to vector<112x84xbf16>
    %c3_43 = arith.constant 3 : index
    %c0_44 = arith.constant 0 : index
    %c0_45 = arith.constant 0 : index
    %64 = vector.load %arg8[%c3_43, %c0_44, %c0_45] : memref<5x84x160xbf16, #tpu.memory_space<vmem>>, vector<1x84x160xbf16>
    %65 = vector.shape_cast %64 : vector<1x84x160xbf16> to vector<84x160xbf16>
    %cst_46 = arith.constant dense<0.000000e+00> : vector<112x160xf32>
    %66 = tpu.matmul %63, %65, %cst_46 {dimension_numbers = #tpu.dot_dimension_numbers<[1], [0], [0], [1], [0, 0, 1, 1], [], []>} : vector<112x84xbf16>, vector<84x160xbf16>, vector<112x160xf32> -> vector<112x160xf32>
    %67 = arith.addf %61, %66 : vector<112x160xf32>
    %c108_i32 = arith.constant 108 : i32
    %68 = tpu.dynamic_rotate %45 by %c108_i32 dim 0 : vector<112x84xf32>, i32 -> vector<112x84xf32>
    %69 = arith.truncf %68 : vector<112x84xf32> to vector<112x84xbf16>
    %c4_47 = arith.constant 4 : index
    %c0_48 = arith.constant 0 : index
    %c0_49 = arith.constant 0 : index
    %70 = vector.load %arg8[%c4_47, %c0_48, %c0_49] : memref<5x84x160xbf16, #tpu.memory_space<vmem>>, vector<1x84x160xbf16>
    %71 = vector.shape_cast %70 : vector<1x84x160xbf16> to vector<84x160xbf16>
    %cst_50 = arith.constant dense<0.000000e+00> : vector<112x160xf32>
    %72 = tpu.matmul %69, %71, %cst_50 {dimension_numbers = #tpu.dot_dimension_numbers<[1], [0], [0], [1], [0, 0, 1, 1], [], []>} : vector<112x84xbf16>, vector<84x160xbf16>, vector<112x160xf32> -> vector<112x160xf32>
    %73 = arith.addf %67, %72 : vector<112x160xf32>
    %c0_51 = arith.constant 0 : index
    %c0_52 = arith.constant 0 : index
    %74 = vector.load %arg9[%c0_51, %c0_52] : memref<1x160xf32, #tpu.memory_space<vmem>>, vector<1x160xf32>
    %75 = vector.broadcast %74 : vector<1x160xf32> to vector<112x160xf32>
    %76 = arith.addf %73, %75 : vector<112x160xf32>
    %cst_53 = arith.constant 0.000000e+00 : f32
    %77 = vector.broadcast %cst_53 : f32 to vector<112x160xf32>
    %78 = arith.maximumf %76, %77 : vector<112x160xf32>
    %79 = arith.truncf %78 : vector<112x160xf32> to vector<112x160xbf16>
    %c0_54 = arith.constant 0 : index
    %c0_55 = arith.constant 0 : index
    %80 = vector.load %arg10[%c0_54, %c0_55] : memref<40x112xbf16, #tpu.memory_space<vmem>>, vector<40x112xbf16>
    %cst_56 = arith.constant dense<0.000000e+00> : vector<40x160xf32>
    %81 = tpu.matmul %80, %79, %cst_56 {dimension_numbers = #tpu.dot_dimension_numbers<[1], [0], [0], [1], [0, 0, 1, 1], [], []>} : vector<40x112xbf16>, vector<112x160xbf16>, vector<40x160xf32> -> vector<40x160xf32>
    %c0_57 = arith.constant 0 : index
    %c0_58 = arith.constant 0 : index
    %82 = vector.load %arg11[%c0_57, %c0_58] : memref<40x112xbf16, #tpu.memory_space<vmem>>, vector<40x112xbf16>
    %cst_59 = arith.constant dense<0.000000e+00> : vector<40x160xf32>
    %83 = tpu.matmul %82, %79, %cst_59 {dimension_numbers = #tpu.dot_dimension_numbers<[1], [0], [0], [1], [0, 0, 1, 1], [], []>} : vector<40x112xbf16>, vector<112x160xbf16>, vector<40x160xf32> -> vector<40x160xf32>
    %84 = arith.maximumf %81, %83 : vector<40x160xf32>
    %85 = arith.truncf %84 : vector<40x160xf32> to vector<40x160xbf16>
    %c0_60 = arith.constant 0 : index
    %c0_61 = arith.constant 0 : index
    %86 = vector.load %arg12[%c0_60, %c0_61] : memref<160x80xbf16, #tpu.memory_space<vmem>>, vector<160x80xbf16>
    %cst_62 = arith.constant dense<0.000000e+00> : vector<40x80xf32>
    %87 = tpu.matmul %85, %86, %cst_62 {dimension_numbers = #tpu.dot_dimension_numbers<[1], [0], [0], [1], [0, 0, 1, 1], [], []>} : vector<40x160xbf16>, vector<160x80xbf16>, vector<40x80xf32> -> vector<40x80xf32>
    %c0_63 = arith.constant 0 : index
    %c0_64 = arith.constant 0 : index
    %88 = vector.load %arg13[%c0_63, %c0_64] : memref<160x80xbf16, #tpu.memory_space<vmem>>, vector<160x80xbf16>
    %cst_65 = arith.constant dense<0.000000e+00> : vector<40x80xf32>
    %89 = tpu.matmul %85, %88, %cst_65 {dimension_numbers = #tpu.dot_dimension_numbers<[1], [0], [0], [1], [0, 0, 1, 1], [], []>} : vector<40x160xbf16>, vector<160x80xbf16>, vector<40x80xf32> -> vector<40x80xf32>
    %90 = arith.maximumf %87, %89 : vector<40x80xf32>
    %91 = vector.extract_strided_slice %90 {offsets = [0, 0], sizes = [8, 80], strides = [1, 1]} : vector<40x80xf32> to vector<8x80xf32>
    %92 = arith.truncf %91 : vector<8x80xf32> to vector<8x80xbf16>
    %c0_66 = arith.constant 0 : index
    %c0_67 = arith.constant 0 : index
    %c0_68 = arith.constant 0 : index
    %93 = vector.load %arg14[%c0_66, %c0_67, %c0_68] : memref<5x80x120xbf16, #tpu.memory_space<vmem>>, vector<1x80x120xbf16>
    %94 = vector.shape_cast %93 : vector<1x80x120xbf16> to vector<80x120xbf16>
    %cst_69 = arith.constant dense<0.000000e+00> : vector<8x120xf32>
    %95 = tpu.matmul %92, %94, %cst_69 {dimension_numbers = #tpu.dot_dimension_numbers<[1], [0], [0], [1], [0, 0, 1, 1], [], []>} : vector<8x80xbf16>, vector<80x120xbf16>, vector<8x120xf32> -> vector<8x120xf32>
    %96 = vector.extract_strided_slice %90 {offsets = [8, 0], sizes = [8, 80], strides = [1, 1]} : vector<40x80xf32> to vector<8x80xf32>
    %97 = arith.truncf %96 : vector<8x80xf32> to vector<8x80xbf16>
    %c1_70 = arith.constant 1 : index
    %c0_71 = arith.constant 0 : index
    %c0_72 = arith.constant 0 : index
    %98 = vector.load %arg14[%c1_70, %c0_71, %c0_72] : memref<5x80x120xbf16, #tpu.memory_space<vmem>>, vector<1x80x120xbf16>
    %99 = vector.shape_cast %98 : vector<1x80x120xbf16> to vector<80x120xbf16>
    %cst_73 = arith.constant dense<0.000000e+00> : vector<8x120xf32>
    %100 = tpu.matmul %97, %99, %cst_73 {dimension_numbers = #tpu.dot_dimension_numbers<[1], [0], [0], [1], [0, 0, 1, 1], [], []>} : vector<8x80xbf16>, vector<80x120xbf16>, vector<8x120xf32> -> vector<8x120xf32>
    %101 = arith.addf %95, %100 : vector<8x120xf32>
    %102 = vector.extract_strided_slice %90 {offsets = [16, 0], sizes = [8, 80], strides = [1, 1]} : vector<40x80xf32> to vector<8x80xf32>
    %103 = arith.truncf %102 : vector<8x80xf32> to vector<8x80xbf16>
    %c2_74 = arith.constant 2 : index
    %c0_75 = arith.constant 0 : index
    %c0_76 = arith.constant 0 : index
    %104 = vector.load %arg14[%c2_74, %c0_75, %c0_76] : memref<5x80x120xbf16, #tpu.memory_space<vmem>>, vector<1x80x120xbf16>
    %105 = vector.shape_cast %104 : vector<1x80x120xbf16> to vector<80x120xbf16>
    %cst_77 = arith.constant dense<0.000000e+00> : vector<8x120xf32>
    %106 = tpu.matmul %103, %105, %cst_77 {dimension_numbers = #tpu.dot_dimension_numbers<[1], [0], [0], [1], [0, 0, 1, 1], [], []>} : vector<8x80xbf16>, vector<80x120xbf16>, vector<8x120xf32> -> vector<8x120xf32>
    %107 = arith.addf %101, %106 : vector<8x120xf32>
    %108 = vector.extract_strided_slice %90 {offsets = [24, 0], sizes = [8, 80], strides = [1, 1]} : vector<40x80xf32> to vector<8x80xf32>
    %109 = arith.truncf %108 : vector<8x80xf32> to vector<8x80xbf16>
    %c3_78 = arith.constant 3 : index
    %c0_79 = arith.constant 0 : index
    %c0_80 = arith.constant 0 : index
    %110 = vector.load %arg14[%c3_78, %c0_79, %c0_80] : memref<5x80x120xbf16, #tpu.memory_space<vmem>>, vector<1x80x120xbf16>
    %111 = vector.shape_cast %110 : vector<1x80x120xbf16> to vector<80x120xbf16>
    %cst_81 = arith.constant dense<0.000000e+00> : vector<8x120xf32>
    %112 = tpu.matmul %109, %111, %cst_81 {dimension_numbers = #tpu.dot_dimension_numbers<[1], [0], [0], [1], [0, 0, 1, 1], [], []>} : vector<8x80xbf16>, vector<80x120xbf16>, vector<8x120xf32> -> vector<8x120xf32>
    %113 = arith.addf %107, %112 : vector<8x120xf32>
    %114 = vector.extract_strided_slice %90 {offsets = [32, 0], sizes = [8, 80], strides = [1, 1]} : vector<40x80xf32> to vector<8x80xf32>
    %115 = arith.truncf %114 : vector<8x80xf32> to vector<8x80xbf16>
    %c4_82 = arith.constant 4 : index
    %c0_83 = arith.constant 0 : index
    %c0_84 = arith.constant 0 : index
    %116 = vector.load %arg14[%c4_82, %c0_83, %c0_84] : memref<5x80x120xbf16, #tpu.memory_space<vmem>>, vector<1x80x120xbf16>
    %117 = vector.shape_cast %116 : vector<1x80x120xbf16> to vector<80x120xbf16>
    %cst_85 = arith.constant dense<0.000000e+00> : vector<8x120xf32>
    %118 = tpu.matmul %115, %117, %cst_85 {dimension_numbers = #tpu.dot_dimension_numbers<[1], [0], [0], [1], [0, 0, 1, 1], [], []>} : vector<8x80xbf16>, vector<80x120xbf16>, vector<8x120xf32> -> vector<8x120xf32>
    %119 = arith.addf %113, %118 : vector<8x120xf32>
    %c0_86 = arith.constant 0 : index
    %c0_87 = arith.constant 0 : index
    %120 = vector.load %arg15[%c0_86, %c0_87] : memref<1x120xf32, #tpu.memory_space<vmem>>, vector<1x120xf32>
    %121 = vector.broadcast %120 : vector<1x120xf32> to vector<8x120xf32>
    %122 = arith.addf %119, %121 : vector<8x120xf32>
    %cst_88 = arith.constant 0.000000e+00 : f32
    %123 = vector.broadcast %cst_88 : f32 to vector<8x120xf32>
    %124 = arith.maximumf %122, %123 : vector<8x120xf32>
    %125 = arith.truncf %124 : vector<8x120xf32> to vector<8x120xbf16>
    %c0_89 = arith.constant 0 : index
    %c0_90 = arith.constant 0 : index
    %126 = vector.load %arg16[%c0_89, %c0_90] : memref<120x84xbf16, #tpu.memory_space<vmem>>, vector<120x84xbf16>
    %cst_91 = arith.constant dense<0.000000e+00> : vector<8x84xf32>
    %127 = tpu.matmul %125, %126, %cst_91 {dimension_numbers = #tpu.dot_dimension_numbers<[1], [0], [0], [1], [0, 0, 1, 1], [], []>} : vector<8x120xbf16>, vector<120x84xbf16>, vector<8x84xf32> -> vector<8x84xf32>
    %c0_92 = arith.constant 0 : index
    %c0_93 = arith.constant 0 : index
    %128 = vector.load %arg17[%c0_92, %c0_93] : memref<1x84xf32, #tpu.memory_space<vmem>>, vector<1x84xf32>
    %129 = vector.broadcast %128 : vector<1x84xf32> to vector<8x84xf32>
    %130 = arith.addf %127, %129 : vector<8x84xf32>
    %cst_94 = arith.constant 0.000000e+00 : f32
    %131 = vector.broadcast %cst_94 : f32 to vector<8x84xf32>
    %132 = arith.maximumf %130, %131 : vector<8x84xf32>
    %133 = arith.truncf %132 : vector<8x84xf32> to vector<8x84xbf16>
    %c0_95 = arith.constant 0 : index
    %c0_96 = arith.constant 0 : index
    %134 = vector.load %arg18[%c0_95, %c0_96] : memref<84x10xbf16, #tpu.memory_space<vmem>>, vector<84x10xbf16>
    %cst_97 = arith.constant dense<0.000000e+00> : vector<8x10xf32>
    %135 = tpu.matmul %133, %134, %cst_97 {dimension_numbers = #tpu.dot_dimension_numbers<[1], [0], [0], [1], [0, 0, 1, 1], [], []>} : vector<8x84xbf16>, vector<84x10xbf16>, vector<8x10xf32> -> vector<8x10xf32>
    %c0_98 = arith.constant 0 : index
    %c0_99 = arith.constant 0 : index
    %136 = vector.load %arg19[%c0_98, %c0_99] : memref<1x10xf32, #tpu.memory_space<vmem>>, vector<1x10xf32>
    %137 = vector.broadcast %136 : vector<1x10xf32> to vector<8x10xf32>
    %138 = arith.addf %135, %137 : vector<8x10xf32>
    %cst_100 = arith.constant dense<0xFF800000> : vector<8xf32>
    %139 = vector.multi_reduction <maximumf>, %138, %cst_100 [1] : vector<8x10xf32> to vector<8xf32>
    %140 = vector.shape_cast %139 : vector<8xf32> to vector<8x1xf32>
    %141 = vector.broadcast %140 : vector<8x1xf32> to vector<8x10xf32>
    %142 = arith.subf %138, %141 : vector<8x10xf32>
    %143 = math.exp %142 : vector<8x10xf32>
    %cst_101 = arith.constant dense<0.000000e+00> : vector<8xf32>
    %144 = vector.multi_reduction <add>, %143, %cst_101 [1] : vector<8x10xf32> to vector<8xf32>
    %145 = vector.shape_cast %144 : vector<8xf32> to vector<8x1xf32>
    %146 = tpu.reciprocal %145 : vector<8x1xf32> -> vector<8x1xf32>
    %147 = vector.broadcast %146 : vector<8x1xf32> to vector<8x10xf32>
    %148 = arith.mulf %143, %147 : vector<8x10xf32>
    %c0_102 = arith.constant 0 : index
    %c0_103 = arith.constant 0 : index
    %149 = vector.load %arg20[%c0_102, %c0_103] : memref<8x10xf32, #tpu.memory_space<vmem>>, vector<8x10xf32>
    tpu.vector_store %arg20[%c0_102, %c0_103], %148 {strides = array<i32>} : memref<8x10xf32, #tpu.memory_space<vmem>>, vector<8x10xf32>,
    return
  }
  func.func @transform_0(%arg0: i32) -> (i32, i32) {
    %c0_i32 = arith.constant 0 : i32
    %c0_i32_0 = arith.constant 0 : i32
    return %arg0, %c0_i32 : i32, i32
  }
  func.func @transform_1(%arg0: i32) -> (i32, i32, i32) {
    %c0_i32 = arith.constant 0 : i32
    %c0_i32_0 = arith.constant 0 : i32
    %c0_i32_1 = arith.constant 0 : i32
    %c0_i32_2 = arith.constant 0 : i32
    return %c0_i32, %c0_i32_0, %c0_i32_1 : i32, i32, i32
  }
  func.func @transform_2(%arg0: i32) -> (i32, i32) {
    %c0_i32 = arith.constant 0 : i32
    %c0_i32_0 = arith.constant 0 : i32
    %c0_i32_1 = arith.constant 0 : i32
    return %c0_i32, %c0_i32_0 : i32, i32
  }
  func.func @transform_3(%arg0: i32) -> (i32, i32) {
    %c0_i32 = arith.constant 0 : i32
    %c0_i32_0 = arith.constant 0 : i32
    %c0_i32_1 = arith.constant 0 : i32
    return %c0_i32, %c0_i32_0 : i32, i32
  }
  func.func @transform_4(%arg0: i32) -> (i32, i32) {
    %c0_i32 = arith.constant 0 : i32
    %c0_i32_0 = arith.constant 0 : i32
    %c0_i32_1 = arith.constant 0 : i32
    return %c0_i32, %c0_i32_0 : i32, i32
  }
  func.func @transform_5(%arg0: i32) -> (i32, i32) {
    %c0_i32 = arith.constant 0 : i32
    %c0_i32_0 = arith.constant 0 : i32
    %c0_i32_1 = arith.constant 0 : i32
    return %c0_i32, %c0_i32_0 : i32, i32
  }
  func.func @transform_6(%arg0: i32) -> (i32, i32) {
    %c0_i32 = arith.constant 0 : i32
    %c0_i32_0 = arith.constant 0 : i32
    %c0_i32_1 = arith.constant 0 : i32
    return %c0_i32, %c0_i32_0 : i32, i32
  }
  func.func @transform_7(%arg0: i32) -> (i32, i32, i32) {
    %c0_i32 = arith.constant 0 : i32
    %c0_i32_0 = arith.constant 0 : i32
    %c0_i32_1 = arith.constant 0 : i32
    %c0_i32_2 = arith.constant 0 : i32
    return %c0_i32, %c0_i32_0, %c0_i32_1 : i32, i32, i32
  }
  func.func @transform_8(%arg0: i32) -> (i32, i32) {
    %c0_i32 = arith.constant 0 : i32
    %c0_i32_0 = arith.constant 0 : i32
    %c0_i32_1 = arith.constant 0 : i32
    return %c0_i32, %c0_i32_0 : i32, i32
  }
  func.func @transform_9(%arg0: i32) -> (i32, i32) {
    %c0_i32 = arith.constant 0 : i32
    %c0_i32_0 = arith.constant 0 : i32
    %c0_i32_1 = arith.constant 0 : i32
    return %c0_i32, %c0_i32_0 : i32, i32
  }
  func.func @transform_10(%arg0: i32) -> (i32, i32) {
    %c0_i32 = arith.constant 0 : i32
    %c0_i32_0 = arith.constant 0 : i32
    %c0_i32_1 = arith.constant 0 : i32
    return %c0_i32, %c0_i32_0 : i32, i32
  }
  func.func @transform_11(%arg0: i32) -> (i32, i32) {
    %c0_i32 = arith.constant 0 : i32
    %c0_i32_0 = arith.constant 0 : i32
    %c0_i32_1 = arith.constant 0 : i32
    return %c0_i32, %c0_i32_0 : i32, i32
  }
  func.func @transform_12(%arg0: i32) -> (i32, i32) {
    %c0_i32 = arith.constant 0 : i32
    %c0_i32_0 = arith.constant 0 : i32
    %c0_i32_1 = arith.constant 0 : i32
    return %c0_i32, %c0_i32_0 : i32, i32
  }
  func.func @transform_13(%arg0: i32) -> (i32, i32, i32) {
    %c0_i32 = arith.constant 0 : i32
    %c0_i32_0 = arith.constant 0 : i32
    %c0_i32_1 = arith.constant 0 : i32
    %c0_i32_2 = arith.constant 0 : i32
    return %c0_i32, %c0_i32_0, %c0_i32_1 : i32, i32, i32
  }
  func.func @transform_14(%arg0: i32) -> (i32, i32) {
    %c0_i32 = arith.constant 0 : i32
    %c0_i32_0 = arith.constant 0 : i32
    %c0_i32_1 = arith.constant 0 : i32
    return %c0_i32, %c0_i32_0 : i32, i32
  }
  func.func @transform_15(%arg0: i32) -> (i32, i32) {
    %c0_i32 = arith.constant 0 : i32
    %c0_i32_0 = arith.constant 0 : i32
    %c0_i32_1 = arith.constant 0 : i32
    return %c0_i32, %c0_i32_0 : i32, i32
  }
  func.func @transform_16(%arg0: i32) -> (i32, i32) {
    %c0_i32 = arith.constant 0 : i32
    %c0_i32_0 = arith.constant 0 : i32
    %c0_i32_1 = arith.constant 0 : i32
    return %c0_i32, %c0_i32_0 : i32, i32
  }
  func.func @transform_17(%arg0: i32) -> (i32, i32) {
    %c0_i32 = arith.constant 0 : i32
    %c0_i32_0 = arith.constant 0 : i32
    %c0_i32_1 = arith.constant 0 : i32
    return %c0_i32, %c0_i32_0 : i32, i32
  }
  func.func @transform_18(%arg0: i32) -> (i32, i32) {
    %c0_i32 = arith.constant 0 : i32
    %c0_i32_0 = arith.constant 0 : i32
    %c0_i32_1 = arith.constant 0 : i32
    return %c0_i32, %c0_i32_0 : i32, i32
  }
  func.func @transform_19(%arg0: i32) -> (i32, i32) {
    %c0_i32 = arith.constant 0 : i32
    %c0_i32_0 = arith.constant 0 : i32
    return %arg0, %c0_i32 : i32, i32
  }
}

</mosaic_0001>

<llo_original>
// kernel: cnn_forward.1
$region0: #{cnn_forward.1}
  #allocation0 [shape = 'u32[]', space=smem, size = 0x4, offset = 0x4, fixed_abs, tag = 'smem constant byte address 0x4 - core index']
  #allocation1 [shape = 'u32[144,128]{1,0:T(1,128)}', space=vmem, size = 0x12000, scoped, tag = 'internal scratch']
  %s0 = inlined_call_operand.vmem [shape: f32[512,32], index: 0, kind: input, shape index: {}]
  %s1 = inlined_call_operand.vmem [shape: bf16[5,32,168], index: 1, kind: input, shape index: {}]
  %s2 = inlined_call_operand.vmem [shape: f32[1,168], index: 2, kind: input, shape index: {}]
  %s3 = inlined_call_operand.vmem [shape: bf16[112,256], index: 3, kind: input, shape index: {}]
  %s4 = inlined_call_operand.vmem [shape: bf16[112,256], index: 4, kind: input, shape index: {}]
  %s5 = inlined_call_operand.vmem [shape: bf16[168,84], index: 5, kind: input, shape index: {}]
  %s6 = inlined_call_operand.vmem [shape: bf16[168,84], index: 6, kind: input, shape index: {}]
  %s7 = inlined_call_operand.vmem [shape: bf16[5,84,160], index: 7, kind: input, shape index: {}]
  %s8 = inlined_call_operand.vmem [shape: f32[1,160], index: 8, kind: input, shape index: {}]
  %s9 = inlined_call_operand.vmem [shape: bf16[40,112], index: 9, kind: input, shape index: {}]
  %s10 = inlined_call_operand.vmem [shape: bf16[40,112], index: 10, kind: input, shape index: {}]
  %s11 = inlined_call_operand.vmem [shape: bf16[160,80], index: 11, kind: input, shape index: {}]
  %s12 = inlined_call_operand.vmem [shape: bf16[160,80], index: 12, kind: input, shape index: {}]
  %s13 = inlined_call_operand.vmem [shape: bf16[5,80,120], index: 13, kind: input, shape index: {}]
  %s14 = inlined_call_operand.vmem [shape: f32[1,120], index: 14, kind: input, shape index: {}]
  %s15 = inlined_call_operand.vmem [shape: bf16[120,84], index: 15, kind: input, shape index: {}]
  %s16 = inlined_call_operand.vmem [shape: f32[1,84], index: 16, kind: input, shape index: {}]
  %s17 = inlined_call_operand.vmem [shape: bf16[84,10], index: 17, kind: input, shape index: {}]
  %s18 = inlined_call_operand.vmem [shape: f32[1,10], index: 18, kind: input, shape index: {}]
  %s19 = inlined_call_operand.hbm [shape: f32[16,10], index: 19, kind: output, shape index: {}]
  %s20 = sld [smem:[#allocation0]]
  $region109: #{cnn_forward.1} parent=0
    _
  %s22 = ssub.s32 1, %s20
  %s23 = scalar_select 0, %s22, %s20
  $region1: #{cnn_forward.1} parent=0
    #allocation2 [shape = 'u8[8192]{0}', space=vmem, size = 0x2000, scoped, tag = 'output window, operand 0']
    #allocation3 [shape = 's32[2]{0}', space=sflag, size = 0x8, scoped, tag = 'scoped memory for cnn_forward.1']
    %24 = vsyncpa [#allocation3], 0
    %s25 = scalar_lea.sflag [#allocation3], 1
    %26 = vsyncpa %s25, 0
    loop: start=0, step=1, limit=4
    $region2: #{cnn_forward.1} parent=1 // loop_pre_header
      _
    $region3: #{cnn_forward.1} parent=1 // loop_header
      %s28 = sphi 0, %s32
      %p29 = scmp.ge.s32.totalorder %s28, 4
      %s38 = sphi 0, %s40
      %s41 = sphi 0, %s38
      %s42 = sphi 0, %s41
      %s58 = sphi 0, %s42
      %s62 = sphi 0, %s62
      %s64 = sphi 0, %s62
      %s65 = sphi 0, %s64
      %s79 = sphi 0, %s65
      %s83 = sphi 0, %s83
      %s85 = sphi 0, %s83
      %s86 = sphi 0, %s85
      %s100 = sphi 0, %s86
      %s104 = sphi 0, %s104
      %s106 = sphi 0, %s104
      %s107 = sphi 0, %s106
      %s121 = sphi 0, %s107
      %s125 = sphi 0, %s125
      %s127 = sphi 0, %s125
      %s128 = sphi 0, %s127
      %s142 = sphi 0, %s128
      %s146 = sphi 0, %s146
      %s148 = sphi 0, %s146
      %s149 = sphi 0, %s148
      %s163 = sphi 0, %s149
      %s167 = sphi 0, %s167
      %s169 = sphi 0, %s167
      %s170 = sphi 0, %s169
      %s184 = sphi 0, %s170
      %s188 = sphi 0, %s188
      %s190 = sphi 0, %s188
      %s191 = sphi 0, %s190
      %s205 = sphi 0, %s191
      %s209 = sphi 0, %s209
      %s211 = sphi 0, %s209
      %s212 = sphi 0, %s211
      %s226 = sphi 0, %s212
      %s230 = sphi 0, %s230
      %s232 = sphi 0, %s230
      %s233 = sphi 0, %s232
      %s247 = sphi 0, %s233
      %s251 = sphi 0, %s251
      %s253 = sphi 0, %s251
      %s254 = sphi 0, %s253
      %s268 = sphi 0, %s254
      %s272 = sphi 0, %s272
      %s274 = sphi 0, %s272
      %s275 = sphi 0, %s274
      %s289 = sphi 0, %s275
      %s293 = sphi 0, %s293
      %s295 = sphi 0, %s293
      %s296 = sphi 0, %s295
      %s310 = sphi 0, %s296
      %s314 = sphi 0, %s314
      %s316 = sphi 0, %s314
      %s317 = sphi 0, %s316
      %s331 = sphi 0, %s317
      %s335 = sphi 0, %s335
      %s337 = sphi 0, %s335
      %s338 = sphi 0, %s337
      %s352 = sphi 0, %s338
      %s356 = sphi 0, %s356
      %s358 = sphi 0, %s356
      %s359 = sphi 0, %s358
      %s373 = sphi 0, %s359
      %s377 = sphi 0, %s377
      %s379 = sphi 0, %s377
      %s380 = sphi 0, %s379
      %s394 = sphi 0, %s380
      %s398 = sphi 0, %s398
      %s400 = sphi 0, %s398
      %s401 = sphi 0, %s400
      %s415 = sphi 0, %s401
      %s419 = sphi 0, %s419
      %s421 = sphi 0, %s419
      %s422 = sphi 0, %s421
      %s436 = sphi 0, %s422
      %s442 = sphi 0, %s444
      %s445 = sphi 0, %s442
      %s446 = sphi 0, %s445
      %s462 = sphi 0, %s446
    $region4: #{cnn_forward.1} parent=1 // loop_header_branch
      %31 = sbr.rel (%p29) target = $region8
    $region5: #{cnn_forward.1} parent=1 // loop_body
      %s33 = ssub.s32 %s28, 1
      %s34 = ssub.s32 %s28, 2
      %s35 = sadd.s32 %s28, 1
      %s36 = ssub.s32 %s28, %s35
      %p37 = scmp.eq.s32.totalorder %s36, 0
      %s39 = sadd.s32 %s38, 1
      %s40 = scalar_select %p37, %s38, %s39
      %p43 = pneg %p37
      %p44 = scmp.eq.s32.totalorder %s28, 1
      %p45 = por %p43, %p44
      %p46 = scmp.ne.s32.totalorder %s38, %s41
      %p47 = scmp.eq.s32.totalorder %s28, 0
      %p48 = por %p46, %p47
      %p49 = scmp.ne.s32.totalorder %s38, %s41
      %p50 = scmp.eq.s32.totalorder %s33, 1
      %p51 = por %p49, %p50
      %p52 = scmp.ne.s32.totalorder %s41, %s42
      %p53 = scmp.eq.s32.totalorder %s33, 0
      %p54 = por %p52, %p53
      %p55 = scmp.ne.s32.totalorder %s41, %s42
      %p56 = scmp.eq.s32.totalorder %s34, 1
      %p57 = por %p55, %p56
      %p59 = scmp.ne.s32.totalorder %s42, %s58
      %p60 = scmp.eq.s32.totalorder %s34, 0
      %p61 = por %p59, %p60
      %s63 = sadd.s32 %s62, 1
      %p66 = scmp.eq.s32.totalorder %s28, 1
      %p67 = scmp.ne.s32.totalorder %s62, %s64
      %p68 = scmp.eq.s32.totalorder %s28, 0
      %p69 = por %p67, %p68
      %p70 = scmp.ne.s32.totalorder %s62, %s64
      %p71 = scmp.eq.s32.totalorder %s33, 1
      %p72 = por %p70, %p71
      %p73 = scmp.ne.s32.totalorder %s64, %s65
      %p74 = scmp.eq.s32.totalorder %s33, 0
      %p75 = por %p73, %p74
      %p76 = scmp.ne.s32.totalorder %s64, %s65
      %p77 = scmp.eq.s32.totalorder %s34, 1
      %p78 = por %p76, %p77
      %p80 = scmp.ne.s32.totalorder %s65, %s79
      %p81 = scmp.eq.s32.totalorder %s34, 0
      %p82 = por %p80, %p81
      %s84 = sadd.s32 %s83, 1
      %p87 = scmp.eq.s32.totalorder %s28, 1
      %p88 = scmp.ne.s32.totalorder %s83, %s85
      %p89 = scmp.eq.s32.totalorder %s28, 0
      %p90 = por %p88, %p89
      %p91 = scmp.ne.s32.totalorder %s83, %s85
      %p92 = scmp.eq.s32.totalorder %s33, 1
      %p93 = por %p91, %p92
      %p94 = scmp.ne.s32.totalorder %s85, %s86
      %p95 = scmp.eq.s32.totalorder %s33, 0
      %p96 = por %p94, %p95
      %p97 = scmp.ne.s32.totalorder %s85, %s86
      %p98 = scmp.eq.s32.totalorder %s34, 1
      %p99 = por %p97, %p98
      %p101 = scmp.ne.s32.totalorder %s86, %s100
      %p102 = scmp.eq.s32.totalorder %s34, 0
      %p103 = por %p101, %p102
      %s105 = sadd.s32 %s104, 1
      %p108 = scmp.eq.s32.totalorder %s28, 1
      %p109 = scmp.ne.s32.totalorder %s104, %s106
      %p110 = scmp.eq.s32.totalorder %s28, 0
      %p111 = por %p109, %p110
      %p112 = scmp.ne.s32.totalorder %s104, %s106
      %p113 = scmp.eq.s32.totalorder %s33, 1
      %p114 = por %p112, %p113
      %p115 = scmp.ne.s32.totalorder %s106, %s107
      %p116 = scmp.eq.s32.totalorder %s33, 0
      %p117 = por %p115, %p116
      %p118 = scmp.ne.s32.totalorder %s106, %s107
      %p119 = scmp.eq.s32.totalorder %s34, 1
      %p120 = por %p118, %p119
      %p122 = scmp.ne.s32.totalorder %s107, %s121
      %p123 = scmp.eq.s32.totalorder %s34, 0
      %p124 = por %p122, %p123
      %s126 = sadd.s32 %s125, 1
      %p129 = scmp.eq.s32.totalorder %s28, 1
      %p130 = scmp.ne.s32.totalorder %s125, %s127
      %p131 = scmp.eq.s32.totalorder %s28, 0
      %p132 = por %p130, %p131
      %p133 = scmp.ne.s32.totalorder %s125, %s127
      %p134 = scmp.eq.s32.totalorder %s33, 1
      %p135 = por %p133, %p134
      %p136 = scmp.ne.s32.totalorder %s127, %s128
      %p137 = scmp.eq.s32.totalorder %s33, 0
      %p138 = por %p136, %p137
      %p139 = scmp.ne.s32.totalorder %s127, %s128
      %p140 = scmp.eq.s32.totalorder %s34, 1
      %p141 = por %p139, %p140
      %p143 = scmp.ne.s32.totalorder %s128, %s142
      %p144 = scmp.eq.s32.totalorder %s34, 0
      %p145 = por %p143, %p144
      %s147 = sadd.s32 %s146, 1
      %p150 = scmp.eq.s32.totalorder %s28, 1
      %p151 = scmp.ne.s32.totalorder %s146, %s148
      %p152 = scmp.eq.s32.totalorder %s28, 0
      %p153 = por %p151, %p152
      %p154 = scmp.ne.s32.totalorder %s146, %s148
      %p155 = scmp.eq.s32.totalorder %s33, 1
      %p156 = por %p154, %p155
      %p157 = scmp.ne.s32.totalorder %s148, %s149
      %p158 = scmp.eq.s32.totalorder %s33, 0
      %p159 = por %p157, %p158
      %p160 = scmp.ne.s32.totalorder %s148, %s149
      %p161 = scmp.eq.s32.totalorder %s34, 1
      %p162 = por %p160, %p161
      %p164 = scmp.ne.s32.totalorder %s149, %s163
      %p165 = scmp.eq.s32.totalorder %s34, 0
      %p166 = por %p164, %p165
      %s168 = sadd.s32 %s167, 1
      %p171 = scmp.eq.s32.totalorder %s28, 1
      %p172 = scmp.ne.s32.totalorder %s167, %s169
      %p173 = scmp.eq.s32.totalorder %s28, 0
      %p174 = por %p172, %p173
      %p175 = scmp.ne.s32.totalorder %s167, %s169
      %p176 = scmp.eq.s32.totalorder %s33, 1
      %p177 = por %p175, %p176
      %p178 = scmp.ne.s32.totalorder %s169, %s170
      %p179 = scmp.eq.s32.totalorder %s33, 0
      %p180 = por %p178, %p179
      %p181 = scmp.ne.s32.totalorder %s169, %s170
      %p182 = scmp.eq.s32.totalorder %s34, 1
      %p183 = por %p181, %p182
      %p185 = scmp.ne.s32.totalorder %s170, %s184
      %p186 = scmp.eq.s32.totalorder %s34, 0
      %p187 = por %p185, %p186
      %s189 = sadd.s32 %s188, 1
      %p192 = scmp.eq.s32.totalorder %s28, 1
      %p193 = scmp.ne.s32.totalorder %s188, %s190
      %p194 = scmp.eq.s32.totalorder %s28, 0
      %p195 = por %p193, %p194
      %p196 = scmp.ne.s32.totalorder %s188, %s190
      %p197 = scmp.eq.s32.totalorder %s33, 1
      %p198 = por %p196, %p197
      %p199 = scmp.ne.s32.totalorder %s190, %s191
      %p200 = scmp.eq.s32.totalorder %s33, 0
      %p201 = por %p199, %p200
      %p202 = scmp.ne.s32.totalorder %s190, %s191
      %p203 = scmp.eq.s32.totalorder %s34, 1
      %p204 = por %p202, %p203
      %p206 = scmp.ne.s32.totalorder %s191, %s205
      %p207 = scmp.eq.s32.totalorder %s34, 0
      %p208 = por %p206, %p207
      %s210 = sadd.s32 %s209, 1
      %p213 = scmp.eq.s32.totalorder %s28, 1
      %p214 = scmp.ne.s32.totalorder %s209, %s211
      %p215 = scmp.eq.s32.totalorder %s28, 0
      %p216 = por %p214, %p215
      %p217 = scmp.ne.s32.totalorder %s209, %s211
      %p218 = scmp.eq.s32.totalorder %s33, 1
      %p219 = por %p217, %p218
      %p220 = scmp.ne.s32.totalorder %s211, %s212
      %p221 = scmp.eq.s32.totalorder %s33, 0
      %p222 = por %p220, %p221
      %p223 = scmp.ne.s32.totalorder %s211, %s212
      %p224 = scmp.eq.s32.totalorder %s34, 1
      %p225 = por %p223, %p224
      %p227 = scmp.ne.s32.totalorder %s212, %s226
      %p228 = scmp.eq.s32.totalorder %s34, 0
      %p229 = por %p227, %p228
      %s231 = sadd.s32 %s230, 1
      %p234 = scmp.eq.s32.totalorder %s28, 1
      %p235 = scmp.ne.s32.totalorder %s230, %s232
      %p236 = scmp.eq.s32.totalorder %s28, 0
      %p237 = por %p235, %p236
      %p238 = scmp.ne.s32.totalorder %s230, %s232
      %p239 = scmp.eq.s32.totalorder %s33, 1
      %p240 = por %p238, %p239
      %p241 = scmp.ne.s32.totalorder %s232, %s233
      %p242 = scmp.eq.s32.totalorder %s33, 0
      %p243 = por %p241, %p242
      %p244 = scmp.ne.s32.totalorder %s232, %s233
      %p245 = scmp.eq.s32.totalorder %s34, 1
      %p246 = por %p244, %p245
      %p248 = scmp.ne.s32.totalorder %s233, %s247
      %p249 = scmp.eq.s32.totalorder %s34, 0
      %p250 = por %p248, %p249
      %s252 = sadd.s32 %s251, 1
      %p255 = scmp.eq.s32.totalorder %s28, 1
      %p256 = scmp.ne.s32.totalorder %s251, %s253
      %p257 = scmp.eq.s32.totalorder %s28, 0
      %p258 = por %p256, %p257
      %p259 = scmp.ne.s32.totalorder %s251, %s253
      %p260 = scmp.eq.s32.totalorder %s33, 1
      %p261 = por %p259, %p260
      %p262 = scmp.ne.s32.totalorder %s253, %s254
      %p263 = scmp.eq.s32.totalorder %s33, 0
      %p264 = por %p262, %p263
      %p265 = scmp.ne.s32.totalorder %s253, %s254
      %p266 = scmp.eq.s32.totalorder %s34, 1
      %p267 = por %p265, %p266
      %p269 = scmp.ne.s32.totalorder %s254, %s268
      %p270 = scmp.eq.s32.totalorder %s34, 0
      %p271 = por %p269, %p270
      %s273 = sadd.s32 %s272, 1
      %p276 = scmp.eq.s32.totalorder %s28, 1
      %p277 = scmp.ne.s32.totalorder %s272, %s274
      %p278 = scmp.eq.s32.totalorder %s28, 0
      %p279 = por %p277, %p278
      %p280 = scmp.ne.s32.totalorder %s272, %s274
      %p281 = scmp.eq.s32.totalorder %s33, 1
      %p282 = por %p280, %p281
      %p283 = scmp.ne.s32.totalorder %s274, %s275
      %p284 = scmp.eq.s32.totalorder %s33, 0
      %p285 = por %p283, %p284
      %p286 = scmp.ne.s32.totalorder %s274, %s275
      %p287 = scmp.eq.s32.totalorder %s34, 1
      %p288 = por %p286, %p287
      %p290 = scmp.ne.s32.totalorder %s275, %s289
      %p291 = scmp.eq.s32.totalorder %s34, 0
      %p292 = por %p290, %p291
      %s294 = sadd.s32 %s293, 1
      %p297 = scmp.eq.s32.totalorder %s28, 1
      %p298 = scmp.ne.s32.totalorder %s293, %s295
      %p299 = scmp.eq.s32.totalorder %s28, 0
      %p300 = por %p298, %p299
      %p301 = scmp.ne.s32.totalorder %s293, %s295
      %p302 = scmp.eq.s32.totalorder %s33, 1
      %p303 = por %p301, %p302
      %p304 = scmp.ne.s32.totalorder %s295, %s296
      %p305 = scmp.eq.s32.totalorder %s33, 0
      %p306 = por %p304, %p305
      %p307 = scmp.ne.s32.totalorder %s295, %s296
      %p308 = scmp.eq.s32.totalorder %s34, 1
      %p309 = por %p307, %p308
      %p311 = scmp.ne.s32.totalorder %s296, %s310
      %p312 = scmp.eq.s32.totalorder %s34, 0
      %p313 = por %p311, %p312
      %s315 = sadd.s32 %s314, 1
      %p318 = scmp.eq.s32.totalorder %s28, 1
      %p319 = scmp.ne.s32.totalorder %s314, %s316
      %p320 = scmp.eq.s32.totalorder %s28, 0
      %p321 = por %p319, %p320
      %p322 = scmp.ne.s32.totalorder %s314, %s316
      %p323 = scmp.eq.s32.totalorder %s33, 1
      %p324 = por %p322, %p323
      %p325 = scmp.ne.s32.totalorder %s316, %s317
      %p326 = scmp.eq.s32.totalorder %s33, 0
      %p327 = por %p325, %p326
      %p328 = scmp.ne.s32.totalorder %s316, %s317
      %p329 = scmp.eq.s32.totalorder %s34, 1
      %p330 = por %p328, %p329
      %p332 = scmp.ne.s32.totalorder %s317, %s331
      %p333 = scmp.eq.s32.totalorder %s34, 0
      %p334 = por %p332, %p333
      %s336 = sadd.s32 %s335, 1
      %p339 = scmp.eq.s32.totalorder %s28, 1
      %p340 = scmp.ne.s32.totalorder %s335, %s337
      %p341 = scmp.eq.s32.totalorder %s28, 0
      %p342 = por %p340, %p341
      %p343 = scmp.ne.s32.totalorder %s335, %s337
      %p344 = scmp.eq.s32.totalorder %s33, 1
      %p345 = por %p343, %p344
      %p346 = scmp.ne.s32.totalorder %s337, %s338
      %p347 = scmp.eq.s32.totalorder %s33, 0
      %p348 = por %p346, %p347
      %p349 = scmp.ne.s32.totalorder %s337, %s338
      %p350 = scmp.eq.s32.totalorder %s34, 1
      %p351 = por %p349, %p350
      %p353 = scmp.ne.s32.totalorder %s338, %s352
      %p354 = scmp.eq.s32.totalorder %s34, 0
      %p355 = por %p353, %p354
      %s357 = sadd.s32 %s356, 1
      %p360 = scmp.eq.s32.totalorder %s28, 1
      %p361 = scmp.ne.s32.totalorder %s356, %s358
      %p362 = scmp.eq.s32.totalorder %s28, 0
      %p363 = por %p361, %p362
      %p364 = scmp.ne.s32.totalorder %s356, %s358
      %p365 = scmp.eq.s32.totalorder %s33, 1
      %p366 = por %p364, %p365
      %p367 = scmp.ne.s32.totalorder %s358, %s359
      %p368 = scmp.eq.s32.totalorder %s33, 0
      %p369 = por %p367, %p368
      %p370 = scmp.ne.s32.totalorder %s358, %s359
      %p371 = scmp.eq.s32.totalorder %s34, 1
      %p372 = por %p370, %p371
      %p374 = scmp.ne.s32.totalorder %s359, %s373
      %p375 = scmp.eq.s32.totalorder %s34, 0
      %p376 = por %p374, %p375
      %s378 = sadd.s32 %s377, 1
      %p381 = scmp.eq.s32.totalorder %s28, 1
      %p382 = scmp.ne.s32.totalorder %s377, %s379
      %p383 = scmp.eq.s32.totalorder %s28, 0
      %p384 = por %p382, %p383
      %p385 = scmp.ne.s32.totalorder %s377, %s379
      %p386 = scmp.eq.s32.totalorder %s33, 1
      %p387 = por %p385, %p386
      %p388 = scmp.ne.s32.totalorder %s379, %s380
      %p389 = scmp.eq.s32.totalorder %s33, 0
      %p390 = por %p388, %p389
      %p391 = scmp.ne.s32.totalorder %s379, %s380
      %p392 = scmp.eq.s32.totalorder %s34, 1
      %p393 = por %p391, %p392
      %p395 = scmp.ne.s32.totalorder %s380, %s394
      %p396 = scmp.eq.s32.totalorder %s34, 0
      %p397 = por %p395, %p396
      %s399 = sadd.s32 %s398, 1
      %p402 = scmp.eq.s32.totalorder %s28, 1
      %p403 = scmp.ne.s32.totalorder %s398, %s400
      %p404 = scmp.eq.s32.totalorder %s28, 0
      %p405 = por %p403, %p404
      %p406 = scmp.ne.s32.totalorder %s398, %s400
      %p407 = scmp.eq.s32.totalorder %s33, 1
      %p408 = por %p406, %p407
      %p409 = scmp.ne.s32.totalorder %s400, %s401
      %p410 = scmp.eq.s32.totalorder %s33, 0
      %p411 = por %p409, %p410
      %p412 = scmp.ne.s32.totalorder %s400, %s401
      %p413 = scmp.eq.s32.totalorder %s34, 1
      %p414 = por %p412, %p413
      %p416 = scmp.ne.s32.totalorder %s401, %s415
      %p417 = scmp.eq.s32.totalorder %s34, 0
      %p418 = por %p416, %p417
      %s420 = sadd.s32 %s419, 1
      %p423 = scmp.eq.s32.totalorder %s28, 1
      %p424 = scmp.ne.s32.totalorder %s419, %s421
      %p425 = scmp.eq.s32.totalorder %s28, 0
      %p426 = por %p424, %p425
      %p427 = scmp.ne.s32.totalorder %s419, %s421
      %p428 = scmp.eq.s32.totalorder %s33, 1
      %p429 = por %p427, %p428
      %p430 = scmp.ne.s32.totalorder %s421, %s422
      %p431 = scmp.eq.s32.totalorder %s33, 0
      %p432 = por %p430, %p431
      %p433 = scmp.ne.s32.totalorder %s421, %s422
      %p434 = scmp.eq.s32.totalorder %s34, 1
      %p435 = por %p433, %p434
      %p437 = scmp.ne.s32.totalorder %s422, %s436
      %p438 = scmp.eq.s32.totalorder %s34, 0
      %p439 = por %p437, %p438
      %s440 = ssub.s32 %s28, %s35
      %p441 = scmp.eq.s32.totalorder %s440, 0
      %s443 = sadd.s32 %s442, 1
      %s444 = scalar_select %p441, %s442, %s443
      %p447 = pneg %p441
      %p448 = scmp.eq.s32.totalorder %s28, 1
      %p449 = por %p447, %p448
      %p450 = scmp.ne.s32.totalorder %s442, %s445
      %p451 = scmp.eq.s32.totalorder %s28, 0
      %p452 = por %p450, %p451
      %p453 = scmp.ne.s32.totalorder %s442, %s445
      %p454 = scmp.eq.s32.totalorder %s33, 1
      %p455 = por %p453, %p454
      %p456 = scmp.ne.s32.totalorder %s445, %s446
      %p457 = scmp.eq.s32.totalorder %s33, 0
      %p458 = por %p456, %p457
      %p459 = scmp.ne.s32.totalorder %s445, %s446
      %p460 = scmp.eq.s32.totalorder %s34, 1
      %p461 = por %p459, %p460
      %p463 = scmp.ne.s32.totalorder %s446, %s462
      %p464 = scmp.eq.s32.totalorder %s34, 0
      %p465 = por %p463, %p464
      %p466 = scmp.le.s32.totalorder 1, %s28
      %p467 = scmp.lt.s32.totalorder %s28, 3
      %p468 = pnand %p466, %p467
      %p469 = pneg %p468
      // Predicated region
      $region9: #{cnn_forward.1} parent=5 // pred_check
        _
      $region10: #{cnn_forward.1} parent=5 // pred_check_branch
        %471 = sbr.rel (%p468) target = $region12
      $region11: #{cnn_forward.1} parent=5 // pred_region
        %s472 = ssub.s32 %s28, 1
        // Predicated region
        $region13: #{cnn_forward.1} parent=11 // pred_check
          %p473 = pneg %p75
        $region14: #{cnn_forward.1} parent=11 // pred_check_branch
          %475 = sbr.rel (%p473) target = $region16
        $region15: #{cnn_forward.1} parent=11 // pred_region
          _
        $region16: #{cnn_forward.1} parent=11 // pred_fallthru
          _
        // Predicated region
        $region17: #{cnn_forward.1} parent=11 // pred_check
          %p476 = pneg %p96
        $region18: #{cnn_forward.1} parent=11 // pred_check_branch
          %478 = sbr.rel (%p476) target = $region20
        $region19: #{cnn_forward.1} parent=11 // pred_region
          _
        $region20: #{cnn_forward.1} parent=11 // pred_fallthru
          _
        // Predicated region
        $region21: #{cnn_forward.1} parent=11 // pred_check
          %p479 = pneg %p117
        $region22: #{cnn_forward.1} parent=11 // pred_check_branch
          %481 = sbr.rel (%p479) target = $region24
        $region23: #{cnn_forward.1} parent=11 // pred_region
          _
        $region24: #{cnn_forward.1} parent=11 // pred_fallthru
          _
        // Predicated region
        $region25: #{cnn_forward.1} parent=11 // pred_check
          %p482 = pneg %p138
        $region26: #{cnn_forward.1} parent=11 // pred_check_branch
          %484 = sbr.rel (%p482) target = $region28
        $region27: #{cnn_forward.1} parent=11 // pred_region
          _
        $region28: #{cnn_forward.1} parent=11 // pred_fallthru
          _
        // Predicated region
        $region29: #{cnn_forward.1} parent=11 // pred_check
          %p485 = pneg %p159
        $region30: #{cnn_forward.1} parent=11 // pred_check_branch
          %487 = sbr.rel (%p485) target = $region32
        $region31: #{cnn_forward.1} parent=11 // pred_region
          _
        $region32: #{cnn_forward.1} parent=11 // pred_fallthru
          _
        // Predicated region
        $region33: #{cnn_forward.1} parent=11 // pred_check
          %p488 = pneg %p180
        $region34: #{cnn_forward.1} parent=11 // pred_check_branch
          %490 = sbr.rel (%p488) target = $region36
        $region35: #{cnn_forward.1} parent=11 // pred_region
          _
        $region36: #{cnn_forward.1} parent=11 // pred_fallthru
          _
        // Predicated region
        $region37: #{cnn_forward.1} parent=11 // pred_check
          %p491 = pneg %p201
        $region38: #{cnn_forward.1} parent=11 // pred_check_branch
          %493 = sbr.rel (%p491) target = $region40
        $region39: #{cnn_forward.1} parent=11 // pred_region
          _
        $region40: #{cnn_forward.1} parent=11 // pred_fallthru
          _
        // Predicated region
        $region41: #{cnn_forward.1} parent=11 // pred_check
          %p494 = pneg %p222
        $region42: #{cnn_forward.1} parent=11 // pred_check_branch
          %496 = sbr.rel (%p494) target = $region44
        $region43: #{cnn_forward.1} parent=11 // pred_region
          _
        $region44: #{cnn_forward.1} parent=11 // pred_fallthru
          _
        // Predicated region
        $region45: #{cnn_forward.1} parent=11 // pred_check
          %p497 = pneg %p243
        $region46: #{cnn_forward.1} parent=11 // pred_check_branch
          %499 = sbr.rel (%p497) target = $region48
        $region47: #{cnn_forward.1} parent=11 // pred_region
          _
        $region48: #{cnn_forward.1} parent=11 // pred_fallthru
          _
        // Predicated region
        $region49: #{cnn_forward.1} parent=11 // pred_check
          %p500 = pneg %p264
        $region50: #{cnn_forward.1} parent=11 // pred_check_branch
          %502 = sbr.rel (%p500) target = $region52
        $region51: #{cnn_forward.1} parent=11 // pred_region
          _
        $region52: #{cnn_forward.1} parent=11 // pred_fallthru
          _
        // Predicated region
        $region53: #{cnn_forward.1} parent=11 // pred_check
          %p503 = pneg %p285
        $region54: #{cnn_forward.1} parent=11 // pred_check_branch
          %505 = sbr.rel (%p503) target = $region56
        $region55: #{cnn_forward.1} parent=11 // pred_region
          _
        $region56: #{cnn_forward.1} parent=11 // pred_fallthru
          _
        // Predicated region
        $region57: #{cnn_forward.1} parent=11 // pred_check
          %p506 = pneg %p306
        $region58: #{cnn_forward.1} parent=11 // pred_check_branch
          %508 = sbr.rel (%p506) target = $region60
        $region59: #{cnn_forward.1} parent=11 // pred_region
          _
        $region60: #{cnn_forward.1} parent=11 // pred_fallthru
          _
        // Predicated region
        $region61: #{cnn_forward.1} parent=11 // pred_check
          %p509 = pneg %p327
        $region62: #{cnn_forward.1} parent=11 // pred_check_branch
          %511 = sbr.rel (%p509) target = $region64
        $region63: #{cnn_forward.1} parent=11 // pred_region
          _
        $region64: #{cnn_forward.1} parent=11 // pred_fallthru
          _
        // Predicated region
        $region65: #{cnn_forward.1} parent=11 // pred_check
          %p512 = pneg %p348
        $region66: #{cnn_forward.1} parent=11 // pred_check_branch
          %514 = sbr.rel (%p512) target = $region68
        $region67: #{cnn_forward.1} parent=11 // pred_region
          _
        $region68: #{cnn_forward.1} parent=11 // pred_fallthru
          _
        // Predicated region
        $region69: #{cnn_forward.1} parent=11 // pred_check
          %p515 = pneg %p369
        $region70: #{cnn_forward.1} parent=11 // pred_check_branch
          %517 = sbr.rel (%p515) target = $region72
        $region71: #{cnn_forward.1} parent=11 // pred_region
          _
        $region72: #{cnn_forward.1} parent=11 // pred_fallthru
          _
        // Predicated region
        $region73: #{cnn_forward.1} parent=11 // pred_check
          %p518 = pneg %p390
        $region74: #{cnn_forward.1} parent=11 // pred_check_branch
          %520 = sbr.rel (%p518) target = $region76
        $region75: #{cnn_forward.1} parent=11 // pred_region
          _
        $region76: #{cnn_forward.1} parent=11 // pred_fallthru
          _
        // Predicated region
        $region77: #{cnn_forward.1} parent=11 // pred_check
          %p521 = pneg %p411
        $region78: #{cnn_forward.1} parent=11 // pred_check_branch
          %523 = sbr.rel (%p521) target = $region80
        $region79: #{cnn_forward.1} parent=11 // pred_region
          _
        $region80: #{cnn_forward.1} parent=11 // pred_fallthru
          _
        // Predicated region
        $region81: #{cnn_forward.1} parent=11 // pred_check
          %p524 = pneg %p432
        $region82: #{cnn_forward.1} parent=11 // pred_check_branch
          %526 = sbr.rel (%p524) target = $region84
        $region83: #{cnn_forward.1} parent=11 // pred_region
          _
        $region84: #{cnn_forward.1} parent=11 // pred_fallthru
          _
      $region12: #{cnn_forward.1} parent=5 // pred_fallthru
        _
      %p527 = scmp.lt.s32.totalorder %s28, 2
      // Predicated region
      $region85: #{cnn_forward.1} parent=5 // pred_check
        %p528 = pneg %p527
      $region86: #{cnn_forward.1} parent=5 // pred_check_branch
        %530 = sbr.rel (%p528) target = $region88
      $region87: #{cnn_forward.1} parent=5 // pred_region
        // Predicated region
        $region89: #{cnn_forward.1} parent=87 // pred_check
          %p531 = pneg %p48
        $region90: #{cnn_forward.1} parent=87 // pred_check_branch
          %533 = sbr.rel (%p531) target = $region92
        $region91: #{cnn_forward.1} parent=87 // pred_region
          %s534 = smul.u32 32, %s28
          %p535 = scmp.lt.s32.totalorder %s534, 63
          %s536 = scalar_select %p535, %s534, 63
          %s537 = smul.addr %s536, 8
          %s538 = scalar_lea.vmem %s0, %s537
          %s539 = smul.u32 32, %s28
        $region92: #{cnn_forward.1} parent=87 // pred_fallthru
          _
      $region88: #{cnn_forward.1} parent=5 // pred_fallthru
        _
      %p540 = scmp.le.s32.totalorder 1, %s28
      %p541 = scmp.lt.s32.totalorder %s28, 3
      %p542 = pnand %p540, %p541
      %p543 = pneg %p542
      // Predicated region
      $region93: #{cnn_forward.1} parent=5 // pred_check
        _
      $region94: #{cnn_forward.1} parent=5 // pred_check_branch
        %545 = sbr.rel (%p542) target = $region96
      $region95: #{cnn_forward.1} parent=5 // pred_region
        %s546 = ssub.s32 %s28, 1
        %s547 = smul.u32 32, %s33
        %p548 = scmp.lt.s32.totalorder %s547, 63
        %s549 = scalar_select %p548, %s547, 63
        %s550 = smul.addr %s549, 8
        %s551 = scalar_lea.vmem %s0, %s550
        %p552 = pneg %p54
        %p553 = pneg %p51
        %p554 = pneg %p75
        %p555 = pneg %p72
        %p556 = pneg %p96
        %p557 = pneg %p93
        %p558 = pneg %p117
        %p559 = pneg %p114
        %p560 = pneg %p138
        %p561 = pneg %p135
        %p562 = pneg %p159
        %p563 = pneg %p156
        %p564 = pneg %p180
        %p565 = pneg %p177
        %p566 = pneg %p201
        %p567 = pneg %p198
        %p568 = pneg %p222
        %p569 = pneg %p219
        %p570 = pneg %p243
        %p571 = pneg %p240
        %p572 = pneg %p264
        %p573 = pneg %p261
        %p574 = pneg %p285
        %p575 = pneg %p282
        %p576 = pneg %p306
        %p577 = pneg %p303
        %p578 = pneg %p327
        %p579 = pneg %p324
        %p580 = pneg %p348
        %p581 = pneg %p345
        %p582 = pneg %p369
        %p583 = pneg %p366
        %p584 = pneg %p390
        %p585 = pneg %p387
        %p586 = pneg %p411
        %p587 = pneg %p408
        %p588 = pneg %p432
        %p589 = pneg %p429
        %p590 = pneg %p458
        %p591 = pneg %p455
        %s592 = sand.u32 %s445, 1
        %s593 = scalar_lea.sflag [#allocation3], %s592
        %s594 = sand.u32 %s445, 1
        %s595 = smul.addr %s594, 8
        %s596 = scalar_lea.vmem [#allocation2], %s595
        %s597 = smul.u32 32, %s33
        %p598 = scmp.lt.s32.totalorder %s597, 63
        %s599 = scalar_select %p598, %s597, 63
        %s600 = smul.addr %s599, 8
        %s601 = scalar_lea.vmem %s0, %s600
        %s602 = smul.u32 32, %s33
        %v604 = vld [vmem:[%s601] sm:$0xff]
        %v605 = vld [vmem:[%s601 + $0x8] sm:$0xff]
        %v606 = vld [vmem:[%s601 + $0x10] sm:$0xff]
        %v607 = vld [vmem:[%s601 + $0x18] sm:$0xff]
        %v608 = vld [vmem:[%s601 + $0x20] sm:$0xff]
        %v609 = vld [vmem:[%s601 + $0x28] sm:$0xff]
        %v610 = vld [vmem:[%s601 + $0x30] sm:$0xff]
        %v611 = vld [vmem:[%s601 + $0x38] sm:$0xff]
        %v612 = vld [vmem:[%s601 + $0x40] sm:$0xff]
        %v613 = vld [vmem:[%s601 + $0x48] sm:$0xff]
        %v614 = vld [vmem:[%s601 + $0x50] sm:$0xff]
        %v615 = vld [vmem:[%s601 + $0x58] sm:$0xff]
        %v616 = vld [vmem:[%s601 + $0x60] sm:$0xff]
        %v617 = vld [vmem:[%s601 + $0x68] sm:$0xff]
        %v618 = vld [vmem:[%s601 + $0x70] sm:$0xff]
        %v619 = vld [vmem:[%s601 + $0x78] sm:$0xff]
        %v620 = vld [vmem:[%s601 + $0x80] sm:$0xff]
        %v621 = vld [vmem:[%s601 + $0x88] sm:$0xff]
        %v622 = vld [vmem:[%s601 + $0x90] sm:$0xff]
        %v623 = vld [vmem:[%s601 + $0x98] sm:$0xff]
        %v624 = vld [vmem:[%s601 + $0xa0] sm:$0xff]
        %v625 = vld [vmem:[%s601 + $0xa8] sm:$0xff]
        %v626 = vld [vmem:[%s601 + $0xb0] sm:$0xff]
        %v627 = vld [vmem:[%s601 + $0xb8] sm:$0xff]
        %v628 = vld [vmem:[%s601 + $0xc0] sm:$0xff]
        %v629 = vld [vmem:[%s601 + $0xc8] sm:$0xff]
        %v630 = vld [vmem:[%s601 + $0xd0] sm:$0xff]
        %v631 = vld [vmem:[%s601 + $0xd8] sm:$0xff]
        %v632 = vld [vmem:[%s601 + $0xe0] sm:$0xff]
        %v633 = vld [vmem:[%s601 + $0xe8] sm:$0xff]
        %v634 = vld [vmem:[%s601 + $0xf0] sm:$0xff]
        %v635 = vld [vmem:[%s601 + $0xf8] sm:$0xff]
        %v636 = vpack.c.bf16 %v605, %v604
        %v637 = vpack.c.bf16 %v607, %v606
        %v638 = vpack.c.bf16 %v609, %v608
        %v639 = vpack.c.bf16 %v611, %v610
        %v640 = vpack.c.bf16 %v613, %v612
        %v641 = vpack.c.bf16 %v615, %v614
        %v642 = vpack.c.bf16 %v617, %v616
        %v643 = vpack.c.bf16 %v619, %v618
        %v644 = vpack.c.bf16 %v621, %v620
        %v645 = vpack.c.bf16 %v623, %v622
        %v646 = vpack.c.bf16 %v625, %v624
        %v647 = vpack.c.bf16 %v627, %v626
        %v648 = vpack.c.bf16 %v629, %v628
        %v649 = vpack.c.bf16 %v631, %v630
        %v650 = vpack.c.bf16 %v633, %v632
        %v651 = vpack.c.bf16 %v635, %v634
        %v652 = vld [vmem:[%s1] sm:$0xff]
        %v653 = vld [vmem:[%s1 + $0x8] sm:$0xff]
        %v654 = vld [vmem:[%s1 + $0x10] sm:$0xff]
        %v655 = vld [vmem:[%s1 + $0x18] sm:$0xff]
        %v656 = vrot.slane %v604, 1
        %v657 = vrot.slane %v605, 1
        %v658 = vrot.slane %v606, 1
        %v659 = vrot.slane %v607, 1
        %v660 = vrot.slane %v608, 1
        %v661 = vrot.slane %v609, 1
        %v662 = vrot.slane %v610, 1
        %v663 = vrot.slane %v611, 1
        %v664 = vrot.slane %v612, 1
        %v665 = vrot.slane %v613, 1
        %v666 = vrot.slane %v614, 1
        %v667 = vrot.slane %v615, 1
        %v668 = vrot.slane %v616, 1
        %v669 = vrot.slane %v617, 1
        %v670 = vrot.slane %v618, 1
        %v671 = vrot.slane %v619, 1
        %v672 = vrot.slane %v620, 1
        %v673 = vrot.slane %v621, 1
        %v674 = vrot.slane %v622, 1
        %v675 = vrot.slane %v623, 1
        %v676 = vrot.slane %v624, 1
        %v677 = vrot.slane %v625, 1
        %v678 = vrot.slane %v626, 1
        %v679 = vrot.slane %v627, 1
        %v680 = vrot.slane %v628, 1
        %v681 = vrot.slane %v629, 1
        %v682 = vrot.slane %v630, 1
        %v683 = vrot.slane %v631, 1
        %v684 = vrot.slane %v632, 1
        %v685 = vrot.slane %v633, 1
        %v686 = vrot.slane %v634, 1
        %v687 = vrot.slane %v635, 1
        %v688 = vlaneseq
        %v689 = vshrl.u32 %v688, 7
        %vm690 = vcmp.lt.s32.totalorder %v689, 7
        %v691 = vsel %vm690, %v686, %v687
        %v692 = vsel %vm690, %v685, %v686
        %v693 = vsel %vm690, %v684, %v685
        %v694 = vsel %vm690, %v683, %v684
        %v695 = vsel %vm690, %v682, %v683
        %v696 = vsel %vm690, %v681, %v682
        %v697 = vsel %vm690, %v680, %v681
        %v698 = vsel %vm690, %v679, %v680
        %v699 = vsel %vm690, %v678, %v679
        %v700 = vsel %vm690, %v677, %v678
        %v701 = vsel %vm690, %v676, %v677
        %v702 = vsel %vm690, %v675, %v676
        %v703 = vsel %vm690, %v674, %v675
        %v704 = vsel %vm690, %v673, %v674
        %v705 = vsel %vm690, %v672, %v673
        %v706 = vsel %vm690, %v671, %v672
        %v707 = vsel %vm690, %v670, %v671
        %v708 = vsel %vm690, %v669, %v670
        %v709 = vsel %vm690, %v668, %v669
        %v710 = vsel %vm690, %v667, %v668
        %v711 = vsel %vm690, %v666, %v667
        %v712 = vsel %vm690, %v665, %v666
        %v713 = vsel %vm690, %v664, %v665
        %v714 = vsel %vm690, %v663, %v664
        %v715 = vsel %vm690, %v662, %v663
        %v716 = vsel %vm690, %v661, %v662
        %v717 = vsel %vm690, %v660, %v661
        %v718 = vsel %vm690, %v659, %v660
        %v719 = vsel %vm690, %v658, %v659
        %v720 = vsel %vm690, %v657, %v658
        %v721 = vsel %vm690, %v656, %v657
        %v722 = vsel %vm690, %v687, %v656
        %v723 = vpack.c.bf16 %v720, %v721
        %v724 = vpack.c.bf16 %v718, %v719
        %v725 = vpack.c.bf16 %v716, %v717
        %v726 = vpack.c.bf16 %v714, %v715
        %v727 = vpack.c.bf16 %v712, %v713
        %v728 = vpack.c.bf16 %v710, %v711
        %v729 = vpack.c.bf16 %v708, %v709
        %v730 = vpack.c.bf16 %v706, %v707
        %v731 = vpack.c.bf16 %v704, %v705
        %v732 = vpack.c.bf16 %v702, %v703
        %v733 = vpack.c.bf16 %v700, %v701
        %v734 = vpack.c.bf16 %v698, %v699
        %v735 = vpack.c.bf16 %v696, %v697
        %v736 = vpack.c.bf16 %v694, %v695
        %v737 = vpack.c.bf16 %v692, %v693
        %v738 = vpack.c.bf16 %v722, %v691
        %s739 = scalar_lea.vmem %s1, 32
        %v740 = vld [vmem:[%s739] sm:$0xff]
        %v741 = vld [vmem:[%s739 + $0x8] sm:$0xff]
        %v742 = vld [vmem:[%s739 + $0x10] sm:$0xff]
        %v743 = vld [vmem:[%s739 + $0x18] sm:$0xff]
        %v748 = vunpack.c.l.b16 %v740
        %v749 = vunpack.c.h.b16 %v740
        %v750 = vunpack.c.l.b16 %v741
        %v751 = vunpack.c.h.b16 %v741
        %v752 = vunpack.c.l.b16 %v742
        %v753 = vunpack.c.h.b16 %v742
        %v754 = vunpack.c.l.b16 %v743
        %v755 = vunpack.c.h.b16 %v743
        %v756 = vpack.c.b16 %v750, %v748
        %v757 = vpack.c.b16 %v751, %v749
        %v758 = vpack.c.b16 %v754, %v752
        %v759 = vpack.c.b16 %v755, %v753
        %vm764 = vcmask 261120
        %v766 = vsel %vm764, %v723, 0
        %v769 = vsel %vm764, %v724, 0
        %v772 = vsel %vm764, %v725, 0
        %v775 = vsel %vm764, %v726, 0
        %v778 = vsel %vm764, %v727, 0
        %v781 = vsel %vm764, %v728, 0
        %v784 = vsel %vm764, %v729, 0
        %v787 = vsel %vm764, %v730, 0
        %v790 = vsel %vm764, %v731, 0
        %v793 = vsel %vm764, %v732, 0
        %v796 = vsel %vm764, %v733, 0
        %v799 = vsel %vm764, %v734, 0
        %v802 = vsel %vm764, %v735, 0
        %v805 = vsel %vm764, %v736, 0
        %v808 = vsel %vm764, %v737, 0
        %v811 = vsel %vm764, %v738, 0
        %813 = vmatprep.subr.bf16.mxu0 %v757
        %814 = vmatpush1.bf16.msra.mxu0 %v756
        %815 = vmatprep.subr.bf16.mxu0 %v759
        %816 = vmatpush1.bf16.msra.mxu0 %v758
        %817 = vmatprep.subr.bf16.mxu0 0
        %818 = vmatpush1.bf16.msra.mxu0 0
        %819 = vmatprep.subr.bf16.mxu0 0
        %820 = vmatpush1.bf16.msra.mxu0 0
        %821 = vmatprep.subr.bf16.mxu0 0
        %822 = vmatpush1.bf16.msra.mxu0 0
        %823 = vmatprep.subr.bf16.mxu0 0
        %824 = vmatpush1.bf16.msra.mxu0 0
        %825 = vmatprep.subr.bf16.mxu0 0
        %826 = vmatpush1.bf16.msra.mxu0 0
        %827 = vmatprep.subr.bf16.mxu0 0
        %828 = vmatpush1.bf16.msra.mxu0 0
        %829 = vmatprep.subr.bf16.mxu0 0
        %830 = vmatpush1.bf16.msra.mxu0 0
        %831 = vmatprep.subr.bf16.mxu0 0
        %832 = vmatpush1.bf16.msra.mxu0 0
        %833 = vmatprep.subr.bf16.mxu0 0
        %834 = vmatpush1.bf16.msra.mxu0 0
        %835 = vmatprep.subr.bf16.mxu0 0
        %836 = vmatpush1.bf16.msra.mxu0 0
        %837 = vmatprep.subr.bf16.mxu0 0
        %838 = vmatpush1.bf16.msra.mxu0 0
        %839 = vmatprep.subr.bf16.mxu0 0
        %840 = vmatpush1.bf16.msra.mxu0 0
        %841 = vmatprep.subr.bf16.mxu0 0
        %842 = vmatpush1.bf16.msra.mxu0 0
        %843 = vmatprep.subr.bf16.mxu0 0
        %844 = vmatpush1.bf16.msra.mxu0 0
        %845 = vmatprep.mubr.bf16.mxu0 0
        %846 = vmatmul.mubr.bf16.gmra.mrb[0].mxu0 %v766
        %v847 = vpop.f32.mrb[0].mxu0
        %v848 = vadd.f32 0.0, %v847
        %v849 = vpop.f32.mrb[0].mxu0
        %v850 = vadd.f32 0.0, %v849
        %v851 = vpop.f32.mrb[0].mxu0
        %v852 = vadd.f32 0.0, %v851
        %v853 = vpop.f32.mrb[0].mxu0
        %v854 = vadd.f32 0.0, %v853
        %855 = vmatprep.mubr.bf16.mxu0 0
        %856 = vmatmul.mubr.bf16.gmra.mrb[0].mxu0 %v769
        %v857 = vpop.f32.mrb[0].mxu0
        %v858 = vadd.f32 0.0, %v857
        %v859 = vpop.f32.mrb[0].mxu0
        %v860 = vadd.f32 0.0, %v859
        %v861 = vpop.f32.mrb[0].mxu0
        %v862 = vadd.f32 0.0, %v861
        %v863 = vpop.f32.mrb[0].mxu0
        %v864 = vadd.f32 0.0, %v863
        %865 = vmatprep.mubr.bf16.mxu0 0
        %866 = vmatmul.mubr.bf16.gmra.mrb[0].mxu0 %v772
        %v867 = vpop.f32.mrb[0].mxu0
        %v868 = vadd.f32 0.0, %v867
        %v869 = vpop.f32.mrb[0].mxu0
        %v870 = vadd.f32 0.0, %v869
        %v871 = vpop.f32.mrb[0].mxu0
        %v872 = vadd.f32 0.0, %v871
        %v873 = vpop.f32.mrb[0].mxu0
        %v874 = vadd.f32 0.0, %v873
        %875 = vmatprep.mubr.bf16.mxu0 0
        %876 = vmatmul.mubr.bf16.gmra.mrb[0].mxu0 %v775
        %v877 = vpop.f32.mrb[0].mxu0
        %v878 = vadd.f32 0.0, %v877
        %v879 = vpop.f32.mrb[0].mxu0
        %v880 = vadd.f32 0.0, %v879
        %v881 = vpop.f32.mrb[0].mxu0
        %v882 = vadd.f32 0.0, %v881
        %v883 = vpop.f32.mrb[0].mxu0
        %v884 = vadd.f32 0.0, %v883
        %885 = vmatprep.mubr.bf16.mxu0 0
        %886 = vmatmul.mubr.bf16.gmra.mrb[0].mxu0 %v778
        %v887 = vpop.f32.mrb[0].mxu0
        %v888 = vadd.f32 0.0, %v887
        %v889 = vpop.f32.mrb[0].mxu0
        %v890 = vadd.f32 0.0, %v889
        %v891 = vpop.f32.mrb[0].mxu0
        %v892 = vadd.f32 0.0, %v891
        %v893 = vpop.f32.mrb[0].mxu0
        %v894 = vadd.f32 0.0, %v893
        %895 = vmatprep.mubr.bf16.mxu0 0
        %896 = vmatmul.mubr.bf16.gmra.mrb[0].mxu0 %v781
        %v897 = vpop.f32.mrb[0].mxu0
        %v898 = vadd.f32 0.0, %v897
        %v899 = vpop.f32.mrb[0].mxu0
        %v900 = vadd.f32 0.0, %v899
        %v901 = vpop.f32.mrb[0].mxu0
        %v902 = vadd.f32 0.0, %v901
        %v903 = vpop.f32.mrb[0].mxu0
        %v904 = vadd.f32 0.0, %v903
        %905 = vmatprep.mubr.bf16.mxu0 0
        %906 = vmatmul.mubr.bf16.gmra.mrb[0].mxu0 %v784
        %v907 = vpop.f32.mrb[0].mxu0
        %v908 = vadd.f32 0.0, %v907
        %v909 = vpop.f32.mrb[0].mxu0
        %v910 = vadd.f32 0.0, %v909
        %v911 = vpop.f32.mrb[0].mxu0
        %v912 = vadd.f32 0.0, %v911
        %v913 = vpop.f32.mrb[0].mxu0
        %v914 = vadd.f32 0.0, %v913
        %915 = vmatprep.mubr.bf16.mxu0 0
        %916 = vmatmul.mubr.bf16.gmra.mrb[0].mxu0 %v787
        %v917 = vpop.f32.mrb[0].mxu0
        %v918 = vadd.f32 0.0, %v917
        %v919 = vpop.f32.mrb[0].mxu0
        %v920 = vadd.f32 0.0, %v919
        %v921 = vpop.f32.mrb[0].mxu0
        %v922 = vadd.f32 0.0, %v921
        %v923 = vpop.f32.mrb[0].mxu0
        %v924 = vadd.f32 0.0, %v923
        %925 = vmatprep.mubr.bf16.mxu0 0
        %926 = vmatmul.mubr.bf16.gmra.mrb[0].mxu0 %v790
        %v927 = vpop.f32.mrb[0].mxu0
        %v928 = vadd.f32 0.0, %v927
        %v929 = vpop.f32.mrb[0].mxu0
        %v930 = vadd.f32 0.0, %v929
        %v931 = vpop.f32.mrb[0].mxu0
        %v932 = vadd.f32 0.0, %v931
        %v933 = vpop.f32.mrb[0].mxu0
        %v934 = vadd.f32 0.0, %v933
        %935 = vmatprep.mubr.bf16.mxu0 0
        %936 = vmatmul.mubr.bf16.gmra.mrb[0].mxu0 %v793
        %v937 = vpop.f32.mrb[0].mxu0
        %v938 = vadd.f32 0.0, %v937
        %v939 = vpop.f32.mrb[0].mxu0
        %v940 = vadd.f32 0.0, %v939
        %v941 = vpop.f32.mrb[0].mxu0
        %v942 = vadd.f32 0.0, %v941
        %v943 = vpop.f32.mrb[0].mxu0
        %v944 = vadd.f32 0.0, %v943
        %945 = vmatprep.mubr.bf16.mxu0 0
        %946 = vmatmul.mubr.bf16.gmra.mrb[0].mxu0 %v796
        %v947 = vpop.f32.mrb[0].mxu0
        %v948 = vadd.f32 0.0, %v947
        %v949 = vpop.f32.mrb[0].mxu0
        %v950 = vadd.f32 0.0, %v949
        %v951 = vpop.f32.mrb[0].mxu0
        %v952 = vadd.f32 0.0, %v951
        %v953 = vpop.f32.mrb[0].mxu0
        %v954 = vadd.f32 0.0, %v953
        %955 = vmatprep.mubr.bf16.mxu0 0
        %956 = vmatmul.mubr.bf16.gmra.mrb[0].mxu0 %v799
        %v957 = vpop.f32.mrb[0].mxu0
        %v958 = vadd.f32 0.0, %v957
        %v959 = vpop.f32.mrb[0].mxu0
        %v960 = vadd.f32 0.0, %v959
        %v961 = vpop.f32.mrb[0].mxu0
        %v962 = vadd.f32 0.0, %v961
        %v963 = vpop.f32.mrb[0].mxu0
        %v964 = vadd.f32 0.0, %v963
        %965 = vmatprep.mubr.bf16.mxu0 0
        %966 = vmatmul.mubr.bf16.gmra.mrb[0].mxu0 %v802
        %v967 = vpop.f32.mrb[0].mxu0
        %v968 = vadd.f32 0.0, %v967
        %v969 = vpop.f32.mrb[0].mxu0
        %v970 = vadd.f32 0.0, %v969
        %v971 = vpop.f32.mrb[0].mxu0
        %v972 = vadd.f32 0.0, %v971
        %v973 = vpop.f32.mrb[0].mxu0
        %v974 = vadd.f32 0.0, %v973
        %975 = vmatprep.mubr.bf16.mxu0 0
        %976 = vmatmul.mubr.bf16.gmra.mrb[0].mxu0 %v805
        %v977 = vpop.f32.mrb[0].mxu0
        %v978 = vadd.f32 0.0, %v977
        %v979 = vpop.f32.mrb[0].mxu0
        %v980 = vadd.f32 0.0, %v979
        %v981 = vpop.f32.mrb[0].mxu0
        %v982 = vadd.f32 0.0, %v981
        %v983 = vpop.f32.mrb[0].mxu0
        %v984 = vadd.f32 0.0, %v983
        %985 = vmatprep.mubr.bf16.mxu0 0
        %986 = vmatmul.mubr.bf16.gmra.mrb[0].mxu0 %v808
        %v987 = vpop.f32.mrb[0].mxu0
        %v988 = vadd.f32 0.0, %v987
        %v989 = vpop.f32.mrb[0].mxu0
        %v990 = vadd.f32 0.0, %v989
        %v991 = vpop.f32.mrb[0].mxu0
        %v992 = vadd.f32 0.0, %v991
        %v993 = vpop.f32.mrb[0].mxu0
        %v994 = vadd.f32 0.0, %v993
        %995 = vmatprep.mubr.bf16.mxu0 0
        %996 = vmatmul.mubr.bf16.gmra.mrb[0].mxu0 %v811
        %v997 = vpop.f32.mrb[0].mxu0
        %v998 = vadd.f32 0.0, %v997
        %v999 = vpop.f32.mrb[0].mxu0
        %v1000 = vadd.f32 0.0, %v999
        %v1001 = vpop.f32.mrb[0].mxu0
        %v1002 = vadd.f32 0.0, %v1001
        %v1003 = vpop.f32.mrb[0].mxu0
        %v1004 = vadd.f32 0.0, %v1003
        %1005 = vdwg.mxu0
        %v1010 = vunpack.c.l.b16 %v652
        %v1011 = vunpack.c.h.b16 %v652
        %v1012 = vunpack.c.l.b16 %v653
        %v1013 = vunpack.c.h.b16 %v653
        %v1014 = vunpack.c.l.b16 %v654
        %v1015 = vunpack.c.h.b16 %v654
        %v1016 = vunpack.c.l.b16 %v655
        %v1017 = vunpack.c.h.b16 %v655
        %v1018 = vpack.c.b16 %v1012, %v1010
        %v1019 = vpack.c.b16 %v1013, %v1011
        %v1020 = vpack.c.b16 %v1016, %v1014
        %v1021 = vpack.c.b16 %v1017, %v1015
        %v1027 = vsel %vm764, %v636, 0
        %v1030 = vsel %vm764, %v637, 0
        %v1033 = vsel %vm764, %v638, 0
        %v1036 = vsel %vm764, %v639, 0
        %v1039 = vsel %vm764, %v640, 0
        %v1042 = vsel %vm764, %v641, 0
        %v1045 = vsel %vm764, %v642, 0
        %v1048 = vsel %vm764, %v643, 0
        %v1051 = vsel %vm764, %v644, 0
        %v1054 = vsel %vm764, %v645, 0
        %v1057 = vsel %vm764, %v646, 0
        %v1060 = vsel %vm764, %v647, 0
        %v1063 = vsel %vm764, %v648, 0
        %v1066 = vsel %vm764, %v649, 0
        %v1069 = vsel %vm764, %v650, 0
        %v1072 = vsel %vm764, %v651, 0
        %1074 = vmatprep.subr.bf16.mxu0 %v1019
        %1075 = vmatpush1.bf16.msra.mxu0 %v1018
        %1076 = vmatprep.subr.bf16.mxu0 %v1021
        %1077 = vmatpush1.bf16.msra.mxu0 %v1020
        %1078 = vmatprep.subr.bf16.mxu0 0
        %1079 = vmatpush1.bf16.msra.mxu0 0
        %1080 = vmatprep.subr.bf16.mxu0 0
        %1081 = vmatpush1.bf16.msra.mxu0 0
        %1082 = vmatprep.subr.bf16.mxu0 0
        %1083 = vmatpush1.bf16.msra.mxu0 0
        %1084 = vmatprep.subr.bf16.mxu0 0
        %1085 = vmatpush1.bf16.msra.mxu0 0
        %1086 = vmatprep.subr.bf16.mxu0 0
        %1087 = vmatpush1.bf16.msra.mxu0 0
        %1088 = vmatprep.subr.bf16.mxu0 0
        %1089 = vmatpush1.bf16.msra.mxu0 0
        %1090 = vmatprep.subr.bf16.mxu0 0
        %1091 = vmatpush1.bf16.msra.mxu0 0
        %1092 = vmatprep.subr.bf16.mxu0 0
        %1093 = vmatpush1.bf16.msra.mxu0 0
        %1094 = vmatprep.subr.bf16.mxu0 0
        %1095 = vmatpush1.bf16.msra.mxu0 0
        %1096 = vmatprep.subr.bf16.mxu0 0
        %1097 = vmatpush1.bf16.msra.mxu0 0
        %1098 = vmatprep.subr.bf16.mxu0 0
        %1099 = vmatpush1.bf16.msra.mxu0 0
        %1100 = vmatprep.subr.bf16.mxu0 0
        %1101 = vmatpush1.bf16.msra.mxu0 0
        %1102 = vmatprep.subr.bf16.mxu0 0
        %1103 = vmatpush1.bf16.msra.mxu0 0
        %1104 = vmatprep.subr.bf16.mxu0 0
        %1105 = vmatpush1.bf16.msra.mxu0 0
        %1106 = vmatprep.mubr.bf16.mxu0 0
        %1107 = vmatmul.mubr.bf16.gmra.mrb[0].mxu0 %v1027
        %v1108 = vpop.f32.mrb[0].mxu0
        %v1109 = vadd.f32 %v848, %v1108
        %v1110 = vpop.f32.mrb[0].mxu0
        %v1111 = vadd.f32 %v850, %v1110
        %v1112 = vpop.f32.mrb[0].mxu0
        %v1113 = vadd.f32 %v852, %v1112
        %v1114 = vpop.f32.mrb[0].mxu0
        %v1115 = vadd.f32 %v854, %v1114
        %1116 = vmatprep.mubr.bf16.mxu0 0
        %1117 = vmatmul.mubr.bf16.gmra.mrb[0].mxu0 %v1030
        %v1118 = vpop.f32.mrb[0].mxu0
        %v1119 = vadd.f32 %v858, %v1118
        %v1120 = vpop.f32.mrb[0].mxu0
        %v1121 = vadd.f32 %v860, %v1120
        %v1122 = vpop.f32.mrb[0].mxu0
        %v1123 = vadd.f32 %v862, %v1122
        %v1124 = vpop.f32.mrb[0].mxu0
        %v1125 = vadd.f32 %v864, %v1124
        %1126 = vmatprep.mubr.bf16.mxu0 0
        %1127 = vmatmul.mubr.bf16.gmra.mrb[0].mxu0 %v1033
        %v1128 = vpop.f32.mrb[0].mxu0
        %v1129 = vadd.f32 %v868, %v1128
        %v1130 = vpop.f32.mrb[0].mxu0
        %v1131 = vadd.f32 %v870, %v1130
        %v1132 = vpop.f32.mrb[0].mxu0
        %v1133 = vadd.f32 %v872, %v1132
        %v1134 = vpop.f32.mrb[0].mxu0
        %v1135 = vadd.f32 %v874, %v1134
        %1136 = vmatprep.mubr.bf16.mxu0 0
        %1137 = vmatmul.mubr.bf16.gmra.mrb[0].mxu0 %v1036
        %v1138 = vpop.f32.mrb[0].mxu0
        %v1139 = vadd.f32 %v878, %v1138
        %v1140 = vpop.f32.mrb[0].mxu0
        %v1141 = vadd.f32 %v880, %v1140
        %v1142 = vpop.f32.mrb[0].mxu0
        %v1143 = vadd.f32 %v882, %v1142
        %v1144 = vpop.f32.mrb[0].mxu0
        %v1145 = vadd.f32 %v884, %v1144
        %1146 = vmatprep.mubr.bf16.mxu0 0
        %1147 = vmatmul.mubr.bf16.gmra.mrb[0].mxu0 %v1039
        %v1148 = vpop.f32.mrb[0].mxu0
        %v1149 = vadd.f32 %v888, %v1148
        %v1150 = vpop.f32.mrb[0].mxu0
        %v1151 = vadd.f32 %v890, %v1150
        %v1152 = vpop.f32.mrb[0].mxu0
        %v1153 = vadd.f32 %v892, %v1152
        %v1154 = vpop.f32.mrb[0].mxu0
        %v1155 = vadd.f32 %v894, %v1154
        %1156 = vmatprep.mubr.bf16.mxu0 0
        %1157 = vmatmul.mubr.bf16.gmra.mrb[0].mxu0 %v1042
        %v1158 = vpop.f32.mrb[0].mxu0
        %v1159 = vadd.f32 %v898, %v1158
        %v1160 = vpop.f32.mrb[0].mxu0
        %v1161 = vadd.f32 %v900, %v1160
        %v1162 = vpop.f32.mrb[0].mxu0
        %v1163 = vadd.f32 %v902, %v1162
        %v1164 = vpop.f32.mrb[0].mxu0
        %v1165 = vadd.f32 %v904, %v1164
        %1166 = vmatprep.mubr.bf16.mxu0 0
        %1167 = vmatmul.mubr.bf16.gmra.mrb[0].mxu0 %v1045
        %v1168 = vpop.f32.mrb[0].mxu0
        %v1169 = vadd.f32 %v908, %v1168
        %v1170 = vpop.f32.mrb[0].mxu0
        %v1171 = vadd.f32 %v910, %v1170
        %v1172 = vpop.f32.mrb[0].mxu0
        %v1173 = vadd.f32 %v912, %v1172
        %v1174 = vpop.f32.mrb[0].mxu0
        %v1175 = vadd.f32 %v914, %v1174
        %1176 = vmatprep.mubr.bf16.mxu0 0
        %1177 = vmatmul.mubr.bf16.gmra.mrb[0].mxu0 %v1048
        %v1178 = vpop.f32.mrb[0].mxu0
        %v1179 = vadd.f32 %v918, %v1178
        %v1180 = vpop.f32.mrb[0].mxu0
        %v1181 = vadd.f32 %v920, %v1180
        %v1182 = vpop.f32.mrb[0].mxu0
        %v1183 = vadd.f32 %v922, %v1182
        %v1184 = vpop.f32.mrb[0].mxu0
        %v1185 = vadd.f32 %v924, %v1184
        %1186 = vmatprep.mubr.bf16.mxu0 0
        %1187 = vmatmul.mubr.bf16.gmra.mrb[0].mxu0 %v1051
        %v1188 = vpop.f32.mrb[0].mxu0
        %v1189 = vadd.f32 %v928, %v1188
        %v1190 = vpop.f32.mrb[0].mxu0
        %v1191 = vadd.f32 %v930, %v1190
        %v1192 = vpop.f32.mrb[0].mxu0
        %v1193 = vadd.f32 %v932, %v1192
        %v1194 = vpop.f32.mrb[0].mxu0
        %v1195 = vadd.f32 %v934, %v1194
        %1196 = vmatprep.mubr.bf16.mxu0 0
        %1197 = vmatmul.mubr.bf16.gmra.mrb[0].mxu0 %v1054
        %v1198 = vpop.f32.mrb[0].mxu0
        %v1199 = vadd.f32 %v938, %v1198
        %v1200 = vpop.f32.mrb[0].mxu0
        %v1201 = vadd.f32 %v940, %v1200
        %v1202 = vpop.f32.mrb[0].mxu0
        %v1203 = vadd.f32 %v942, %v1202
        %v1204 = vpop.f32.mrb[0].mxu0
        %v1205 = vadd.f32 %v944, %v1204
        %1206 = vmatprep.mubr.bf16.mxu0 0
        %1207 = vmatmul.mubr.bf16.gmra.mrb[0].mxu0 %v1057
        %v1208 = vpop.f32.mrb[0].mxu0
        %v1209 = vadd.f32 %v948, %v1208
        %v1210 = vpop.f32.mrb[0].mxu0
        %v1211 = vadd.f32 %v950, %v1210
        %v1212 = vpop.f32.mrb[0].mxu0
        %v1213 = vadd.f32 %v952, %v1212
        %v1214 = vpop.f32.mrb[0].mxu0
        %v1215 = vadd.f32 %v954, %v1214
        %1216 = vmatprep.mubr.bf16.mxu0 0
        %1217 = vmatmul.mubr.bf16.gmra.mrb[0].mxu0 %v1060
        %v1218 = vpop.f32.mrb[0].mxu0
        %v1219 = vadd.f32 %v958, %v1218
        %v1220 = vpop.f32.mrb[0].mxu0
        %v1221 = vadd.f32 %v960, %v1220
        %v1222 = vpop.f32.mrb[0].mxu0
        %v1223 = vadd.f32 %v962, %v1222
        %v1224 = vpop.f32.mrb[0].mxu0
        %v1225 = vadd.f32 %v964, %v1224
        %1226 = vmatprep.mubr.bf16.mxu0 0
        %1227 = vmatmul.mubr.bf16.gmra.mrb[0].mxu0 %v1063
        %v1228 = vpop.f32.mrb[0].mxu0
        %v1229 = vadd.f32 %v968, %v1228
        %v1230 = vpop.f32.mrb[0].mxu0
        %v1231 = vadd.f32 %v970, %v1230
        %v1232 = vpop.f32.mrb[0].mxu0
        %v1233 = vadd.f32 %v972, %v1232
        %v1234 = vpop.f32.mrb[0].mxu0
        %v1235 = vadd.f32 %v974, %v1234
        %1236 = vmatprep.mubr.bf16.mxu0 0
        %1237 = vmatmul.mubr.bf16.gmra.mrb[0].mxu0 %v1066
        %v1238 = vpop.f32.mrb[0].mxu0
        %v1239 = vadd.f32 %v978, %v1238
        %v1240 = vpop.f32.mrb[0].mxu0
        %v1241 = vadd.f32 %v980, %v1240
        %v1242 = vpop.f32.mrb[0].mxu0
        %v1243 = vadd.f32 %v982, %v1242
        %v1244 = vpop.f32.mrb[0].mxu0
        %v1245 = vadd.f32 %v984, %v1244
        %1246 = vmatprep.mubr.bf16.mxu0 0
        %1247 = vmatmul.mubr.bf16.gmra.mrb[0].mxu0 %v1069
        %v1248 = vpop.f32.mrb[0].mxu0
        %v1249 = vadd.f32 %v988, %v1248
        %v1250 = vpop.f32.mrb[0].mxu0
        %v1251 = vadd.f32 %v990, %v1250
        %v1252 = vpop.f32.mrb[0].mxu0
        %v1253 = vadd.f32 %v992, %v1252
        %v1254 = vpop.f32.mrb[0].mxu0
        %v1255 = vadd.f32 %v994, %v1254
        %1256 = vmatprep.mubr.bf16.mxu0 0
        %1257 = vmatmul.mubr.bf16.gmra.mrb[0].mxu0 %v1072
        %v1258 = vpop.f32.mrb[0].mxu0
        %v1259 = vadd.f32 %v998, %v1258
        %v1260 = vpop.f32.mrb[0].mxu0
        %v1261 = vadd.f32 %v1000, %v1260
        %v1262 = vpop.f32.mrb[0].mxu0
        %v1263 = vadd.f32 %v1002, %v1262
        %v1264 = vpop.f32.mrb[0].mxu0
        %v1265 = vadd.f32 %v1004, %v1264
        %1266 = vdwg.mxu0
        %v1267 = vrot.slane %v604, 2
        %v1268 = vrot.slane %v605, 2
        %v1269 = vrot.slane %v606, 2
        %v1270 = vrot.slane %v607, 2
        %v1271 = vrot.slane %v608, 2
        %v1272 = vrot.slane %v609, 2
        %v1273 = vrot.slane %v610, 2
        %v1274 = vrot.slane %v611, 2
        %v1275 = vrot.slane %v612, 2
        %v1276 = vrot.slane %v613, 2
        %v1277 = vrot.slane %v614, 2
        %v1278 = vrot.slane %v615, 2
        %v1279 = vrot.slane %v616, 2
        %v1280 = vrot.slane %v617, 2
        %v1281 = vrot.slane %v618, 2
        %v1282 = vrot.slane %v619, 2
        %v1283 = vrot.slane %v620, 2
        %v1284 = vrot.slane %v621, 2
        %v1285 = vrot.slane %v622, 2
        %v1286 = vrot.slane %v623, 2
        %v1287 = vrot.slane %v624, 2
        %v1288 = vrot.slane %v625, 2
        %v1289 = vrot.slane %v626, 2
        %v1290 = vrot.slane %v627, 2
        %v1291 = vrot.slane %v628, 2
        %v1292 = vrot.slane %v629, 2
        %v1293 = vrot.slane %v630, 2
        %v1294 = vrot.slane %v631, 2
        %v1295 = vrot.slane %v632, 2
        %v1296 = vrot.slane %v633, 2
        %v1297 = vrot.slane %v634, 2
        %v1298 = vrot.slane %v635, 2
        %vm1299 = vcmp.lt.s32.totalorder %v689, 6
        %v1300 = vsel %vm1299, %v1297, %v1298
        %v1301 = vsel %vm1299, %v1296, %v1297
        %v1302 = vsel %vm1299, %v1295, %v1296
        %v1303 = vsel %vm1299, %v1294, %v1295
        %v1304 = vsel %vm1299, %v1293, %v1294
        %v1305 = vsel %vm1299, %v1292, %v1293
        %v1306 = vsel %vm1299, %v1291, %v1292
        %v1307 = vsel %vm1299, %v1290, %v1291
        %v1308 = vsel %vm1299, %v1289, %v1290
        %v1309 = vsel %vm1299, %v1288, %v1289
        %v1310 = vsel %vm1299, %v1287, %v1288
        %v1311 = vsel %vm1299, %v1286, %v1287
        %v1312 = vsel %vm1299, %v1285, %v1286
        %v1313 = vsel %vm1299, %v1284, %v1285
        %v1314 = vsel %vm1299, %v1283, %v1284
        %v1315 = vsel %vm1299, %v1282, %v1283
        %v1316 = vsel %vm1299, %v1281, %v1282
        %v1317 = vsel %vm1299, %v1280, %v1281
        %v1318 = vsel %vm1299, %v1279, %v1280
        %v1319 = vsel %vm1299, %v1278, %v1279
        %v1320 = vsel %vm1299, %v1277, %v1278
        %v1321 = vsel %vm1299, %v1276, %v1277
        %v1322 = vsel %vm1299, %v1275, %v1276
        %v1323 = vsel %vm1299, %v1274, %v1275
        %v1324 = vsel %vm1299, %v1273, %v1274
        %v1325 = vsel %vm1299, %v1272, %v1273
        %v1326 = vsel %vm1299, %v1271, %v1272
        %v1327 = vsel %vm1299, %v1270, %v1271
        %v1328 = vsel %vm1299, %v1269, %v1270
        %v1329 = vsel %vm1299, %v1268, %v1269
        %v1330 = vsel %vm1299, %v1267, %v1268
        %v1331 = vsel %vm1299, %v1298, %v1267
        %v1332 = vpack.c.bf16 %v1329, %v1330
        %v1333 = vpack.c.bf16 %v1327, %v1328
        %v1334 = vpack.c.bf16 %v1325, %v1326
        %v1335 = vpack.c.bf16 %v1323, %v1324
        %v1336 = vpack.c.bf16 %v1321, %v1322
        %v1337 = vpack.c.bf16 %v1319, %v1320
        %v1338 = vpack.c.bf16 %v1317, %v1318
        %v1339 = vpack.c.bf16 %v1315, %v1316
        %v1340 = vpack.c.bf16 %v1313, %v1314
        %v1341 = vpack.c.bf16 %v1311, %v1312
        %v1342 = vpack.c.bf16 %v1309, %v1310
        %v1343 = vpack.c.bf16 %v1307, %v1308
        %v1344 = vpack.c.bf16 %v1305, %v1306
        %v1345 = vpack.c.bf16 %v1303, %v1304
        %v1346 = vpack.c.bf16 %v1301, %v1302
        %v1347 = vpack.c.bf16 %v1331, %v1300
        %s1348 = scalar_lea.vmem %s1, 64
        %v1349 = vld [vmem:[%s1348] sm:$0xff]
        %v1350 = vld [vmem:[%s1348 + $0x8] sm:$0xff]
        %v1351 = vld [vmem:[%s1348 + $0x10] sm:$0xff]
        %v1352 = vld [vmem:[%s1348 + $0x18] sm:$0xff]
        %v1357 = vunpack.c.l.b16 %v1349
        %v1358 = vunpack.c.h.b16 %v1349
        %v1359 = vunpack.c.l.b16 %v1350
        %v1360 = vunpack.c.h.b16 %v1350
        %v1361 = vunpack.c.l.b16 %v1351
        %v1362 = vunpack.c.h.b16 %v1351
        %v1363 = vunpack.c.l.b16 %v1352
        %v1364 = vunpack.c.h.b16 %v1352
        %v1365 = vpack.c.b16 %v1359, %v1357
        %v1366 = vpack.c.b16 %v1360, %v1358
        %v1367 = vpack.c.b16 %v1363, %v1361
        %v1368 = vpack.c.b16 %v1364, %v1362
        %v1374 = vsel %vm764, %v1332, 0
        %v1377 = vsel %vm764, %v1333, 0
        %v1380 = vsel %vm764, %v1334, 0
        %v1383 = vsel %vm764, %v1335, 0
        %v1386 = vsel %vm764, %v1336, 0
        %v1389 = vsel %vm764, %v1337, 0
        %v1392 = vsel %vm764, %v1338, 0
        %v1395 = vsel %vm764, %v1339, 0
        %v1398 = vsel %vm764, %v1340, 0
        %v1401 = vsel %vm764, %v1341, 0
        %v1404 = vsel %vm764, %v1342, 0
        %v1407 = vsel %vm764, %v1343, 0
        %v1410 = vsel %vm764, %v1344, 0
        %v1413 = vsel %vm764, %v1345, 0
        %v1416 = vsel %vm764, %v1346, 0
        %v1419 = vsel %vm764, %v1347, 0
        %1421 = vmatprep.subr.bf16.mxu0 %v1366
        %1422 = vmatpush1.bf16.msra.mxu0 %v1365
        %1423 = vmatprep.subr.bf16.mxu0 %v1368
        %1424 = vmatpush1.bf16.msra.mxu0 %v1367
        %1425 = vmatprep.subr.bf16.mxu0 0
        %1426 = vmatpush1.bf16.msra.mxu0 0
        %1427 = vmatprep.subr.bf16.mxu0 0
        %1428 = vmatpush1.bf16.msra.mxu0 0
        %1429 = vmatprep.subr.bf16.mxu0 0
        %1430 = vmatpush1.bf16.msra.mxu0 0
        %1431 = vmatprep.subr.bf16.mxu0 0
        %1432 = vmatpush1.bf16.msra.mxu0 0
        %1433 = vmatprep.subr.bf16.mxu0 0
        %1434 = vmatpush1.bf16.msra.mxu0 0
        %1435 = vmatprep.subr.bf16.mxu0 0
        %1436 = vmatpush1.bf16.msra.mxu0 0
        %1437 = vmatprep.subr.bf16.mxu0 0
        %1438 = vmatpush1.bf16.msra.mxu0 0
        %1439 = vmatprep.subr.bf16.mxu0 0
        %1440 = vmatpush1.bf16.msra.mxu0 0
        %1441 = vmatprep.subr.bf16.mxu0 0
        %1442 = vmatpush1.bf16.msra.mxu0 0
        %1443 = vmatprep.subr.bf16.mxu0 0
        %1444 = vmatpush1.bf16.msra.mxu0 0
        %1445 = vmatprep.subr.bf16.mxu0 0
        %1446 = vmatpush1.bf16.msra.mxu0 0
        %1447 = vmatprep.subr.bf16.mxu0 0
        %1448 = vmatpush1.bf16.msra.mxu0 0
        %1449 = vmatprep.subr.bf16.mxu0 0
        %1450 = vmatpush1.bf16.msra.mxu0 0
        %1451 = vmatprep.subr.bf16.mxu0 0
        %1452 = vmatpush1.bf16.msra.mxu0 0
        %1453 = vmatprep.mubr.bf16.mxu0 0
        %1454 = vmatmul.mubr.bf16.gmra.mrb[0].mxu0 %v1374
        %v1455 = vpop.f32.mrb[0].mxu0
        %v1456 = vadd.f32 0.0, %v1455
        %v1457 = vpop.f32.mrb[0].mxu0
        %v1458 = vadd.f32 0.0, %v1457
        %v1459 = vpop.f32.mrb[0].mxu0
        %v1460 = vadd.f32 0.0, %v1459
        %v1461 = vpop.f32.mrb[0].mxu0
        %v1462 = vadd.f32 0.0, %v1461
        %1463 = vmatprep.mubr.bf16.mxu0 0
        %1464 = vmatmul.mubr.bf16.gmra.mrb[0].mxu0 %v1377
        %v1465 = vpop.f32.mrb[0].mxu0
        %v1466 = vadd.f32 0.0, %v1465
        %v1467 = vpop.f32.mrb[0].mxu0
        %v1468 = vadd.f32 0.0, %v1467
        %v1469 = vpop.f32.mrb[0].mxu0
        %v1470 = vadd.f32 0.0, %v1469
        %v1471 = vpop.f32.mrb[0].mxu0
        %v1472 = vadd.f32 0.0, %v1471
        %1473 = vmatprep.mubr.bf16.mxu0 0
        %1474 = vmatmul.mubr.bf16.gmra.mrb[0].mxu0 %v1380
        %v1475 = vpop.f32.mrb[0].mxu0
        %v1476 = vadd.f32 0.0, %v1475
        %v1477 = vpop.f32.mrb[0].mxu0
        %v1478 = vadd.f32 0.0, %v1477
        %v1479 = vpop.f32.mrb[0].mxu0
        %v1480 = vadd.f32 0.0, %v1479
        %v1481 = vpop.f32.mrb[0].mxu0
        %v1482 = vadd.f32 0.0, %v1481
        %1483 = vmatprep.mubr.bf16.mxu0 0
        %1484 = vmatmul.mubr.bf16.gmra.mrb[0].mxu0 %v1383
        %v1485 = vpop.f32.mrb[0].mxu0
        %v1486 = vadd.f32 0.0, %v1485
        %v1487 = vpop.f32.mrb[0].mxu0
        %v1488 = vadd.f32 0.0, %v1487
        %v1489 = vpop.f32.mrb[0].mxu0
        %v1490 = vadd.f32 0.0, %v1489
        %v1491 = vpop.f32.mrb[0].mxu0
        %v1492 = vadd.f32 0.0, %v1491
        %1493 = vmatprep.mubr.bf16.mxu0 0
        %1494 = vmatmul.mubr.bf16.gmra.mrb[0].mxu0 %v1386
        %v1495 = vpop.f32.mrb[0].mxu0
        %v1496 = vadd.f32 0.0, %v1495
        %v1497 = vpop.f32.mrb[0].mxu0
        %v1498 = vadd.f32 0.0, %v1497
        %v1499 = vpop.f32.mrb[0].mxu0
        %v1500 = vadd.f32 0.0, %v1499
        %v1501 = vpop.f32.mrb[0].mxu0
        %v1502 = vadd.f32 0.0, %v1501
        %1503 = vmatprep.mubr.bf16.mxu0 0
        %1504 = vmatmul.mubr.bf16.gmra.mrb[0].mxu0 %v1389
        %v1505 = vpop.f32.mrb[0].mxu0
        %v1506 = vadd.f32 0.0, %v1505
        %v1507 = vpop.f32.mrb[0].mxu0
        %v1508 = vadd.f32 0.0, %v1507
        %v1509 = vpop.f32.mrb[0].mxu0
        %v1510 = vadd.f32 0.0, %v1509
        %v1511 = vpop.f32.mrb[0].mxu0
        %v1512 = vadd.f32 0.0, %v1511
        %1513 = vmatprep.mubr.bf16.mxu0 0
        %1514 = vmatmul.mubr.bf16.gmra.mrb[0].mxu0 %v1392
        %v1515 = vpop.f32.mrb[0].mxu0
        %v1516 = vadd.f32 0.0, %v1515
        %v1517 = vpop.f32.mrb[0].mxu0
        %v1518 = vadd.f32 0.0, %v1517
        %v1519 = vpop.f32.mrb[0].mxu0
        %v1520 = vadd.f32 0.0, %v1519
        %v1521 = vpop.f32.mrb[0].mxu0
        %v1522 = vadd.f32 0.0, %v1521
        %1523 = vmatprep.mubr.bf16.mxu0 0
        %1524 = vmatmul.mubr.bf16.gmra.mrb[0].mxu0 %v1395
        %v1525 = vpop.f32.mrb[0].mxu0
        %v1526 = vadd.f32 0.0, %v1525
        %v1527 = vpop.f32.mrb[0].mxu0
        %v1528 = vadd.f32 0.0, %v1527
        %v1529 = vpop.f32.mrb[0].mxu0
        %v1530 = vadd.f32 0.0, %v1529
        %v1531 = vpop.f32.mrb[0].mxu0
        %v1532 = vadd.f32 0.0, %v1531
        %1533 = vmatprep.mubr.bf16.mxu0 0
        %1534 = vmatmul.mubr.bf16.gmra.mrb[0].mxu0 %v1398
        %v1535 = vpop.f32.mrb[0].mxu0
        %v1536 = vadd.f32 0.0, %v1535
        %v1537 = vpop.f32.mrb[0].mxu0
        %v1538 = vadd.f32 0.0, %v1537
        %v1539 = vpop.f32.mrb[0].mxu0
        %v1540 = vadd.f32 0.0, %v1539
        %v1541 = vpop.f32.mrb[0].mxu0
        %v1542 = vadd.f32 0.0, %v1541
        %1543 = vmatprep.mubr.bf16.mxu0 0
        %1544 = vmatmul.mubr.bf16.gmra.mrb[0].mxu0 %v1401
        %v1545 = vpop.f32.mrb[0].mxu0
        %v1546 = vadd.f32 0.0, %v1545
        %v1547 = vpop.f32.mrb[0].mxu0
        %v1548 = vadd.f32 0.0, %v1547
        %v1549 = vpop.f32.mrb[0].mxu0
        %v1550 = vadd.f32 0.0, %v1549
        %v1551 = vpop.f32.mrb[0].mxu0
        %v1552 = vadd.f32 0.0, %v1551
        %1553 = vmatprep.mubr.bf16.mxu0 0
        %1554 = vmatmul.mubr.bf16.gmra.mrb[0].mxu0 %v1404
        %v1555 = vpop.f32.mrb[0].mxu0
        %v1556 = vadd.f32 0.0, %v1555
        %v1557 = vpop.f32.mrb[0].mxu0
        %v1558 = vadd.f32 0.0, %v1557
        %v1559 = vpop.f32.mrb[0].mxu0
        %v1560 = vadd.f32 0.0, %v1559
        %v1561 = vpop.f32.mrb[0].mxu0
        %v1562 = vadd.f32 0.0, %v1561
        %1563 = vmatprep.mubr.bf16.mxu0 0
        %1564 = vmatmul.mubr.bf16.gmra.mrb[0].mxu0 %v1407
        %v1565 = vpop.f32.mrb[0].mxu0
        %v1566 = vadd.f32 0.0, %v1565
        %v1567 = vpop.f32.mrb[0].mxu0
        %v1568 = vadd.f32 0.0, %v1567
        %v1569 = vpop.f32.mrb[0].mxu0
        %v1570 = vadd.f32 0.0, %v1569
        %v1571 = vpop.f32.mrb[0].mxu0
        %v1572 = vadd.f32 0.0, %v1571
        %1573 = vmatprep.mubr.bf16.mxu0 0
        %1574 = vmatmul.mubr.bf16.gmra.mrb[0].mxu0 %v1410
        %v1575 = vpop.f32.mrb[0].mxu0
        %v1576 = vadd.f32 0.0, %v1575
        %v1577 = vpop.f32.mrb[0].mxu0
        %v1578 = vadd.f32 0.0, %v1577
        %v1579 = vpop.f32.mrb[0].mxu0
        %v1580 = vadd.f32 0.0, %v1579
        %v1581 = vpop.f32.mrb[0].mxu0
        %v1582 = vadd.f32 0.0, %v1581
        %1583 = vmatprep.mubr.bf16.mxu0 0
        %1584 = vmatmul.mubr.bf16.gmra.mrb[0].mxu0 %v1413
        %v1585 = vpop.f32.mrb[0].mxu0
        %v1586 = vadd.f32 0.0, %v1585
        %v1587 = vpop.f32.mrb[0].mxu0
        %v1588 = vadd.f32 0.0, %v1587
        %v1589 = vpop.f32.mrb[0].mxu0
        %v1590 = vadd.f32 0.0, %v1589
        %v1591 = vpop.f32.mrb[0].mxu0
        %v1592 = vadd.f32 0.0, %v1591
        %1593 = vmatprep.mubr.bf16.mxu0 0
        %1594 = vmatmul.mubr.bf16.gmra.mrb[0].mxu0 %v1416
        %v1595 = vpop.f32.mrb[0].mxu0
        %v1596 = vadd.f32 0.0, %v1595
        %v1597 = vpop.f32.mrb[0].mxu0
        %v1598 = vadd.f32 0.0, %v1597
        %v1599 = vpop.f32.mrb[0].mxu0
        %v1600 = vadd.f32 0.0, %v1599
        %v1601 = vpop.f32.mrb[0].mxu0
        %v1602 = vadd.f32 0.0, %v1601
        %1603 = vmatprep.mubr.bf16.mxu0 0
        %1604 = vmatmul.mubr.bf16.gmra.mrb[0].mxu0 %v1419
        %v1605 = vpop.f32.mrb[0].mxu0
        %v1606 = vadd.f32 0.0, %v1605
        %v1607 = vpop.f32.mrb[0].mxu0
        %v1608 = vadd.f32 0.0, %v1607
        %v1609 = vpop.f32.mrb[0].mxu0
        %v1610 = vadd.f32 0.0, %v1609
        %v1611 = vpop.f32.mrb[0].mxu0
        %v1612 = vadd.f32 0.0, %v1611
        %1613 = vdwg.mxu0
        %v1614 = vadd.f32 %v1109, %v1456
        %v1615 = vadd.f32 %v1111, %v1458
        %v1616 = vadd.f32 %v1113, %v1460
        %v1617 = vadd.f32 %v1115, %v1462
        %v1618 = vadd.f32 %v1119, %v1466
        %v1619 = vadd.f32 %v1121, %v1468
        %v1620 = vadd.f32 %v1123, %v1470
        %v1621 = vadd.f32 %v1125, %v1472
        %v1622 = vadd.f32 %v1129, %v1476
        %v1623 = vadd.f32 %v1131, %v1478
        %v1624 = vadd.f32 %v1133, %v1480
        %v1625 = vadd.f32 %v1135, %v1482
        %v1626 = vadd.f32 %v1139, %v1486
        %v1627 = vadd.f32 %v1141, %v1488
        %v1628 = vadd.f32 %v1143, %v1490
        %v1629 = vadd.f32 %v1145, %v1492
        %v1630 = vadd.f32 %v1149, %v1496
        %v1631 = vadd.f32 %v1151, %v1498
        %v1632 = vadd.f32 %v1153, %v1500
        %v1633 = vadd.f32 %v1155, %v1502
        %v1634 = vadd.f32 %v1159, %v1506
        %v1635 = vadd.f32 %v1161, %v1508
        %v1636 = vadd.f32 %v1163, %v1510
        %v1637 = vadd.f32 %v1165, %v1512
        %v1638 = vadd.f32 %v1169, %v1516
        %v1639 = vadd.f32 %v1171, %v1518
        %v1640 = vadd.f32 %v1173, %v1520
        %v1641 = vadd.f32 %v1175, %v1522
        %v1642 = vadd.f32 %v1179, %v1526
        %v1643 = vadd.f32 %v1181, %v1528
        %v1644 = vadd.f32 %v1183, %v1530
        %v1645 = vadd.f32 %v1185, %v1532
        %v1646 = vadd.f32 %v1189, %v1536
        %v1647 = vadd.f32 %v1191, %v1538
        %v1648 = vadd.f32 %v1193, %v1540
        %v1649 = vadd.f32 %v1195, %v1542
        %v1650 = vadd.f32 %v1199, %v1546
        %v1651 = vadd.f32 %v1201, %v1548
        %v1652 = vadd.f32 %v1203, %v1550
        %v1653 = vadd.f32 %v1205, %v1552
        %v1654 = vadd.f32 %v1209, %v1556
        %v1655 = vadd.f32 %v1211, %v1558
        %v1656 = vadd.f32 %v1213, %v1560
        %v1657 = vadd.f32 %v1215, %v1562
        %v1658 = vadd.f32 %v1219, %v1566
        %v1659 = vadd.f32 %v1221, %v1568
        %v1660 = vadd.f32 %v1223, %v1570
        %v1661 = vadd.f32 %v1225, %v1572
        %v1662 = vadd.f32 %v1229, %v1576
        %v1663 = vadd.f32 %v1231, %v1578
        %v1664 = vadd.f32 %v1233, %v1580
        %v1665 = vadd.f32 %v1235, %v1582
        %v1666 = vadd.f32 %v1239, %v1586
        %v1667 = vadd.f32 %v1241, %v1588
        %v1668 = vadd.f32 %v1243, %v1590
        %v1669 = vadd.f32 %v1245, %v1592
        %v1670 = vadd.f32 %v1249, %v1596
        %v1671 = vadd.f32 %v1251, %v1598
        %v1672 = vadd.f32 %v1253, %v1600
        %v1673 = vadd.f32 %v1255, %v1602
        %v1674 = vadd.f32 %v1259, %v1606
        %v1675 = vadd.f32 %v1261, %v1608
        %v1676 = vadd.f32 %v1263, %v1610
        %v1677 = vadd.f32 %v1265, %v1612
        %v1678 = vrot.slane %v604, 3
        %v1679 = vrot.slane %v605, 3
        %v1680 = vrot.slane %v606, 3
        %v1681 = vrot.slane %v607, 3
        %v1682 = vrot.slane %v608, 3
        %v1683 = vrot.slane %v609, 3
        %v1684 = vrot.slane %v610, 3
        %v1685 = vrot.slane %v611, 3
        %v1686 = vrot.slane %v612, 3
        %v1687 = vrot.slane %v613, 3
        %v1688 = vrot.slane %v614, 3
        %v1689 = vrot.slane %v615, 3
        %v1690 = vrot.slane %v616, 3
        %v1691 = vrot.slane %v617, 3
        %v1692 = vrot.slane %v618, 3
        %v1693 = vrot.slane %v619, 3
        %v1694 = vrot.slane %v620, 3
        %v1695 = vrot.slane %v621, 3
        %v1696 = vrot.slane %v622, 3
        %v1697 = vrot.slane %v623, 3
        %v1698 = vrot.slane %v624, 3
        %v1699 = vrot.slane %v625, 3
        %v1700 = vrot.slane %v626, 3
        %v1701 = vrot.slane %v627, 3
        %v1702 = vrot.slane %v628, 3
        %v1703 = vrot.slane %v629, 3
        %v1704 = vrot.slane %v630, 3
        %v1705 = vrot.slane %v631, 3
        %v1706 = vrot.slane %v632, 3
        %v1707 = vrot.slane %v633, 3
        %v1708 = vrot.slane %v634, 3
        %v1709 = vrot.slane %v635, 3
        %vm1710 = vcmp.lt.s32.totalorder %v689, 5
        %v1711 = vsel %vm1710, %v1708, %v1709
        %v1712 = vsel %vm1710, %v1707, %v1708
        %v1713 = vsel %vm1710, %v1706, %v1707
        %v1714 = vsel %vm1710, %v1705, %v1706
        %v1715 = vsel %vm1710, %v1704, %v1705
        %v1716 = vsel %vm1710, %v1703, %v1704
        %v1717 = vsel %vm1710, %v1702, %v1703
        %v1718 = vsel %vm1710, %v1701, %v1702
        %v1719 = vsel %vm1710, %v1700, %v1701
        %v1720 = vsel %vm1710, %v1699, %v1700
        %v1721 = vsel %vm1710, %v1698, %v1699
        %v1722 = vsel %vm1710, %v1697, %v1698
        %v1723 = vsel %vm1710, %v1696, %v1697
        %v1724 = vsel %vm1710, %v1695, %v1696
        %v1725 = vsel %vm1710, %v1694, %v1695
        %v1726 = vsel %vm1710, %v1693, %v1694
        %v1727 = vsel %vm1710, %v1692, %v1693
        %v1728 = vsel %vm1710, %v1691, %v1692
        %v1729 = vsel %vm1710, %v1690, %v1691
        %v1730 = vsel %vm1710, %v1689, %v1690
        %v1731 = vsel %vm1710, %v1688, %v1689
        %v1732 = vsel %vm1710, %v1687, %v1688
        %v1733 = vsel %vm1710, %v1686, %v1687
        %v1734 = vsel %vm1710, %v1685, %v1686
        %v1735 = vsel %vm1710, %v1684, %v1685
        %v1736 = vsel %vm1710, %v1683, %v1684
        %v1737 = vsel %vm1710, %v1682, %v1683
        %v1738 = vsel %vm1710, %v1681, %v1682
        %v1739 = vsel %vm1710, %v1680, %v1681
        %v1740 = vsel %vm1710, %v1679, %v1680
        %v1741 = vsel %vm1710, %v1678, %v1679
        %v1742 = vsel %vm1710, %v1709, %v1678
        %v1743 = vpack.c.bf16 %v1740, %v1741
        %v1744 = vpack.c.bf16 %v1738, %v1739
        %v1745 = vpack.c.bf16 %v1736, %v1737
        %v1746 = vpack.c.bf16 %v1734, %v1735
        %v1747 = vpack.c.bf16 %v1732, %v1733
        %v1748 = vpack.c.bf16 %v1730, %v1731
        %v1749 = vpack.c.bf16 %v1728, %v1729
        %v1750 = vpack.c.bf16 %v1726, %v1727
        %v1751 = vpack.c.bf16 %v1724, %v1725
        %v1752 = vpack.c.bf16 %v1722, %v1723
        %v1753 = vpack.c.bf16 %v1720, %v1721
        %v1754 = vpack.c.bf16 %v1718, %v1719
        %v1755 = vpack.c.bf16 %v1716, %v1717
        %v1756 = vpack.c.bf16 %v1714, %v1715
        %v1757 = vpack.c.bf16 %v1712, %v1713
        %v1758 = vpack.c.bf16 %v1742, %v1711
        %s1759 = scalar_lea.vmem %s1, 96
        %v1760 = vld [vmem:[%s1759] sm:$0xff]
        %v1761 = vld [vmem:[%s1759 + $0x8] sm:$0xff]
        %v1762 = vld [vmem:[%s1759 + $0x10] sm:$0xff]
        %v1763 = vld [vmem:[%s1759 + $0x18] sm:$0xff]
        %v1768 = vunpack.c.l.b16 %v1760
        %v1769 = vunpack.c.h.b16 %v1760
        %v1770 = vunpack.c.l.b16 %v1761
        %v1771 = vunpack.c.h.b16 %v1761
        %v1772 = vunpack.c.l.b16 %v1762
        %v1773 = vunpack.c.h.b16 %v1762
        %v1774 = vunpack.c.l.b16 %v1763
        %v1775 = vunpack.c.h.b16 %v1763
        %v1776 = vpack.c.b16 %v1770, %v1768
        %v1777 = vpack.c.b16 %v1771, %v1769
        %v1778 = vpack.c.b16 %v1774, %v1772
        %v1779 = vpack.c.b16 %v1775, %v1773
        %v1785 = vsel %vm764, %v1743, 0
        %v1788 = vsel %vm764, %v1744, 0
        %v1791 = vsel %vm764, %v1745, 0
        %v1794 = vsel %vm764, %v1746, 0
        %v1797 = vsel %vm764, %v1747, 0
        %v1800 = vsel %vm764, %v1748, 0
        %v1803 = vsel %vm764, %v1749, 0
        %v1806 = vsel %vm764, %v1750, 0
        %v1809 = vsel %vm764, %v1751, 0
        %v1812 = vsel %vm764, %v1752, 0
        %v1815 = vsel %vm764, %v1753, 0
        %v1818 = vsel %vm764, %v1754, 0
        %v1821 = vsel %vm764, %v1755, 0
        %v1824 = vsel %vm764, %v1756, 0
        %v1827 = vsel %vm764, %v1757, 0
        %v1830 = vsel %vm764, %v1758, 0
        %1832 = vmatprep.subr.bf16.mxu0 %v1777
        %1833 = vmatpush1.bf16.msra.mxu0 %v1776
        %1834 = vmatprep.subr.bf16.mxu0 %v1779
        %1835 = vmatpush1.bf16.msra.mxu0 %v1778
        %1836 = vmatprep.subr.bf16.mxu0 0
        %1837 = vmatpush1.bf16.msra.mxu0 0
        %1838 = vmatprep.subr.bf16.mxu0 0
        %1839 = vmatpush1.bf16.msra.mxu0 0
        %1840 = vmatprep.subr.bf16.mxu0 0
        %1841 = vmatpush1.bf16.msra.mxu0 0
        %1842 = vmatprep.subr.bf16.mxu0 0
        %1843 = vmatpush1.bf16.msra.mxu0 0
        %1844 = vmatprep.subr.bf16.mxu0 0
        %1845 = vmatpush1.bf16.msra.mxu0 0
        %1846 = vmatprep.subr.bf16.mxu0 0
        %1847 = vmatpush1.bf16.msra.mxu0 0
        %1848 = vmatprep.subr.bf16.mxu0 0
        %1849 = vmatpush1.bf16.msra.mxu0 0
        %1850 = vmatprep.subr.bf16.mxu0 0
        %1851 = vmatpush1.bf16.msra.mxu0 0
        %1852 = vmatprep.subr.bf16.mxu0 0
        %1853 = vmatpush1.bf16.msra.mxu0 0
        %1854 = vmatprep.subr.bf16.mxu0 0
        %1855 = vmatpush1.bf16.msra.mxu0 0
        %1856 = vmatprep.subr.bf16.mxu0 0
        %1857 = vmatpush1.bf16.msra.mxu0 0
        %1858 = vmatprep.subr.bf16.mxu0 0
        %1859 = vmatpush1.bf16.msra.mxu0 0
        %1860 = vmatprep.subr.bf16.mxu0 0
        %1861 = vmatpush1.bf16.msra.mxu0 0
        %1862 = vmatprep.subr.bf16.mxu0 0
        %1863 = vmatpush1.bf16.msra.mxu0 0
        %1864 = vmatprep.mubr.bf16.mxu0 0
        %1865 = vmatmul.mubr.bf16.gmra.mrb[0].mxu0 %v1785
        %v1866 = vpop.f32.mrb[0].mxu0
        %v1867 = vadd.f32 0.0, %v1866
        %v1868 = vpop.f32.mrb[0].mxu0
        %v1869 = vadd.f32 0.0, %v1868
        %v1870 = vpop.f32.mrb[0].mxu0
        %v1871 = vadd.f32 0.0, %v1870
        %v1872 = vpop.f32.mrb[0].mxu0
        %v1873 = vadd.f32 0.0, %v1872
        %1874 = vmatprep.mubr.bf16.mxu0 0
        %1875 = vmatmul.mubr.bf16.gmra.mrb[0].mxu0 %v1788
        %v1876 = vpop.f32.mrb[0].mxu0
        %v1877 = vadd.f32 0.0, %v1876
        %v1878 = vpop.f32.mrb[0].mxu0
        %v1879 = vadd.f32 0.0, %v1878
        %v1880 = vpop.f32.mrb[0].mxu0
        %v1881 = vadd.f32 0.0, %v1880
        %v1882 = vpop.f32.mrb[0].mxu0
        %v1883 = vadd.f32 0.0, %v1882
        %1884 = vmatprep.mubr.bf16.mxu0 0
        %1885 = vmatmul.mubr.bf16.gmra.mrb[0].mxu0 %v1791
        %v1886 = vpop.f32.mrb[0].mxu0
        %v1887 = vadd.f32 0.0, %v1886
        %v1888 = vpop.f32.mrb[0].mxu0
        %v1889 = vadd.f32 0.0, %v1888
        %v1890 = vpop.f32.mrb[0].mxu0
        %v1891 = vadd.f32 0.0, %v1890
        %v1892 = vpop.f32.mrb[0].mxu0
        %v1893 = vadd.f32 0.0, %v1892
        %1894 = vmatprep.mubr.bf16.mxu0 0
        %1895 = vmatmul.mubr.bf16.gmra.mrb[0].mxu0 %v1794
        %v1896 = vpop.f32.mrb[0].mxu0
        %v1897 = vadd.f32 0.0, %v1896
        %v1898 = vpop.f32.mrb[0].mxu0
        %v1899 = vadd.f32 0.0, %v1898
        %v1900 = vpop.f32.mrb[0].mxu0
        %v1901 = vadd.f32 0.0, %v1900
        %v1902 = vpop.f32.mrb[0].mxu0
        %v1903 = vadd.f32 0.0, %v1902
        %1904 = vmatprep.mubr.bf16.mxu0 0
        %1905 = vmatmul.mubr.bf16.gmra.mrb[0].mxu0 %v1797
        %v1906 = vpop.f32.mrb[0].mxu0
        %v1907 = vadd.f32 0.0, %v1906
        %v1908 = vpop.f32.mrb[0].mxu0
        %v1909 = vadd.f32 0.0, %v1908
        %v1910 = vpop.f32.mrb[0].mxu0
        %v1911 = vadd.f32 0.0, %v1910
        %v1912 = vpop.f32.mrb[0].mxu0
        %v1913 = vadd.f32 0.0, %v1912
        %1914 = vmatprep.mubr.bf16.mxu0 0
        %1915 = vmatmul.mubr.bf16.gmra.mrb[0].mxu0 %v1800
        %v1916 = vpop.f32.mrb[0].mxu0
        %v1917 = vadd.f32 0.0, %v1916
        %v1918 = vpop.f32.mrb[0].mxu0
        %v1919 = vadd.f32 0.0, %v1918
        %v1920 = vpop.f32.mrb[0].mxu0
        %v1921 = vadd.f32 0.0, %v1920
        %v1922 = vpop.f32.mrb[0].mxu0
        %v1923 = vadd.f32 0.0, %v1922
        %1924 = vmatprep.mubr.bf16.mxu0 0
        %1925 = vmatmul.mubr.bf16.gmra.mrb[0].mxu0 %v1803
        %v1926 = vpop.f32.mrb[0].mxu0
        %v1927 = vadd.f32 0.0, %v1926
        %v1928 = vpop.f32.mrb[0].mxu0
        %v1929 = vadd.f32 0.0, %v1928
        %v1930 = vpop.f32.mrb[0].mxu0
        %v1931 = vadd.f32 0.0, %v1930
        %v1932 = vpop.f32.mrb[0].mxu0
        %v1933 = vadd.f32 0.0, %v1932
        %1934 = vmatprep.mubr.bf16.mxu0 0
        %1935 = vmatmul.mubr.bf16.gmra.mrb[0].mxu0 %v1806
        %v1936 = vpop.f32.mrb[0].mxu0
        %v1937 = vadd.f32 0.0, %v1936
        %v1938 = vpop.f32.mrb[0].mxu0
        %v1939 = vadd.f32 0.0, %v1938
        %v1940 = vpop.f32.mrb[0].mxu0
        %v1941 = vadd.f32 0.0, %v1940
        %v1942 = vpop.f32.mrb[0].mxu0
        %v1943 = vadd.f32 0.0, %v1942
        %1944 = vmatprep.mubr.bf16.mxu0 0
        %1945 = vmatmul.mubr.bf16.gmra.mrb[0].mxu0 %v1809
        %v1946 = vpop.f32.mrb[0].mxu0
        %v1947 = vadd.f32 0.0, %v1946
        %v1948 = vpop.f32.mrb[0].mxu0
        %v1949 = vadd.f32 0.0, %v1948
        %v1950 = vpop.f32.mrb[0].mxu0
        %v1951 = vadd.f32 0.0, %v1950
        %v1952 = vpop.f32.mrb[0].mxu0
        %v1953 = vadd.f32 0.0, %v1952
        %1954 = vmatprep.mubr.bf16.mxu0 0
        %1955 = vmatmul.mubr.bf16.gmra.mrb[0].mxu0 %v1812
        %v1956 = vpop.f32.mrb[0].mxu0
        %v1957 = vadd.f32 0.0, %v1956
        %v1958 = vpop.f32.mrb[0].mxu0
        %v1959 = vadd.f32 0.0, %v1958
        %v1960 = vpop.f32.mrb[0].mxu0
        %v1961 = vadd.f32 0.0, %v1960
        %v1962 = vpop.f32.mrb[0].mxu0
        %v1963 = vadd.f32 0.0, %v1962
        %1964 = vmatprep.mubr.bf16.mxu0 0
        %1965 = vmatmul.mubr.bf16.gmra.mrb[0].mxu0 %v1815
        %v1966 = vpop.f32.mrb[0].mxu0
        %v1967 = vadd.f32 0.0, %v1966
        %v1968 = vpop.f32.mrb[0].mxu0
        %v1969 = vadd.f32 0.0, %v1968
        %v1970 = vpop.f32.mrb[0].mxu0
        %v1971 = vadd.f32 0.0, %v1970
        %v1972 = vpop.f32.mrb[0].mxu0
        %v1973 = vadd.f32 0.0, %v1972
        %1974 = vmatprep.mubr.bf16.mxu0 0
        %1975 = vmatmul.mubr.bf16.gmra.mrb[0].mxu0 %v1818
        %v1976 = vpop.f32.mrb[0].mxu0
        %v1977 = vadd.f32 0.0, %v1976
        %v1978 = vpop.f32.mrb[0].mxu0
        %v1979 = vadd.f32 0.0, %v1978
        %v1980 = vpop.f32.mrb[0].mxu0
        %v1981 = vadd.f32 0.0, %v1980
        %v1982 = vpop.f32.mrb[0].mxu0
        %v1983 = vadd.f32 0.0, %v1982
        %1984 = vmatprep.mubr.bf16.mxu0 0
        %1985 = vmatmul.mubr.bf16.gmra.mrb[0].mxu0 %v1821
        %v1986 = vpop.f32.mrb[0].mxu0
        %v1987 = vadd.f32 0.0, %v1986
        %v1988 = vpop.f32.mrb[0].mxu0
        %v1989 = vadd.f32 0.0, %v1988
        %v1990 = vpop.f32.mrb[0].mxu0
        %v1991 = vadd.f32 0.0, %v1990
        %v1992 = vpop.f32.mrb[0].mxu0
        %v1993 = vadd.f32 0.0, %v1992
        %1994 = vmatprep.mubr.bf16.mxu0 0
        %1995 = vmatmul.mubr.bf16.gmra.mrb[0].mxu0 %v1824
        %v1996 = vpop.f32.mrb[0].mxu0
        %v1997 = vadd.f32 0.0, %v1996
        %v1998 = vpop.f32.mrb[0].mxu0
        %v1999 = vadd.f32 0.0, %v1998
        %v2000 = vpop.f32.mrb[0].mxu0
        %v2001 = vadd.f32 0.0, %v2000
        %v2002 = vpop.f32.mrb[0].mxu0
        %v2003 = vadd.f32 0.0, %v2002
        %2004 = vmatprep.mubr.bf16.mxu0 0
        %2005 = vmatmul.mubr.bf16.gmra.mrb[0].mxu0 %v1827
        %v2006 = vpop.f32.mrb[0].mxu0
        %v2007 = vadd.f32 0.0, %v2006
        %v2008 = vpop.f32.mrb[0].mxu0
        %v2009 = vadd.f32 0.0, %v2008
        %v2010 = vpop.f32.mrb[0].mxu0
        %v2011 = vadd.f32 0.0, %v2010
        %v2012 = vpop.f32.mrb[0].mxu0
        %v2013 = vadd.f32 0.0, %v2012
        %2014 = vmatprep.mubr.bf16.mxu0 0
        %2015 = vmatmul.mubr.bf16.gmra.mrb[0].mxu0 %v1830
        %v2016 = vpop.f32.mrb[0].mxu0
        %v2017 = vadd.f32 0.0, %v2016
        %v2018 = vpop.f32.mrb[0].mxu0
        %v2019 = vadd.f32 0.0, %v2018
        %v2020 = vpop.f32.mrb[0].mxu0
        %v2021 = vadd.f32 0.0, %v2020
        %v2022 = vpop.f32.mrb[0].mxu0
        %v2023 = vadd.f32 0.0, %v2022
        %2024 = vdwg.mxu0
        %v2025 = vadd.f32 %v1614, %v1867
        %v2026 = vadd.f32 %v1615, %v1869
        %v2027 = vadd.f32 %v1616, %v1871
        %v2028 = vadd.f32 %v1617, %v1873
        %v2029 = vadd.f32 %v1618, %v1877
        %v2030 = vadd.f32 %v1619, %v1879
        %v2031 = vadd.f32 %v1620, %v1881
        %v2032 = vadd.f32 %v1621, %v1883
        %v2033 = vadd.f32 %v1622, %v1887
        %v2034 = vadd.f32 %v1623, %v1889
        %v2035 = vadd.f32 %v1624, %v1891
        %v2036 = vadd.f32 %v1625, %v1893
        %v2037 = vadd.f32 %v1626, %v1897
        %v2038 = vadd.f32 %v1627, %v1899
        %v2039 = vadd.f32 %v1628, %v1901
        %v2040 = vadd.f32 %v1629, %v1903
        %v2041 = vadd.f32 %v1630, %v1907
        %v2042 = vadd.f32 %v1631, %v1909
        %v2043 = vadd.f32 %v1632, %v1911
        %v2044 = vadd.f32 %v1633, %v1913
        %v2045 = vadd.f32 %v1634, %v1917
        %v2046 = vadd.f32 %v1635, %v1919
        %v2047 = vadd.f32 %v1636, %v1921
        %v2048 = vadd.f32 %v1637, %v1923
        %v2049 = vadd.f32 %v1638, %v1927
        %v2050 = vadd.f32 %v1639, %v1929
        %v2051 = vadd.f32 %v1640, %v1931
        %v2052 = vadd.f32 %v1641, %v1933
        %v2053 = vadd.f32 %v1642, %v1937
        %v2054 = vadd.f32 %v1643, %v1939
        %v2055 = vadd.f32 %v1644, %v1941
        %v2056 = vadd.f32 %v1645, %v1943
        %v2057 = vadd.f32 %v1646, %v1947
        %v2058 = vadd.f32 %v1647, %v1949
        %v2059 = vadd.f32 %v1648, %v1951
        %v2060 = vadd.f32 %v1649, %v1953
        %v2061 = vadd.f32 %v1650, %v1957
        %v2062 = vadd.f32 %v1651, %v1959
        %v2063 = vadd.f32 %v1652, %v1961
        %v2064 = vadd.f32 %v1653, %v1963
        %v2065 = vadd.f32 %v1654, %v1967
        %v2066 = vadd.f32 %v1655, %v1969
        %v2067 = vadd.f32 %v1656, %v1971
        %v2068 = vadd.f32 %v1657, %v1973
        %v2069 = vadd.f32 %v1658, %v1977
        %v2070 = vadd.f32 %v1659, %v1979
        %v2071 = vadd.f32 %v1660, %v1981
        %v2072 = vadd.f32 %v1661, %v1983
        %v2073 = vadd.f32 %v1662, %v1987
        %v2074 = vadd.f32 %v1663, %v1989
        %v2075 = vadd.f32 %v1664, %v1991
        %v2076 = vadd.f32 %v1665, %v1993
        %v2077 = vadd.f32 %v1666, %v1997
        %v2078 = vadd.f32 %v1667, %v1999
        %v2079 = vadd.f32 %v1668, %v2001
        %v2080 = vadd.f32 %v1669, %v2003
        %v2081 = vadd.f32 %v1670, %v2007
        %v2082 = vadd.f32 %v1671, %v2009
        %v2083 = vadd.f32 %v1672, %v2011
        %v2084 = vadd.f32 %v1673, %v2013
        %v2085 = vadd.f32 %v1674, %v2017
        %v2086 = vadd.f32 %v1675, %v2019
        %v2087 = vadd.f32 %v1676, %v2021
        %v2088 = vadd.f32 %v1677, %v2023
        %v2089 = vrot.slane %v604, 4
        %v2090 = vrot.slane %v605, 4
        %v2091 = vrot.slane %v606, 4
        %v2092 = vrot.slane %v607, 4
        %v2093 = vrot.slane %v608, 4
        %v2094 = vrot.slane %v609, 4
        %v2095 = vrot.slane %v610, 4
        %v2096 = vrot.slane %v611, 4
        %v2097 = vrot.slane %v612, 4
        %v2098 = vrot.slane %v613, 4
        %v2099 = vrot.slane %v614, 4
        %v2100 = vrot.slane %v615, 4
        %v2101 = vrot.slane %v616, 4
        %v2102 = vrot.slane %v617, 4
        %v2103 = vrot.slane %v618, 4
        %v2104 = vrot.slane %v619, 4
        %v2105 = vrot.slane %v620, 4
        %v2106 = vrot.slane %v621, 4
        %v2107 = vrot.slane %v622, 4
        %v2108 = vrot.slane %v623, 4
        %v2109 = vrot.slane %v624, 4
        %v2110 = vrot.slane %v625, 4
        %v2111 = vrot.slane %v626, 4
        %v2112 = vrot.slane %v627, 4
        %v2113 = vrot.slane %v628, 4
        %v2114 = vrot.slane %v629, 4
        %v2115 = vrot.slane %v630, 4
        %v2116 = vrot.slane %v631, 4
        %v2117 = vrot.slane %v632, 4
        %v2118 = vrot.slane %v633, 4
        %v2119 = vrot.slane %v634, 4
        %v2120 = vrot.slane %v635, 4
        %vm2121 = vcmp.lt.s32.totalorder %v689, 4
        %v2122 = vsel %vm2121, %v2119, %v2120
        %v2123 = vsel %vm2121, %v2118, %v2119
        %v2124 = vsel %vm2121, %v2117, %v2118
        %v2125 = vsel %vm2121, %v2116, %v2117
        %v2126 = vsel %vm2121, %v2115, %v2116
        %v2127 = vsel %vm2121, %v2114, %v2115
        %v2128 = vsel %vm2121, %v2113, %v2114
        %v2129 = vsel %vm2121, %v2112, %v2113
        %v2130 = vsel %vm2121, %v2111, %v2112
        %v2131 = vsel %vm2121, %v2110, %v2111
        %v2132 = vsel %vm2121, %v2109, %v2110
        %v2133 = vsel %vm2121, %v2108, %v2109
        %v2134 = vsel %vm2121, %v2107, %v2108
        %v2135 = vsel %vm2121, %v2106, %v2107
        %v2136 = vsel %vm2121, %v2105, %v2106
        %v2137 = vsel %vm2121, %v2104, %v2105
        %v2138 = vsel %vm2121, %v2103, %v2104
        %v2139 = vsel %vm2121, %v2102, %v2103
        %v2140 = vsel %vm2121, %v2101, %v2102
        %v2141 = vsel %vm2121, %v2100, %v2101
        %v2142 = vsel %vm2121, %v2099, %v2100
        %v2143 = vsel %vm2121, %v2098, %v2099
        %v2144 = vsel %vm2121, %v2097, %v2098
        %v2145 = vsel %vm2121, %v2096, %v2097
        %v2146 = vsel %vm2121, %v2095, %v2096
        %v2147 = vsel %vm2121, %v2094, %v2095
        %v2148 = vsel %vm2121, %v2093, %v2094
        %v2149 = vsel %vm2121, %v2092, %v2093
        %v2150 = vsel %vm2121, %v2091, %v2092
        %v2151 = vsel %vm2121, %v2090, %v2091
        %v2152 = vsel %vm2121, %v2089, %v2090
        %v2153 = vsel %vm2121, %v2120, %v2089
        %v2154 = vpack.c.bf16 %v2151, %v2152
        %v2155 = vpack.c.bf16 %v2149, %v2150
        %v2156 = vpack.c.bf16 %v2147, %v2148
        %v2157 = vpack.c.bf16 %v2145, %v2146
        %v2158 = vpack.c.bf16 %v2143, %v2144
        %v2159 = vpack.c.bf16 %v2141, %v2142
        %v2160 = vpack.c.bf16 %v2139, %v2140
        %v2161 = vpack.c.bf16 %v2137, %v2138
        %v2162 = vpack.c.bf16 %v2135, %v2136
        %v2163 = vpack.c.bf16 %v2133, %v2134
        %v2164 = vpack.c.bf16 %v2131, %v2132
        %v2165 = vpack.c.bf16 %v2129, %v2130
        %v2166 = vpack.c.bf16 %v2127, %v2128
        %v2167 = vpack.c.bf16 %v2125, %v2126
        %v2168 = vpack.c.bf16 %v2123, %v2124
        %v2169 = vpack.c.bf16 %v2153, %v2122
        %s2170 = scalar_lea.vmem %s1, 128
        %v2171 = vld [vmem:[%s2170] sm:$0xff]
        %v2172 = vld [vmem:[%s2170 + $0x8] sm:$0xff]
        %v2173 = vld [vmem:[%s2170 + $0x10] sm:$0xff]
        %v2174 = vld [vmem:[%s2170 + $0x18] sm:$0xff]
        %v2179 = vunpack.c.l.b16 %v2171
        %v2180 = vunpack.c.h.b16 %v2171
        %v2181 = vunpack.c.l.b16 %v2172
        %v2182 = vunpack.c.h.b16 %v2172
        %v2183 = vunpack.c.l.b16 %v2173
        %v2184 = vunpack.c.h.b16 %v2173
        %v2185 = vunpack.c.l.b16 %v2174
        %v2186 = vunpack.c.h.b16 %v2174
        %v2187 = vpack.c.b16 %v2181, %v2179
        %v2188 = vpack.c.b16 %v2182, %v2180
        %v2189 = vpack.c.b16 %v2185, %v2183
        %v2190 = vpack.c.b16 %v2186, %v2184
        %v2196 = vsel %vm764, %v2154, 0
        %v2199 = vsel %vm764, %v2155, 0
        %v2202 = vsel %vm764, %v2156, 0
        %v2205 = vsel %vm764, %v2157, 0
        %v2208 = vsel %vm764, %v2158, 0
        %v2211 = vsel %vm764, %v2159, 0
        %v2214 = vsel %vm764, %v2160, 0
        %v2217 = vsel %vm764, %v2161, 0
        %v2220 = vsel %vm764, %v2162, 0
        %v2223 = vsel %vm764, %v2163, 0
        %v2226 = vsel %vm764, %v2164, 0
        %v2229 = vsel %vm764, %v2165, 0
        %v2232 = vsel %vm764, %v2166, 0
        %v2235 = vsel %vm764, %v2167, 0
        %v2238 = vsel %vm764, %v2168, 0
        %v2241 = vsel %vm764, %v2169, 0
        %2243 = vmatprep.subr.bf16.mxu0 %v2188
        %2244 = vmatpush1.bf16.msra.mxu0 %v2187
        %2245 = vmatprep.subr.bf16.mxu0 %v2190
        %2246 = vmatpush1.bf16.msra.mxu0 %v2189
        %2247 = vmatprep.subr.bf16.mxu0 0
        %2248 = vmatpush1.bf16.msra.mxu0 0
        %2249 = vmatprep.subr.bf16.mxu0 0
        %2250 = vmatpush1.bf16.msra.mxu0 0
        %2251 = vmatprep.subr.bf16.mxu0 0
        %2252 = vmatpush1.bf16.msra.mxu0 0
        %2253 = vmatprep.subr.bf16.mxu0 0
        %2254 = vmatpush1.bf16.msra.mxu0 0
        %2255 = vmatprep.subr.bf16.mxu0 0
        %2256 = vmatpush1.bf16.msra.mxu0 0
        %2257 = vmatprep.subr.bf16.mxu0 0
        %2258 = vmatpush1.bf16.msra.mxu0 0
        %2259 = vmatprep.subr.bf16.mxu0 0
        %2260 = vmatpush1.bf16.msra.mxu0 0
        %2261 = vmatprep.subr.bf16.mxu0 0
        %2262 = vmatpush1.bf16.msra.mxu0 0
        %2263 = vmatprep.subr.bf16.mxu0 0
        %2264 = vmatpush1.bf16.msra.mxu0 0
        %2265 = vmatprep.subr.bf16.mxu0 0
        %2266 = vmatpush1.bf16.msra.mxu0 0
        %2267 = vmatprep.subr.bf16.mxu0 0
        %2268 = vmatpush1.bf16.msra.mxu0 0
        %2269 = vmatprep.subr.bf16.mxu0 0
        %2270 = vmatpush1.bf16.msra.mxu0 0
        %2271 = vmatprep.subr.bf16.mxu0 0
        %2272 = vmatpush1.bf16.msra.mxu0 0
        %2273 = vmatprep.subr.bf16.mxu0 0
        %2274 = vmatpush1.bf16.msra.mxu0 0
        %2275 = vmatprep.mubr.bf16.mxu0 0
        %2276 = vmatmul.mubr.bf16.gmra.mrb[0].mxu0 %v2196
        %v2277 = vpop.f32.mrb[0].mxu0
        %v2278 = vadd.f32 0.0, %v2277
        %v2279 = vpop.f32.mrb[0].mxu0
        %v2280 = vadd.f32 0.0, %v2279
        %v2281 = vpop.f32.mrb[0].mxu0
        %v2282 = vadd.f32 0.0, %v2281
        %v2283 = vpop.f32.mrb[0].mxu0
        %v2284 = vadd.f32 0.0, %v2283
        %2285 = vmatprep.mubr.bf16.mxu0 0
        %2286 = vmatmul.mubr.bf16.gmra.mrb[0].mxu0 %v2199
        %v2287 = vpop.f32.mrb[0].mxu0
        %v2288 = vadd.f32 0.0, %v2287
        %v2289 = vpop.f32.mrb[0].mxu0
        %v2290 = vadd.f32 0.0, %v2289
        %v2291 = vpop.f32.mrb[0].mxu0
        %v2292 = vadd.f32 0.0, %v2291
        %v2293 = vpop.f32.mrb[0].mxu0
        %v2294 = vadd.f32 0.0, %v2293
        %2295 = vmatprep.mubr.bf16.mxu0 0
        %2296 = vmatmul.mubr.bf16.gmra.mrb[0].mxu0 %v2202
        %v2297 = vpop.f32.mrb[0].mxu0
        %v2298 = vadd.f32 0.0, %v2297
        %v2299 = vpop.f32.mrb[0].mxu0
        %v2300 = vadd.f32 0.0, %v2299
        %v2301 = vpop.f32.mrb[0].mxu0
        %v2302 = vadd.f32 0.0, %v2301
        %v2303 = vpop.f32.mrb[0].mxu0
        %v2304 = vadd.f32 0.0, %v2303
        %2305 = vmatprep.mubr.bf16.mxu0 0
        %2306 = vmatmul.mubr.bf16.gmra.mrb[0].mxu0 %v2205
        %v2307 = vpop.f32.mrb[0].mxu0
        %v2308 = vadd.f32 0.0, %v2307
        %v2309 = vpop.f32.mrb[0].mxu0
        %v2310 = vadd.f32 0.0, %v2309
        %v2311 = vpop.f32.mrb[0].mxu0
        %v2312 = vadd.f32 0.0, %v2311
        %v2313 = vpop.f32.mrb[0].mxu0
        %v2314 = vadd.f32 0.0, %v2313
        %2315 = vmatprep.mubr.bf16.mxu0 0
        %2316 = vmatmul.mubr.bf16.gmra.mrb[0].mxu0 %v2208
        %v2317 = vpop.f32.mrb[0].mxu0
        %v2318 = vadd.f32 0.0, %v2317
        %v2319 = vpop.f32.mrb[0].mxu0
        %v2320 = vadd.f32 0.0, %v2319
        %v2321 = vpop.f32.mrb[0].mxu0
        %v2322 = vadd.f32 0.0, %v2321
        %v2323 = vpop.f32.mrb[0].mxu0
        %v2324 = vadd.f32 0.0, %v2323
        %2325 = vmatprep.mubr.bf16.mxu0 0
        %2326 = vmatmul.mubr.bf16.gmra.mrb[0].mxu0 %v2211
        %v2327 = vpop.f32.mrb[0].mxu0
        %v2328 = vadd.f32 0.0, %v2327
        %v2329 = vpop.f32.mrb[0].mxu0
        %v2330 = vadd.f32 0.0, %v2329
        %v2331 = vpop.f32.mrb[0].mxu0
        %v2332 = vadd.f32 0.0, %v2331
        %v2333 = vpop.f32.mrb[0].mxu0
        %v2334 = vadd.f32 0.0, %v2333
        %2335 = vmatprep.mubr.bf16.mxu0 0
        %2336 = vmatmul.mubr.bf16.gmra.mrb[0].mxu0 %v2214
        %v2337 = vpop.f32.mrb[0].mxu0
        %v2338 = vadd.f32 0.0, %v2337
        %v2339 = vpop.f32.mrb[0].mxu0
        %v2340 = vadd.f32 0.0, %v2339
        %v2341 = vpop.f32.mrb[0].mxu0
        %v2342 = vadd.f32 0.0, %v2341
        %v2343 = vpop.f32.mrb[0].mxu0
        %v2344 = vadd.f32 0.0, %v2343
        %2345 = vmatprep.mubr.bf16.mxu0 0
        %2346 = vmatmul.mubr.bf16.gmra.mrb[0].mxu0 %v2217
        %v2347 = vpop.f32.mrb[0].mxu0
        %v2348 = vadd.f32 0.0, %v2347
        %v2349 = vpop.f32.mrb[0].mxu0
        %v2350 = vadd.f32 0.0, %v2349
        %v2351 = vpop.f32.mrb[0].mxu0
        %v2352 = vadd.f32 0.0, %v2351
        %v2353 = vpop.f32.mrb[0].mxu0
        %v2354 = vadd.f32 0.0, %v2353
        %2355 = vmatprep.mubr.bf16.mxu0 0
        %2356 = vmatmul.mubr.bf16.gmra.mrb[0].mxu0 %v2220
        %v2357 = vpop.f32.mrb[0].mxu0
        %v2358 = vadd.f32 0.0, %v2357
        %v2359 = vpop.f32.mrb[0].mxu0
        %v2360 = vadd.f32 0.0, %v2359
        %v2361 = vpop.f32.mrb[0].mxu0
        %v2362 = vadd.f32 0.0, %v2361
        %v2363 = vpop.f32.mrb[0].mxu0
        %v2364 = vadd.f32 0.0, %v2363
        %2365 = vmatprep.mubr.bf16.mxu0 0
        %2366 = vmatmul.mubr.bf16.gmra.mrb[0].mxu0 %v2223
        %v2367 = vpop.f32.mrb[0].mxu0
        %v2368 = vadd.f32 0.0, %v2367
        %v2369 = vpop.f32.mrb[0].mxu0
        %v2370 = vadd.f32 0.0, %v2369
        %v2371 = vpop.f32.mrb[0].mxu0
        %v2372 = vadd.f32 0.0, %v2371
        %v2373 = vpop.f32.mrb[0].mxu0
        %v2374 = vadd.f32 0.0, %v2373
        %2375 = vmatprep.mubr.bf16.mxu0 0
        %2376 = vmatmul.mubr.bf16.gmra.mrb[0].mxu0 %v2226
        %v2377 = vpop.f32.mrb[0].mxu0
        %v2378 = vadd.f32 0.0, %v2377
        %v2379 = vpop.f32.mrb[0].mxu0
        %v2380 = vadd.f32 0.0, %v2379
        %v2381 = vpop.f32.mrb[0].mxu0
        %v2382 = vadd.f32 0.0, %v2381
        %v2383 = vpop.f32.mrb[0].mxu0
        %v2384 = vadd.f32 0.0, %v2383
        %2385 = vmatprep.mubr.bf16.mxu0 0
        %2386 = vmatmul.mubr.bf16.gmra.mrb[0].mxu0 %v2229
        %v2387 = vpop.f32.mrb[0].mxu0
        %v2388 = vadd.f32 0.0, %v2387
        %v2389 = vpop.f32.mrb[0].mxu0
        %v2390 = vadd.f32 0.0, %v2389
        %v2391 = vpop.f32.mrb[0].mxu0
        %v2392 = vadd.f32 0.0, %v2391
        %v2393 = vpop.f32.mrb[0].mxu0
        %v2394 = vadd.f32 0.0, %v2393
        %2395 = vmatprep.mubr.bf16.mxu0 0
        %2396 = vmatmul.mubr.bf16.gmra.mrb[0].mxu0 %v2232
        %v2397 = vpop.f32.mrb[0].mxu0
        %v2398 = vadd.f32 0.0, %v2397
        %v2399 = vpop.f32.mrb[0].mxu0
        %v2400 = vadd.f32 0.0, %v2399
        %v2401 = vpop.f32.mrb[0].mxu0
        %v2402 = vadd.f32 0.0, %v2401
        %v2403 = vpop.f32.mrb[0].mxu0
        %v2404 = vadd.f32 0.0, %v2403
        %2405 = vmatprep.mubr.bf16.mxu0 0
        %2406 = vmatmul.mubr.bf16.gmra.mrb[0].mxu0 %v2235
        %v2407 = vpop.f32.mrb[0].mxu0
        %v2408 = vadd.f32 0.0, %v2407
        %v2409 = vpop.f32.mrb[0].mxu0
        %v2410 = vadd.f32 0.0, %v2409
        %v2411 = vpop.f32.mrb[0].mxu0
        %v2412 = vadd.f32 0.0, %v2411
        %v2413 = vpop.f32.mrb[0].mxu0
        %v2414 = vadd.f32 0.0, %v2413
        %2415 = vmatprep.mubr.bf16.mxu0 0
        %2416 = vmatmul.mubr.bf16.gmra.mrb[0].mxu0 %v2238
        %v2417 = vpop.f32.mrb[0].mxu0
        %v2418 = vadd.f32 0.0, %v2417
        %v2419 = vpop.f32.mrb[0].mxu0
        %v2420 = vadd.f32 0.0, %v2419
        %v2421 = vpop.f32.mrb[0].mxu0
        %v2422 = vadd.f32 0.0, %v2421
        %v2423 = vpop.f32.mrb[0].mxu0
        %v2424 = vadd.f32 0.0, %v2423
        %2425 = vmatprep.mubr.bf16.mxu0 0
        %2426 = vmatmul.mubr.bf16.gmra.mrb[0].mxu0 %v2241
        %v2427 = vpop.f32.mrb[0].mxu0
        %v2428 = vadd.f32 0.0, %v2427
        %v2429 = vpop.f32.mrb[0].mxu0
        %v2430 = vadd.f32 0.0, %v2429
        %v2431 = vpop.f32.mrb[0].mxu0
        %v2432 = vadd.f32 0.0, %v2431
        %v2433 = vpop.f32.mrb[0].mxu0
        %v2434 = vadd.f32 0.0, %v2433
        %2435 = vdwg.mxu0
        %v2436 = vadd.f32 %v2025, %v2278
        %v2437 = vadd.f32 %v2026, %v2280
        %v2438 = vadd.f32 %v2027, %v2282
        %v2439 = vadd.f32 %v2028, %v2284
        %v2440 = vadd.f32 %v2029, %v2288
        %v2441 = vadd.f32 %v2030, %v2290
        %v2442 = vadd.f32 %v2031, %v2292
        %v2443 = vadd.f32 %v2032, %v2294
        %v2444 = vadd.f32 %v2033, %v2298
        %v2445 = vadd.f32 %v2034, %v2300
        %v2446 = vadd.f32 %v2035, %v2302
        %v2447 = vadd.f32 %v2036, %v2304
        %v2448 = vadd.f32 %v2037, %v2308
        %v2449 = vadd.f32 %v2038, %v2310
        %v2450 = vadd.f32 %v2039, %v2312
        %v2451 = vadd.f32 %v2040, %v2314
        %v2452 = vadd.f32 %v2041, %v2318
        %v2453 = vadd.f32 %v2042, %v2320
        %v2454 = vadd.f32 %v2043, %v2322
        %v2455 = vadd.f32 %v2044, %v2324
        %v2456 = vadd.f32 %v2045, %v2328
        %v2457 = vadd.f32 %v2046, %v2330
        %v2458 = vadd.f32 %v2047, %v2332
        %v2459 = vadd.f32 %v2048, %v2334
        %v2460 = vadd.f32 %v2049, %v2338
        %v2461 = vadd.f32 %v2050, %v2340
        %v2462 = vadd.f32 %v2051, %v2342
        %v2463 = vadd.f32 %v2052, %v2344
        %v2464 = vadd.f32 %v2053, %v2348
        %v2465 = vadd.f32 %v2054, %v2350
        %v2466 = vadd.f32 %v2055, %v2352
        %v2467 = vadd.f32 %v2056, %v2354
        %v2468 = vadd.f32 %v2057, %v2358
        %v2469 = vadd.f32 %v2058, %v2360
        %v2470 = vadd.f32 %v2059, %v2362
        %v2471 = vadd.f32 %v2060, %v2364
        %v2472 = vadd.f32 %v2061, %v2368
        %v2473 = vadd.f32 %v2062, %v2370
        %v2474 = vadd.f32 %v2063, %v2372
        %v2475 = vadd.f32 %v2064, %v2374
        %v2476 = vadd.f32 %v2065, %v2378
        %v2477 = vadd.f32 %v2066, %v2380
        %v2478 = vadd.f32 %v2067, %v2382
        %v2479 = vadd.f32 %v2068, %v2384
        %v2480 = vadd.f32 %v2069, %v2388
        %v2481 = vadd.f32 %v2070, %v2390
        %v2482 = vadd.f32 %v2071, %v2392
        %v2483 = vadd.f32 %v2072, %v2394
        %v2484 = vadd.f32 %v2073, %v2398
        %v2485 = vadd.f32 %v2074, %v2400
        %v2486 = vadd.f32 %v2075, %v2402
        %v2487 = vadd.f32 %v2076, %v2404
        %v2488 = vadd.f32 %v2077, %v2408
        %v2489 = vadd.f32 %v2078, %v2410
        %v2490 = vadd.f32 %v2079, %v2412
        %v2491 = vadd.f32 %v2080, %v2414
        %v2492 = vadd.f32 %v2081, %v2418
        %v2493 = vadd.f32 %v2082, %v2420
        %v2494 = vadd.f32 %v2083, %v2422
        %v2495 = vadd.f32 %v2084, %v2424
        %v2496 = vadd.f32 %v2085, %v2428
        %v2497 = vadd.f32 %v2086, %v2430
        %v2498 = vadd.f32 %v2087, %v2432
        %v2499 = vadd.f32 %v2088, %v2434
        %v2500 = vld [vmem:[%s2] sm:$0x3]
        %v2502 = vlaneseq
        %v2503 = vshrl.u32 %v2502, 7
        %v2504 = vsub.s32 0, %v2503
        %v2505 = vrot.slane %v2500, %v2504
        %v2506 = vlaneseq
        %v2507 = vshrl.u32 %v2506, 7
        %v2508 = vsub.s32 1, %v2507
        %v2509 = vrot.slane %v2500, %v2508
        %v2512 = vadd.f32 %v2436, %v2505
        %v2513 = vadd.f32 %v2437, %v2509
        %v2514 = vadd.f32 %v2438, %v2505
        %v2515 = vadd.f32 %v2439, %v2509
        %v2516 = vadd.f32 %v2440, %v2505
        %v2517 = vadd.f32 %v2441, %v2509
        %v2518 = vadd.f32 %v2442, %v2505
        %v2519 = vadd.f32 %v2443, %v2509
        %v2520 = vadd.f32 %v2444, %v2505
        %v2521 = vadd.f32 %v2445, %v2509
        %v2522 = vadd.f32 %v2446, %v2505
        %v2523 = vadd.f32 %v2447, %v2509
        %v2524 = vadd.f32 %v2448, %v2505
        %v2525 = vadd.f32 %v2449, %v2509
        %v2526 = vadd.f32 %v2450, %v2505
        %v2527 = vadd.f32 %v2451, %v2509
        %v2528 = vadd.f32 %v2452, %v2505
        %v2529 = vadd.f32 %v2453, %v2509
        %v2530 = vadd.f32 %v2454, %v2505
        %v2531 = vadd.f32 %v2455, %v2509
        %v2532 = vadd.f32 %v2456, %v2505
        %v2533 = vadd.f32 %v2457, %v2509
        %v2534 = vadd.f32 %v2458, %v2505
        %v2535 = vadd.f32 %v2459, %v2509
        %v2536 = vadd.f32 %v2460, %v2505
        %v2537 = vadd.f32 %v2461, %v2509
        %v2538 = vadd.f32 %v2462, %v2505
        %v2539 = vadd.f32 %v2463, %v2509
        %v2540 = vadd.f32 %v2464, %v2505
        %v2541 = vadd.f32 %v2465, %v2509
        %v2542 = vadd.f32 %v2466, %v2505
        %v2543 = vadd.f32 %v2467, %v2509
        %v2544 = vadd.f32 %v2468, %v2505
        %v2545 = vadd.f32 %v2469, %v2509
        %v2546 = vadd.f32 %v2470, %v2505
        %v2547 = vadd.f32 %v2471, %v2509
        %v2548 = vadd.f32 %v2472, %v2505
        %v2549 = vadd.f32 %v2473, %v2509
        %v2550 = vadd.f32 %v2474, %v2505
        %v2551 = vadd.f32 %v2475, %v2509
        %v2552 = vadd.f32 %v2476, %v2505
        %v2553 = vadd.f32 %v2477, %v2509
        %v2554 = vadd.f32 %v2478, %v2505
        %v2555 = vadd.f32 %v2479, %v2509
        %v2556 = vadd.f32 %v2480, %v2505
        %v2557 = vadd.f32 %v2481, %v2509
        %v2558 = vadd.f32 %v2482, %v2505
        %v2559 = vadd.f32 %v2483, %v2509
        %v2560 = vadd.f32 %v2484, %v2505
        %v2561 = vadd.f32 %v2485, %v2509
        %v2562 = vadd.f32 %v2486, %v2505
        %v2563 = vadd.f32 %v2487, %v2509
        %v2564 = vadd.f32 %v2488, %v2505
        %v2565 = vadd.f32 %v2489, %v2509
        %v2566 = vadd.f32 %v2490, %v2505
        %v2567 = vadd.f32 %v2491, %v2509
        %v2568 = vadd.f32 %v2492, %v2505
        %v2569 = vadd.f32 %v2493, %v2509
        %v2570 = vadd.f32 %v2494, %v2505
        %v2571 = vadd.f32 %v2495, %v2509
        %v2572 = vadd.f32 %v2496, %v2505
        %v2573 = vadd.f32 %v2497, %v2509
        %v2574 = vadd.f32 %v2498, %v2505
        %v2575 = vadd.f32 %v2499, %v2509
        %v2576 = vmax.f32 %v2512, 0.0
        %v2577 = vmax.f32 %v2513, 0.0
        %v2578 = vmax.f32 %v2514, 0.0
        %v2579 = vmax.f32 %v2515, 0.0
        %v2580 = vmax.f32 %v2516, 0.0
        %v2581 = vmax.f32 %v2517, 0.0
        %v2582 = vmax.f32 %v2518, 0.0
        %v2583 = vmax.f32 %v2519, 0.0
        %v2584 = vmax.f32 %v2520, 0.0
        %v2585 = vmax.f32 %v2521, 0.0
        %v2586 = vmax.f32 %v2522, 0.0
        %v2587 = vmax.f32 %v2523, 0.0
        %v2588 = vmax.f32 %v2524, 0.0
        %v2589 = vmax.f32 %v2525, 0.0
        %v2590 = vmax.f32 %v2526, 0.0
        %v2591 = vmax.f32 %v2527, 0.0
        %v2592 = vmax.f32 %v2528, 0.0
        %v2593 = vmax.f32 %v2529, 0.0
        %v2594 = vmax.f32 %v2530, 0.0
        %v2595 = vmax.f32 %v2531, 0.0
        %v2596 = vmax.f32 %v2532, 0.0
        %v2597 = vmax.f32 %v2533, 0.0
        %v2598 = vmax.f32 %v2534, 0.0
        %v2599 = vmax.f32 %v2535, 0.0
        %v2600 = vmax.f32 %v2536, 0.0
        %v2601 = vmax.f32 %v2537, 0.0
        %v2602 = vmax.f32 %v2538, 0.0
        %v2603 = vmax.f32 %v2539, 0.0
        %v2604 = vmax.f32 %v2540, 0.0
        %v2605 = vmax.f32 %v2541, 0.0
        %v2606 = vmax.f32 %v2542, 0.0
        %v2607 = vmax.f32 %v2543, 0.0
        %v2608 = vmax.f32 %v2544, 0.0
        %v2609 = vmax.f32 %v2545, 0.0
        %v2610 = vmax.f32 %v2546, 0.0
        %v2611 = vmax.f32 %v2547, 0.0
        %v2612 = vmax.f32 %v2548, 0.0
        %v2613 = vmax.f32 %v2549, 0.0
        %v2614 = vmax.f32 %v2550, 0.0
        %v2615 = vmax.f32 %v2551, 0.0
        %v2616 = vmax.f32 %v2552, 0.0
        %v2617 = vmax.f32 %v2553, 0.0
        %v2618 = vmax.f32 %v2554, 0.0
        %v2619 = vmax.f32 %v2555, 0.0
        %v2620 = vmax.f32 %v2556, 0.0
        %v2621 = vmax.f32 %v2557, 0.0
        %v2622 = vmax.f32 %v2558, 0.0
        %v2623 = vmax.f32 %v2559, 0.0
        %v2624 = vmax.f32 %v2560, 0.0
        %v2625 = vmax.f32 %v2561, 0.0
        %v2626 = vmax.f32 %v2562, 0.0
        %v2627 = vmax.f32 %v2563, 0.0
        %v2628 = vmax.f32 %v2564, 0.0
        %v2629 = vmax.f32 %v2565, 0.0
        %v2630 = vmax.f32 %v2566, 0.0
        %v2631 = vmax.f32 %v2567, 0.0
        %v2632 = vmax.f32 %v2568, 0.0
        %v2633 = vmax.f32 %v2569, 0.0
        %v2634 = vmax.f32 %v2570, 0.0
        %v2635 = vmax.f32 %v2571, 0.0
        %v2636 = vmax.f32 %v2572, 0.0
        %v2637 = vmax.f32 %v2573, 0.0
        %v2638 = vmax.f32 %v2574, 0.0
        %v2639 = vmax.f32 %v2575, 0.0
        %v2640 = vpack.c.bf16 %v2578, %v2576
        %v2641 = vpack.c.bf16 %v2579, %v2577
        %v2642 = vpack.c.bf16 %v2582, %v2580
        %v2643 = vpack.c.bf16 %v2583, %v2581
        %v2644 = vpack.c.bf16 %v2586, %v2584
        %v2645 = vpack.c.bf16 %v2587, %v2585
        %v2646 = vpack.c.bf16 %v2590, %v2588
        %v2647 = vpack.c.bf16 %v2591, %v2589
        %v2648 = vpack.c.bf16 %v2594, %v2592
        %v2649 = vpack.c.bf16 %v2595, %v2593
        %v2650 = vpack.c.bf16 %v2598, %v2596
        %v2651 = vpack.c.bf16 %v2599, %v2597
        %v2652 = vpack.c.bf16 %v2602, %v2600
        %v2653 = vpack.c.bf16 %v2603, %v2601
        %v2654 = vpack.c.bf16 %v2606, %v2604
        %v2655 = vpack.c.bf16 %v2607, %v2605
        %v2656 = vpack.c.bf16 %v2610, %v2608
        %v2657 = vpack.c.bf16 %v2611, %v2609
        %v2658 = vpack.c.bf16 %v2614, %v2612
        %v2659 = vpack.c.bf16 %v2615, %v2613
        %v2660 = vpack.c.bf16 %v2618, %v2616
        %v2661 = vpack.c.bf16 %v2619, %v2617
        %v2662 = vpack.c.bf16 %v2622, %v2620
        %v2663 = vpack.c.bf16 %v2623, %v2621
        %v2664 = vpack.c.bf16 %v2626, %v2624
        %v2665 = vpack.c.bf16 %v2627, %v2625
        %v2666 = vpack.c.bf16 %v2630, %v2628
        %v2667 = vpack.c.bf16 %v2631, %v2629
        %v2668 = vpack.c.bf16 %v2634, %v2632
        %v2669 = vpack.c.bf16 %v2635, %v2633
        %v2670 = vpack.c.bf16 %v2638, %v2636
        %v2671 = vpack.c.bf16 %v2639, %v2637
        %v2672 = vld [vmem:[%s3] sm:$0xff]
        %v2673 = vld [vmem:[%s3 + $0x8] sm:$0xff]
        %v2674 = vld [vmem:[%s3 + $0x10] sm:$0xff]
        %v2675 = vld [vmem:[%s3 + $0x18] sm:$0xff]
        %v2676 = vld [vmem:[%s3 + $0x20] sm:$0xff]
        %v2677 = vld [vmem:[%s3 + $0x28] sm:$0xff]
        %v2678 = vld [vmem:[%s3 + $0x30] sm:$0xff]
        %v2679 = vld [vmem:[%s3 + $0x38] sm:$0xff]
        %v2680 = vld [vmem:[%s3 + $0x40] sm:$0xff]
        %v2681 = vld [vmem:[%s3 + $0x48] sm:$0xff]
        %v2682 = vld [vmem:[%s3 + $0x50] sm:$0xff]
        %v2683 = vld [vmem:[%s3 + $0x58] sm:$0xff]
        %v2684 = vld [vmem:[%s3 + $0x60] sm:$0xff]
        %v2685 = vld [vmem:[%s3 + $0x68] sm:$0xff]
        %v2700 = vunpack.c.l.b16 %v2672
        %v2701 = vunpack.c.h.b16 %v2672
        %v2702 = vunpack.c.l.b16 %v2673
        %v2703 = vunpack.c.h.b16 %v2673
        %v2704 = vunpack.c.l.b16 %v2674
        %v2705 = vunpack.c.h.b16 %v2674
        %v2706 = vunpack.c.l.b16 %v2675
        %v2707 = vunpack.c.h.b16 %v2675
        %v2708 = vunpack.c.l.b16 %v2676
        %v2709 = vunpack.c.h.b16 %v2676
        %v2710 = vunpack.c.l.b16 %v2677
        %v2711 = vunpack.c.h.b16 %v2677
        %v2712 = vunpack.c.l.b16 %v2678
        %v2713 = vunpack.c.h.b16 %v2678
        %v2714 = vunpack.c.l.b16 %v2679
        %v2715 = vunpack.c.h.b16 %v2679
        %v2716 = vunpack.c.l.b16 %v2680
        %v2717 = vunpack.c.h.b16 %v2680
        %v2718 = vunpack.c.l.b16 %v2681
        %v2719 = vunpack.c.h.b16 %v2681
        %v2720 = vunpack.c.l.b16 %v2682
        %v2721 = vunpack.c.h.b16 %v2682
        %v2722 = vunpack.c.l.b16 %v2683
        %v2723 = vunpack.c.h.b16 %v2683
        %v2724 = vunpack.c.l.b16 %v2684
        %v2725 = vunpack.c.h.b16 %v2684
        %v2726 = vunpack.c.l.b16 %v2685
        %v2727 = vunpack.c.h.b16 %v2685
        %v2728 = vpack.c.b16 %v2702, %v2700
        %v2729 = vpack.c.b16 %v2703, %v2701
        %v2730 = vpack.c.b16 %v2706, %v2704
        %v2731 = vpack.c.b16 %v2707, %v2705
        %v2732 = vpack.c.b16 %v2710, %v2708
        %v2733 = vpack.c.b16 %v2711, %v2709
        %v2734 = vpack.c.b16 %v2714, %v2712
        %v2735 = vpack.c.b16 %v2715, %v2713
        %v2736 = vpack.c.b16 %v2718, %v2716
        %v2737 = vpack.c.b16 %v2719, %v2717
        %v2738 = vpack.c.b16 %v2722, %v2720
        %v2739 = vpack.c.b16 %v2723, %v2721
        %v2740 = vpack.c.b16 %v2726, %v2724
        %v2741 = vpack.c.b16 %v2727, %v2725
        %2756 = vmatprep.subr.bf16.mxu0 %v2641
        %2757 = vmatpush1.bf16.msra.mxu0 %v2640
        %2758 = vmatprep.subr.bf16.mxu0 %v2643
        %2759 = vmatpush1.bf16.msra.mxu0 %v2642
        %2760 = vmatprep.subr.bf16.mxu0 %v2645
        %2761 = vmatpush1.bf16.msra.mxu0 %v2644
        %2762 = vmatprep.subr.bf16.mxu0 %v2647
        %2763 = vmatpush1.bf16.msra.mxu0 %v2646
        %2764 = vmatprep.subr.bf16.mxu0 %v2649
        %2765 = vmatpush1.bf16.msra.mxu0 %v2648
        %2766 = vmatprep.subr.bf16.mxu0 %v2651
        %2767 = vmatpush1.bf16.msra.mxu0 %v2650
        %2768 = vmatprep.subr.bf16.mxu0 %v2653
        %2769 = vmatpush1.bf16.msra.mxu0 %v2652
        %2770 = vmatprep.subr.bf16.mxu0 %v2655
        %2771 = vmatpush1.bf16.msra.mxu0 %v2654
        %2772 = vmatprep.subr.bf16.mxu0 %v2657
        %2773 = vmatpush1.bf16.msra.mxu0 %v2656
        %2774 = vmatprep.subr.bf16.mxu0 %v2659
        %2775 = vmatpush1.bf16.msra.mxu0 %v2658
        %2776 = vmatprep.subr.bf16.mxu0 %v2661
        %2777 = vmatpush1.bf16.msra.mxu0 %v2660
        %2778 = vmatprep.subr.bf16.mxu0 %v2663
        %2779 = vmatpush1.bf16.msra.mxu0 %v2662
        %2780 = vmatprep.subr.bf16.mxu0 %v2665
        %2781 = vmatpush1.bf16.msra.mxu0 %v2664
        %2782 = vmatprep.subr.bf16.mxu0 %v2667
        %2783 = vmatpush1.bf16.msra.mxu0 %v2666
        %2784 = vmatprep.subr.bf16.mxu0 %v2669
        %2785 = vmatpush1.bf16.msra.mxu0 %v2668
        %2786 = vmatprep.subr.bf16.mxu0 %v2671
        %2787 = vmatpush1.bf16.msra.mxu0 %v2670
        %2788 = vmatprep.mubr.bf16.mxu0 %v2729
        %2789 = vmatmul.mubr.bf16.gmra.mrb[0].mxu0 %v2728
        %v2790 = vpop.f32.mrb[0].mxu0
        %v2791 = vadd.f32 0.0, %v2790
        %v2792 = vpop.f32.mrb[0].mxu0
        %v2793 = vadd.f32 0.0, %v2792
        %v2794 = vpop.f32.mrb[0].mxu0
        %v2795 = vadd.f32 0.0, %v2794
        %v2796 = vpop.f32.mrb[0].mxu0
        %v2797 = vadd.f32 0.0, %v2796
        %2798 = vmatprep.mubr.bf16.mxu0 %v2731
        %2799 = vmatmul.mubr.bf16.gmra.mrb[0].mxu0 %v2730
        %v2800 = vpop.f32.mrb[0].mxu0
        %v2801 = vadd.f32 0.0, %v2800
        %v2802 = vpop.f32.mrb[0].mxu0
        %v2803 = vadd.f32 0.0, %v2802
        %v2804 = vpop.f32.mrb[0].mxu0
        %v2805 = vadd.f32 0.0, %v2804
        %v2806 = vpop.f32.mrb[0].mxu0
        %v2807 = vadd.f32 0.0, %v2806
        %2808 = vmatprep.mubr.bf16.mxu0 %v2733
        %2809 = vmatmul.mubr.bf16.gmra.mrb[0].mxu0 %v2732
        %v2810 = vpop.f32.mrb[0].mxu0
        %v2811 = vadd.f32 0.0, %v2810
        %v2812 = vpop.f32.mrb[0].mxu0
        %v2813 = vadd.f32 0.0, %v2812
        %v2814 = vpop.f32.mrb[0].mxu0
        %v2815 = vadd.f32 0.0, %v2814
        %v2816 = vpop.f32.mrb[0].mxu0
        %v2817 = vadd.f32 0.0, %v2816
        %2818 = vmatprep.mubr.bf16.mxu0 %v2735
        %2819 = vmatmul.mubr.bf16.gmra.mrb[0].mxu0 %v2734
        %v2820 = vpop.f32.mrb[0].mxu0
        %v2821 = vadd.f32 0.0, %v2820
        %v2822 = vpop.f32.mrb[0].mxu0
        %v2823 = vadd.f32 0.0, %v2822
        %v2824 = vpop.f32.mrb[0].mxu0
        %v2825 = vadd.f32 0.0, %v2824
        %v2826 = vpop.f32.mrb[0].mxu0
        %v2827 = vadd.f32 0.0, %v2826
        %2828 = vmatprep.mubr.bf16.mxu0 %v2737
        %2829 = vmatmul.mubr.bf16.gmra.mrb[0].mxu0 %v2736
        %v2830 = vpop.f32.mrb[0].mxu0
        %v2831 = vadd.f32 0.0, %v2830
        %v2832 = vpop.f32.mrb[0].mxu0
        %v2833 = vadd.f32 0.0, %v2832
        %v2834 = vpop.f32.mrb[0].mxu0
        %v2835 = vadd.f32 0.0, %v2834
        %v2836 = vpop.f32.mrb[0].mxu0
        %v2837 = vadd.f32 0.0, %v2836
        %2838 = vmatprep.mubr.bf16.mxu0 %v2739
        %2839 = vmatmul.mubr.bf16.gmra.mrb[0].mxu0 %v2738
        %v2840 = vpop.f32.mrb[0].mxu0
        %v2841 = vadd.f32 0.0, %v2840
        %v2842 = vpop.f32.mrb[0].mxu0
        %v2843 = vadd.f32 0.0, %v2842
        %v2844 = vpop.f32.mrb[0].mxu0
        %v2845 = vadd.f32 0.0, %v2844
        %v2846 = vpop.f32.mrb[0].mxu0
        %v2847 = vadd.f32 0.0, %v2846
        %2848 = vmatprep.mubr.bf16.mxu0 %v2741
        %2849 = vmatmul.mubr.bf16.gmra.mrb[0].mxu0 %v2740
        %v2850 = vpop.f32.mrb[0].mxu0
        %v2851 = vadd.f32 0.0, %v2850
        %v2852 = vpop.f32.mrb[0].mxu0
        %v2853 = vadd.f32 0.0, %v2852
        %v2854 = vpop.f32.mrb[0].mxu0
        %v2855 = vadd.f32 0.0, %v2854
        %v2856 = vpop.f32.mrb[0].mxu0
        %v2857 = vadd.f32 0.0, %v2856
        %2858 = vdwg.mxu0
        %v2859 = vld [vmem:[%s4] sm:$0xff]
        %v2860 = vld [vmem:[%s4 + $0x8] sm:$0xff]
        %v2861 = vld [vmem:[%s4 + $0x10] sm:$0xff]
        %v2862 = vld [vmem:[%s4 + $0x18] sm:$0xff]
        %v2863 = vld [vmem:[%s4 + $0x20] sm:$0xff]
        %v2864 = vld [vmem:[%s4 + $0x28] sm:$0xff]
        %v2865 = vld [vmem:[%s4 + $0x30] sm:$0xff]
        %v2866 = vld [vmem:[%s4 + $0x38] sm:$0xff]
        %v2867 = vld [vmem:[%s4 + $0x40] sm:$0xff]
        %v2868 = vld [vmem:[%s4 + $0x48] sm:$0xff]
        %v2869 = vld [vmem:[%s4 + $0x50] sm:$0xff]
        %v2870 = vld [vmem:[%s4 + $0x58] sm:$0xff]
        %v2871 = vld [vmem:[%s4 + $0x60] sm:$0xff]
        %v2872 = vld [vmem:[%s4 + $0x68] sm:$0xff]
        %v2887 = vunpack.c.l.b16 %v2859
        %v2888 = vunpack.c.h.b16 %v2859
        %v2889 = vunpack.c.l.b16 %v2860
        %v2890 = vunpack.c.h.b16 %v2860
        %v2891 = vunpack.c.l.b16 %v2861
        %v2892 = vunpack.c.h.b16 %v2861
        %v2893 = vunpack.c.l.b16 %v2862
        %v2894 = vunpack.c.h.b16 %v2862
        %v2895 = vunpack.c.l.b16 %v2863
        %v2896 = vunpack.c.h.b16 %v2863
        %v2897 = vunpack.c.l.b16 %v2864
        %v2898 = vunpack.c.h.b16 %v2864
        %v2899 = vunpack.c.l.b16 %v2865
        %v2900 = vunpack.c.h.b16 %v2865
        %v2901 = vunpack.c.l.b16 %v2866
        %v2902 = vunpack.c.h.b16 %v2866
        %v2903 = vunpack.c.l.b16 %v2867
        %v2904 = vunpack.c.h.b16 %v2867
        %v2905 = vunpack.c.l.b16 %v2868
        %v2906 = vunpack.c.h.b16 %v2868
        %v2907 = vunpack.c.l.b16 %v2869
        %v2908 = vunpack.c.h.b16 %v2869
        %v2909 = vunpack.c.l.b16 %v2870
        %v2910 = vunpack.c.h.b16 %v2870
        %v2911 = vunpack.c.l.b16 %v2871
        %v2912 = vunpack.c.h.b16 %v2871
        %v2913 = vunpack.c.l.b16 %v2872
        %v2914 = vunpack.c.h.b16 %v2872
        %v2915 = vpack.c.b16 %v2889, %v2887
        %v2916 = vpack.c.b16 %v2890, %v2888
        %v2917 = vpack.c.b16 %v2893, %v2891
        %v2918 = vpack.c.b16 %v2894, %v2892
        %v2919 = vpack.c.b16 %v2897, %v2895
        %v2920 = vpack.c.b16 %v2898, %v2896
        %v2921 = vpack.c.b16 %v2901, %v2899
        %v2922 = vpack.c.b16 %v2902, %v2900
        %v2923 = vpack.c.b16 %v2905, %v2903
        %v2924 = vpack.c.b16 %v2906, %v2904
        %v2925 = vpack.c.b16 %v2909, %v2907
        %v2926 = vpack.c.b16 %v2910, %v2908
        %v2927 = vpack.c.b16 %v2913, %v2911
        %v2928 = vpack.c.b16 %v2914, %v2912
        %2943 = vmatprep.subr.bf16.mxu0 %v2641
        %2944 = vmatpush1.bf16.msra.mxu0 %v2640
        %2945 = vmatprep.subr.bf16.mxu0 %v2643
        %2946 = vmatpush1.bf16.msra.mxu0 %v2642
        %2947 = vmatprep.subr.bf16.mxu0 %v2645
        %2948 = vmatpush1.bf16.msra.mxu0 %v2644
        %2949 = vmatprep.subr.bf16.mxu0 %v2647
        %2950 = vmatpush1.bf16.msra.mxu0 %v2646
        %2951 = vmatprep.subr.bf16.mxu0 %v2649
        %2952 = vmatpush1.bf16.msra.mxu0 %v2648
        %2953 = vmatprep.subr.bf16.mxu0 %v2651
        %2954 = vmatpush1.bf16.msra.mxu0 %v2650
        %2955 = vmatprep.subr.bf16.mxu0 %v2653
        %2956 = vmatpush1.bf16.msra.mxu0 %v2652
        %2957 = vmatprep.subr.bf16.mxu0 %v2655
        %2958 = vmatpush1.bf16.msra.mxu0 %v2654
        %2959 = vmatprep.subr.bf16.mxu0 %v2657
        %2960 = vmatpush1.bf16.msra.mxu0 %v2656
        %2961 = vmatprep.subr.bf16.mxu0 %v2659
        %2962 = vmatpush1.bf16.msra.mxu0 %v2658
        %2963 = vmatprep.subr.bf16.mxu0 %v2661
        %2964 = vmatpush1.bf16.msra.mxu0 %v2660
        %2965 = vmatprep.subr.bf16.mxu0 %v2663
        %2966 = vmatpush1.bf16.msra.mxu0 %v2662
        %2967 = vmatprep.subr.bf16.mxu0 %v2665
        %2968 = vmatpush1.bf16.msra.mxu0 %v2664
        %2969 = vmatprep.subr.bf16.mxu0 %v2667
        %2970 = vmatpush1.bf16.msra.mxu0 %v2666
        %2971 = vmatprep.subr.bf16.mxu0 %v2669
        %2972 = vmatpush1.bf16.msra.mxu0 %v2668
        %2973 = vmatprep.subr.bf16.mxu0 %v2671
        %2974 = vmatpush1.bf16.msra.mxu0 %v2670
        %2975 = vmatprep.mubr.bf16.mxu0 %v2916
        %2976 = vmatmul.mubr.bf16.gmra.mrb[0].mxu0 %v2915
        %v2977 = vpop.f32.mrb[0].mxu0
        %v2978 = vadd.f32 0.0, %v2977
        %v2979 = vpop.f32.mrb[0].mxu0
        %v2980 = vadd.f32 0.0, %v2979
        %v2981 = vpop.f32.mrb[0].mxu0
        %v2982 = vadd.f32 0.0, %v2981
        %v2983 = vpop.f32.mrb[0].mxu0
        %v2984 = vadd.f32 0.0, %v2983
        %2985 = vmatprep.mubr.bf16.mxu0 %v2918
        %2986 = vmatmul.mubr.bf16.gmra.mrb[0].mxu0 %v2917
        %v2987 = vpop.f32.mrb[0].mxu0
        %v2988 = vadd.f32 0.0, %v2987
        %v2989 = vpop.f32.mrb[0].mxu0
        %v2990 = vadd.f32 0.0, %v2989
        %v2991 = vpop.f32.mrb[0].mxu0
        %v2992 = vadd.f32 0.0, %v2991
        %v2993 = vpop.f32.mrb[0].mxu0
        %v2994 = vadd.f32 0.0, %v2993
        %2995 = vmatprep.mubr.bf16.mxu0 %v2920
        %2996 = vmatmul.mubr.bf16.gmra.mrb[0].mxu0 %v2919
        %v2997 = vpop.f32.mrb[0].mxu0
        %v2998 = vadd.f32 0.0, %v2997
        %v2999 = vpop.f32.mrb[0].mxu0
        %v3000 = vadd.f32 0.0, %v2999
        %v3001 = vpop.f32.mrb[0].mxu0
        %v3002 = vadd.f32 0.0, %v3001
        %v3003 = vpop.f32.mrb[0].mxu0
        %v3004 = vadd.f32 0.0, %v3003
        %3005 = vmatprep.mubr.bf16.mxu0 %v2922
        %3006 = vmatmul.mubr.bf16.gmra.mrb[0].mxu0 %v2921
        %v3007 = vpop.f32.mrb[0].mxu0
        %v3008 = vadd.f32 0.0, %v3007
        %v3009 = vpop.f32.mrb[0].mxu0
        %v3010 = vadd.f32 0.0, %v3009
        %v3011 = vpop.f32.mrb[0].mxu0
        %v3012 = vadd.f32 0.0, %v3011
        %v3013 = vpop.f32.mrb[0].mxu0
        %v3014 = vadd.f32 0.0, %v3013
        %3015 = vmatprep.mubr.bf16.mxu0 %v2924
        %3016 = vmatmul.mubr.bf16.gmra.mrb[0].mxu0 %v2923
        %v3017 = vpop.f32.mrb[0].mxu0
        %v3018 = vadd.f32 0.0, %v3017
        %v3019 = vpop.f32.mrb[0].mxu0
        %v3020 = vadd.f32 0.0, %v3019
        %v3021 = vpop.f32.mrb[0].mxu0
        %v3022 = vadd.f32 0.0, %v3021
        %v3023 = vpop.f32.mrb[0].mxu0
        %v3024 = vadd.f32 0.0, %v3023
        %3025 = vmatprep.mubr.bf16.mxu0 %v2926
        %3026 = vmatmul.mubr.bf16.gmra.mrb[0].mxu0 %v2925
        %v3027 = vpop.f32.mrb[0].mxu0
        %v3028 = vadd.f32 0.0, %v3027
        %v3029 = vpop.f32.mrb[0].mxu0
        %v3030 = vadd.f32 0.0, %v3029
        %v3031 = vpop.f32.mrb[0].mxu0
        %v3032 = vadd.f32 0.0, %v3031
        %v3033 = vpop.f32.mrb[0].mxu0
        %v3034 = vadd.f32 0.0, %v3033
        %3035 = vmatprep.mubr.bf16.mxu0 %v2928
        %3036 = vmatmul.mubr.bf16.gmra.mrb[0].mxu0 %v2927
        %v3037 = vpop.f32.mrb[0].mxu0
        %v3038 = vadd.f32 0.0, %v3037
        %v3039 = vpop.f32.mrb[0].mxu0
        %v3040 = vadd.f32 0.0, %v3039
        %v3041 = vpop.f32.mrb[0].mxu0
        %v3042 = vadd.f32 0.0, %v3041
        %v3043 = vpop.f32.mrb[0].mxu0
        %v3044 = vadd.f32 0.0, %v3043
        %3045 = vdwg.mxu0
        %v3046 = vmax.f32 %v2791, %v2978
        %v3047 = vmax.f32 %v2793, %v2980
        %v3048 = vmax.f32 %v2795, %v2982
        %v3049 = vmax.f32 %v2797, %v2984
        %v3050 = vmax.f32 %v2801, %v2988
        %v3051 = vmax.f32 %v2803, %v2990
        %v3052 = vmax.f32 %v2805, %v2992
        %v3053 = vmax.f32 %v2807, %v2994
        %v3054 = vmax.f32 %v2811, %v2998
        %v3055 = vmax.f32 %v2813, %v3000
        %v3056 = vmax.f32 %v2815, %v3002
        %v3057 = vmax.f32 %v2817, %v3004
        %v3058 = vmax.f32 %v2821, %v3008
        %v3059 = vmax.f32 %v2823, %v3010
        %v3060 = vmax.f32 %v2825, %v3012
        %v3061 = vmax.f32 %v2827, %v3014
        %v3062 = vmax.f32 %v2831, %v3018
        %v3063 = vmax.f32 %v2833, %v3020
        %v3064 = vmax.f32 %v2835, %v3022
        %v3065 = vmax.f32 %v2837, %v3024
        %v3066 = vmax.f32 %v2841, %v3028
        %v3067 = vmax.f32 %v2843, %v3030
        %v3068 = vmax.f32 %v2845, %v3032
        %v3069 = vmax.f32 %v2847, %v3034
        %v3070 = vmax.f32 %v2851, %v3038
        %v3071 = vmax.f32 %v2853, %v3040
        %v3072 = vmax.f32 %v2855, %v3042
        %v3073 = vmax.f32 %v2857, %v3044
        %v3074 = vpack.c.bf16 %v3048, %v3046
        %v3075 = vpack.c.bf16 %v3049, %v3047
        %v3076 = vpack.c.bf16 %v3052, %v3050
        %v3077 = vpack.c.bf16 %v3053, %v3051
        %v3078 = vpack.c.bf16 %v3056, %v3054
        %v3079 = vpack.c.bf16 %v3057, %v3055
        %v3080 = vpack.c.bf16 %v3060, %v3058
        %v3081 = vpack.c.bf16 %v3061, %v3059
        %v3082 = vpack.c.bf16 %v3064, %v3062
        %v3083 = vpack.c.bf16 %v3065, %v3063
        %v3084 = vpack.c.bf16 %v3068, %v3066
        %v3085 = vpack.c.bf16 %v3069, %v3067
        %v3086 = vpack.c.bf16 %v3072, %v3070
        %v3087 = vpack.c.bf16 %v3073, %v3071
        %v3088 = vld [vmem:[%s5] sm:$0xf]
        %v3089 = vld [vmem:[%s5 + $0x4] sm:$0xf]
        %v3090 = vld [vmem:[%s5 + $0x8] sm:$0xf]
        %v3091 = vld [vmem:[%s5 + $0xc] sm:$0xf]
        %v3092 = vld [vmem:[%s5 + $0x10] sm:$0xf]
        %v3093 = vld [vmem:[%s5 + $0x14] sm:$0xf]
        %v3094 = vld [vmem:[%s5 + $0x18] sm:$0xf]
        %v3095 = vld [vmem:[%s5 + $0x1c] sm:$0xf]
        %v3096 = vld [vmem:[%s5 + $0x20] sm:$0xf]
        %v3097 = vld [vmem:[%s5 + $0x24] sm:$0xf]
        %v3098 = vld [vmem:[%s5 + $0x28] sm:$0xf]
        %v3099 = vld [vmem:[%s5 + $0x2c] sm:$0xf]
        %v3100 = vld [vmem:[%s5 + $0x30] sm:$0xf]
        %v3101 = vld [vmem:[%s5 + $0x34] sm:$0xf]
        %v3102 = vld [vmem:[%s5 + $0x38] sm:$0xf]
        %v3103 = vld [vmem:[%s5 + $0x3c] sm:$0xf]
        %v3104 = vld [vmem:[%s5 + $0x40] sm:$0xf]
        %v3105 = vld [vmem:[%s5 + $0x44] sm:$0xf]
        %v3106 = vld [vmem:[%s5 + $0x48] sm:$0xf]
        %v3107 = vld [vmem:[%s5 + $0x4c] sm:$0xf]
        %v3108 = vld [vmem:[%s5 + $0x50] sm:$0xf]
        %v3130 = vunpack.c.l.b16 %v3088
        %v3131 = vunpack.c.l.b16 %v3089
        %v3132 = vunpack.c.l.b16 %v3090
        %v3133 = vunpack.c.l.b16 %v3091
        %v3134 = vunpack.c.l.b16 %v3092
        %v3135 = vunpack.c.l.b16 %v3093
        %v3136 = vunpack.c.l.b16 %v3094
        %v3137 = vunpack.c.l.b16 %v3095
        %v3138 = vunpack.c.l.b16 %v3096
        %v3139 = vunpack.c.l.b16 %v3097
        %v3140 = vunpack.c.l.b16 %v3098
        %v3141 = vunpack.c.l.b16 %v3099
        %v3142 = vunpack.c.l.b16 %v3100
        %v3143 = vunpack.c.l.b16 %v3101
        %v3144 = vunpack.c.l.b16 %v3102
        %v3145 = vunpack.c.l.b16 %v3103
        %v3146 = vunpack.c.l.b16 %v3104
        %v3147 = vunpack.c.l.b16 %v3105
        %v3148 = vunpack.c.l.b16 %v3106
        %v3149 = vunpack.c.l.b16 %v3107
        %v3150 = vunpack.c.l.b16 %v3108
        %v3151 = vpack.c.b16 %v3131, %v3130
        %v3152 = vpack.c.b16 %v3133, %v3132
        %v3153 = vpack.c.b16 %v3135, %v3134
        %v3154 = vpack.c.b16 %v3137, %v3136
        %v3155 = vpack.c.b16 %v3139, %v3138
        %v3156 = vpack.c.b16 %v3141, %v3140
        %v3157 = vpack.c.b16 %v3143, %v3142
        %v3158 = vpack.c.b16 %v3145, %v3144
        %v3159 = vpack.c.b16 %v3147, %v3146
        %v3160 = vpack.c.b16 %v3149, %v3148
        %v3161 = vpack.c.b16 %v3150, %v3150
        %vm3172 = vcmask 326656
        %v3174 = vsel %vm3172, %v3075, 0
        %v3177 = vsel %vm3172, %v3077, 0
        %v3180 = vsel %vm3172, %v3079, 0
        %v3183 = vsel %vm3172, %v3081, 0
        %v3186 = vsel %vm3172, %v3083, 0
        %v3189 = vsel %vm3172, %v3085, 0
        %v3192 = vsel %vm3172, %v3087, 0
        %vm3194 = vcmask 1043456
        %v3196 = vsel %vm3194, %v3161, 0
        %3198 = vmatprep.subr.bf16.mxu0 0
        %3199 = vmatpush1.bf16.msra.mxu0 %v3151
        %3200 = vmatprep.subr.bf16.mxu0 0
        %3201 = vmatpush1.bf16.msra.mxu0 %v3152
        %3202 = vmatprep.subr.bf16.mxu0 0
        %3203 = vmatpush1.bf16.msra.mxu0 %v3153
        %3204 = vmatprep.subr.bf16.mxu0 0
        %3205 = vmatpush1.bf16.msra.mxu0 %v3154
        %3206 = vmatprep.subr.bf16.mxu0 0
        %3207 = vmatpush1.bf16.msra.mxu0 %v3155
        %3208 = vmatprep.subr.bf16.mxu0 0
        %3209 = vmatpush1.bf16.msra.mxu0 %v3156
        %3210 = vmatprep.subr.bf16.mxu0 0
        %3211 = vmatpush1.bf16.msra.mxu0 %v3157
        %3212 = vmatprep.subr.bf16.mxu0 0
        %3213 = vmatpush1.bf16.msra.mxu0 %v3158
        %3214 = vmatprep.subr.bf16.mxu0 0
        %3215 = vmatpush1.bf16.msra.mxu0 %v3159
        %3216 = vmatprep.subr.bf16.mxu0 0
        %3217 = vmatpush1.bf16.msra.mxu0 %v3160
        %3218 = vmatprep.subr.bf16.mxu0 0
        %3219 = vmatpush1.bf16.msra.mxu0 %v3196
        %3220 = vmatprep.subr.bf16.mxu0 0
        %3221 = vmatpush1.bf16.msra.mxu0 0
        %3222 = vmatprep.subr.bf16.mxu0 0
        %3223 = vmatpush1.bf16.msra.mxu0 0
        %3224 = vmatprep.subr.bf16.mxu0 0
        %3225 = vmatpush1.bf16.msra.mxu0 0
        %3226 = vmatprep.subr.bf16.mxu0 0
        %3227 = vmatpush1.bf16.msra.mxu0 0
        %3228 = vmatprep.subr.bf16.mxu0 0
        %3229 = vmatpush1.bf16.msra.mxu0 0
        %3230 = vmatprep.mubr.bf16.mxu0 %v3174
        %3231 = vmatmul.mubr.bf16.gmra.mrb[0].mxu0 %v3074
        %v3232 = vpop.f32.mrb[0].mxu0
        %v3233 = vadd.f32 0.0, %v3232
        %v3234 = vpop.f32.mrb[0].mxu0
        %v3235 = vpop.f32.mrb[0].mxu0
        %v3236 = vadd.f32 0.0, %v3235
        %v3237 = vpop.f32.mrb[0].mxu0
        %3238 = vmatprep.mubr.bf16.mxu0 %v3177
        %3239 = vmatmul.mubr.bf16.gmra.mrb[0].mxu0 %v3076
        %v3240 = vpop.f32.mrb[0].mxu0
        %v3241 = vadd.f32 0.0, %v3240
        %v3242 = vpop.f32.mrb[0].mxu0
        %v3243 = vpop.f32.mrb[0].mxu0
        %v3244 = vadd.f32 0.0, %v3243
        %v3245 = vpop.f32.mrb[0].mxu0
        %3246 = vmatprep.mubr.bf16.mxu0 %v3180
        %3247 = vmatmul.mubr.bf16.gmra.mrb[0].mxu0 %v3078
        %v3248 = vpop.f32.mrb[0].mxu0
        %v3249 = vadd.f32 0.0, %v3248
        %v3250 = vpop.f32.mrb[0].mxu0
        %v3251 = vpop.f32.mrb[0].mxu0
        %v3252 = vadd.f32 0.0, %v3251
        %v3253 = vpop.f32.mrb[0].mxu0
        %3254 = vmatprep.mubr.bf16.mxu0 %v3183
        %3255 = vmatmul.mubr.bf16.gmra.mrb[0].mxu0 %v3080
        %v3256 = vpop.f32.mrb[0].mxu0
        %v3257 = vadd.f32 0.0, %v3256
        %v3258 = vpop.f32.mrb[0].mxu0
        %v3259 = vpop.f32.mrb[0].mxu0
        %v3260 = vadd.f32 0.0, %v3259
        %v3261 = vpop.f32.mrb[0].mxu0
        %3262 = vmatprep.mubr.bf16.mxu0 %v3186
        %3263 = vmatmul.mubr.bf16.gmra.mrb[0].mxu0 %v3082
        %v3264 = vpop.f32.mrb[0].mxu0
        %v3265 = vadd.f32 0.0, %v3264
        %v3266 = vpop.f32.mrb[0].mxu0
        %v3267 = vpop.f32.mrb[0].mxu0
        %v3268 = vadd.f32 0.0, %v3267
        %v3269 = vpop.f32.mrb[0].mxu0
        %3270 = vmatprep.mubr.bf16.mxu0 %v3189
        %3271 = vmatmul.mubr.bf16.gmra.mrb[0].mxu0 %v3084
        %v3272 = vpop.f32.mrb[0].mxu0
        %v3273 = vadd.f32 0.0, %v3272
        %v3274 = vpop.f32.mrb[0].mxu0
        %v3275 = vpop.f32.mrb[0].mxu0
        %v3276 = vadd.f32 0.0, %v3275
        %v3277 = vpop.f32.mrb[0].mxu0
        %3278 = vmatprep.mubr.bf16.mxu0 %v3192
        %3279 = vmatmul.mubr.bf16.gmra.mrb[0].mxu0 %v3086
        %v3280 = vpop.f32.mrb[0].mxu0
        %v3281 = vadd.f32 0.0, %v3280
        %v3282 = vpop.f32.mrb[0].mxu0
        %v3283 = vpop.f32.mrb[0].mxu0
        %v3284 = vadd.f32 0.0, %v3283
        %v3285 = vpop.f32.mrb[0].mxu0
        %3286 = vdwg.mxu0
        %v3287 = vld [vmem:[%s6] sm:$0xf]
        %v3288 = vld [vmem:[%s6 + $0x4] sm:$0xf]
        %v3289 = vld [vmem:[%s6 + $0x8] sm:$0xf]
        %v3290 = vld [vmem:[%s6 + $0xc] sm:$0xf]
        %v3291 = vld [vmem:[%s6 + $0x10] sm:$0xf]
        %v3292 = vld [vmem:[%s6 + $0x14] sm:$0xf]
        %v3293 = vld [vmem:[%s6 + $0x18] sm:$0xf]
        %v3294 = vld [vmem:[%s6 + $0x1c] sm:$0xf]
        %v3295 = vld [vmem:[%s6 + $0x20] sm:$0xf]
        %v3296 = vld [vmem:[%s6 + $0x24] sm:$0xf]
        %v3297 = vld [vmem:[%s6 + $0x28] sm:$0xf]
        %v3298 = vld [vmem:[%s6 + $0x2c] sm:$0xf]
        %v3299 = vld [vmem:[%s6 + $0x30] sm:$0xf]
        %v3300 = vld [vmem:[%s6 + $0x34] sm:$0xf]
        %v3301 = vld [vmem:[%s6 + $0x38] sm:$0xf]
        %v3302 = vld [vmem:[%s6 + $0x3c] sm:$0xf]
        %v3303 = vld [vmem:[%s6 + $0x40] sm:$0xf]
        %v3304 = vld [vmem:[%s6 + $0x44] sm:$0xf]
        %v3305 = vld [vmem:[%s6 + $0x48] sm:$0xf]
        %v3306 = vld [vmem:[%s6 + $0x4c] sm:$0xf]
        %v3307 = vld [vmem:[%s6 + $0x50] sm:$0xf]
        %v3329 = vunpack.c.l.b16 %v3287
        %v3330 = vunpack.c.l.b16 %v3288
        %v3331 = vunpack.c.l.b16 %v3289
        %v3332 = vunpack.c.l.b16 %v3290
        %v3333 = vunpack.c.l.b16 %v3291
        %v3334 = vunpack.c.l.b16 %v3292
        %v3335 = vunpack.c.l.b16 %v3293
        %v3336 = vunpack.c.l.b16 %v3294
        %v3337 = vunpack.c.l.b16 %v3295
        %v3338 = vunpack.c.l.b16 %v3296
        %v3339 = vunpack.c.l.b16 %v3297
        %v3340 = vunpack.c.l.b16 %v3298
        %v3341 = vunpack.c.l.b16 %v3299
        %v3342 = vunpack.c.l.b16 %v3300
        %v3343 = vunpack.c.l.b16 %v3301
        %v3344 = vunpack.c.l.b16 %v3302
        %v3345 = vunpack.c.l.b16 %v3303
        %v3346 = vunpack.c.l.b16 %v3304
        %v3347 = vunpack.c.l.b16 %v3305
        %v3348 = vunpack.c.l.b16 %v3306
        %v3349 = vunpack.c.l.b16 %v3307
        %v3350 = vpack.c.b16 %v3330, %v3329
        %v3351 = vpack.c.b16 %v3332, %v3331
        %v3352 = vpack.c.b16 %v3334, %v3333
        %v3353 = vpack.c.b16 %v3336, %v3335
        %v3354 = vpack.c.b16 %v3338, %v3337
        %v3355 = vpack.c.b16 %v3340, %v3339
        %v3356 = vpack.c.b16 %v3342, %v3341
        %v3357 = vpack.c.b16 %v3344, %v3343
        %v3358 = vpack.c.b16 %v3346, %v3345
        %v3359 = vpack.c.b16 %v3348, %v3347
        %v3360 = vpack.c.b16 %v3349, %v3349
        %v3372 = vsel %vm3194, %v3360, 0
        %3374 = vmatprep.subr.bf16.mxu0 0
        %3375 = vmatpush1.bf16.msra.mxu0 %v3350
        %3376 = vmatprep.subr.bf16.mxu0 0
        %3377 = vmatpush1.bf16.msra.mxu0 %v3351
        %3378 = vmatprep.subr.bf16.mxu0 0
        %3379 = vmatpush1.bf16.msra.mxu0 %v3352
        %3380 = vmatprep.subr.bf16.mxu0 0
        %3381 = vmatpush1.bf16.msra.mxu0 %v3353
        %3382 = vmatprep.subr.bf16.mxu0 0
        %3383 = vmatpush1.bf16.msra.mxu0 %v3354
        %3384 = vmatprep.subr.bf16.mxu0 0
        %3385 = vmatpush1.bf16.msra.mxu0 %v3355
        %3386 = vmatprep.subr.bf16.mxu0 0
        %3387 = vmatpush1.bf16.msra.mxu0 %v3356
        %3388 = vmatprep.subr.bf16.mxu0 0
        %3389 = vmatpush1.bf16.msra.mxu0 %v3357
        %3390 = vmatprep.subr.bf16.mxu0 0
        %3391 = vmatpush1.bf16.msra.mxu0 %v3358
        %3392 = vmatprep.subr.bf16.mxu0 0
        %3393 = vmatpush1.bf16.msra.mxu0 %v3359
        %3394 = vmatprep.subr.bf16.mxu0 0
        %3395 = vmatpush1.bf16.msra.mxu0 %v3372
        %3396 = vmatprep.subr.bf16.mxu0 0
        %3397 = vmatpush1.bf16.msra.mxu0 0
        %3398 = vmatprep.subr.bf16.mxu0 0
        %3399 = vmatpush1.bf16.msra.mxu0 0
        %3400 = vmatprep.subr.bf16.mxu0 0
        %3401 = vmatpush1.bf16.msra.mxu0 0
        %3402 = vmatprep.subr.bf16.mxu0 0
        %3403 = vmatpush1.bf16.msra.mxu0 0
        %3404 = vmatprep.subr.bf16.mxu0 0
        %3405 = vmatpush1.bf16.msra.mxu0 0
        %3406 = vmatprep.mubr.bf16.mxu0 %v3174
        %3407 = vmatmul.mubr.bf16.gmra.mrb[0].mxu0 %v3074
        %v3408 = vpop.f32.mrb[0].mxu0
        %v3409 = vadd.f32 0.0, %v3408
        %v3410 = vpop.f32.mrb[0].mxu0
        %v3411 = vpop.f32.mrb[0].mxu0
        %v3412 = vadd.f32 0.0, %v3411
        %v3413 = vpop.f32.mrb[0].mxu0
        %3414 = vmatprep.mubr.bf16.mxu0 %v3177
        %3415 = vmatmul.mubr.bf16.gmra.mrb[0].mxu0 %v3076
        %v3416 = vpop.f32.mrb[0].mxu0
        %v3417 = vadd.f32 0.0, %v3416
        %v3418 = vpop.f32.mrb[0].mxu0
        %v3419 = vpop.f32.mrb[0].mxu0
        %v3420 = vadd.f32 0.0, %v3419
        %v3421 = vpop.f32.mrb[0].mxu0
        %3422 = vmatprep.mubr.bf16.mxu0 %v3180
        %3423 = vmatmul.mubr.bf16.gmra.mrb[0].mxu0 %v3078
        %v3424 = vpop.f32.mrb[0].mxu0
        %v3425 = vadd.f32 0.0, %v3424
        %v3426 = vpop.f32.mrb[0].mxu0
        %v3427 = vpop.f32.mrb[0].mxu0
        %v3428 = vadd.f32 0.0, %v3427
        %v3429 = vpop.f32.mrb[0].mxu0
        %3430 = vmatprep.mubr.bf16.mxu0 %v3183
        %3431 = vmatmul.mubr.bf16.gmra.mrb[0].mxu0 %v3080
        %v3432 = vpop.f32.mrb[0].mxu0
        %v3433 = vadd.f32 0.0, %v3432
        %v3434 = vpop.f32.mrb[0].mxu0
        %v3435 = vpop.f32.mrb[0].mxu0
        %v3436 = vadd.f32 0.0, %v3435
        %v3437 = vpop.f32.mrb[0].mxu0
        %3438 = vmatprep.mubr.bf16.mxu0 %v3186
        %3439 = vmatmul.mubr.bf16.gmra.mrb[0].mxu0 %v3082
        %v3440 = vpop.f32.mrb[0].mxu0
        %v3441 = vadd.f32 0.0, %v3440
        %v3442 = vpop.f32.mrb[0].mxu0
        %v3443 = vpop.f32.mrb[0].mxu0
        %v3444 = vadd.f32 0.0, %v3443
        %v3445 = vpop.f32.mrb[0].mxu0
        %3446 = vmatprep.mubr.bf16.mxu0 %v3189
        %3447 = vmatmul.mubr.bf16.gmra.mrb[0].mxu0 %v3084
        %v3448 = vpop.f32.mrb[0].mxu0
        %v3449 = vadd.f32 0.0, %v3448
        %v3450 = vpop.f32.mrb[0].mxu0
        %v3451 = vpop.f32.mrb[0].mxu0
        %v3452 = vadd.f32 0.0, %v3451
        %v3453 = vpop.f32.mrb[0].mxu0
        %3454 = vmatprep.mubr.bf16.mxu0 %v3192
        %3455 = vmatmul.mubr.bf16.gmra.mrb[0].mxu0 %v3086
        %v3456 = vpop.f32.mrb[0].mxu0
        %v3457 = vadd.f32 0.0, %v3456
        %v3458 = vpop.f32.mrb[0].mxu0
        %v3459 = vpop.f32.mrb[0].mxu0
        %v3460 = vadd.f32 0.0, %v3459
        %v3461 = vpop.f32.mrb[0].mxu0
        %3462 = vdwg.mxu0
        %v3463 = vmax.f32 %v3233, %v3409
        %v3464 = vmax.f32 %v3236, %v3412
        %v3465 = vmax.f32 %v3241, %v3417
        %v3466 = vmax.f32 %v3244, %v3420
        %v3467 = vmax.f32 %v3249, %v3425
        %v3468 = vmax.f32 %v3252, %v3428
        %v3469 = vmax.f32 %v3257, %v3433
        %v3470 = vmax.f32 %v3260, %v3436
        %v3471 = vmax.f32 %v3265, %v3441
        %v3472 = vmax.f32 %v3268, %v3444
        %v3473 = vmax.f32 %v3273, %v3449
        %v3474 = vmax.f32 %v3276, %v3452
        %v3475 = vmax.f32 %v3281, %v3457
        %v3476 = vmax.f32 %v3284, %v3460
        %v3477 = vpack.c.bf16 %v3464, %v3463
        %v3478 = vpack.c.bf16 %v3466, %v3465
        %v3479 = vpack.c.bf16 %v3468, %v3467
        %v3480 = vpack.c.bf16 %v3470, %v3469
        %v3481 = vpack.c.bf16 %v3472, %v3471
        %v3482 = vpack.c.bf16 %v3474, %v3473
        %v3483 = vpack.c.bf16 %v3476, %v3475
        %v3484 = vld [vmem:[%s7] sm:$0xff]
        %v3485 = vld [vmem:[%s7 + $0x8] sm:$0xff]
        %v3486 = vld [vmem:[%s7 + $0x10] sm:$0xff]
        %v3487 = vld [vmem:[%s7 + $0x18] sm:$0xff]
        %v3488 = vld [vmem:[%s7 + $0x20] sm:$0xff]
        %v3489 = vld [vmem:[%s7 + $0x28] sm:$0xff]
        %v3490 = vld [vmem:[%s7 + $0x30] sm:$0xff]
        %v3491 = vld [vmem:[%s7 + $0x38] sm:$0xff]
        %v3492 = vld [vmem:[%s7 + $0x40] sm:$0xff]
        %v3493 = vld [vmem:[%s7 + $0x48] sm:$0xff]
        %v3494 = vld [vmem:[%s7 + $0x50] sm:$0x33]
        %v3495 = vrot.slane %v3463, 1
        %v3496 = vrot.slane %v3464, 1
        %v3497 = vrot.slane %v3465, 1
        %v3498 = vrot.slane %v3466, 1
        %v3499 = vrot.slane %v3467, 1
        %v3500 = vrot.slane %v3468, 1
        %v3501 = vrot.slane %v3469, 1
        %v3502 = vrot.slane %v3470, 1
        %v3503 = vrot.slane %v3471, 1
        %v3504 = vrot.slane %v3472, 1
        %v3505 = vrot.slane %v3473, 1
        %v3506 = vrot.slane %v3474, 1
        %v3507 = vrot.slane %v3475, 1
        %v3508 = vrot.slane %v3476, 1
        %v3509 = vsel %vm690, %v3507, %v3508
        %v3510 = vsel %vm690, %v3506, %v3507
        %v3511 = vsel %vm690, %v3505, %v3506
        %v3512 = vsel %vm690, %v3504, %v3505
        %v3513 = vsel %vm690, %v3503, %v3504
        %v3514 = vsel %vm690, %v3502, %v3503
        %v3515 = vsel %vm690, %v3501, %v3502
        %v3516 = vsel %vm690, %v3500, %v3501
        %v3517 = vsel %vm690, %v3499, %v3500
        %v3518 = vsel %vm690, %v3498, %v3499
        %v3519 = vsel %vm690, %v3497, %v3498
        %v3520 = vsel %vm690, %v3496, %v3497
        %v3521 = vsel %vm690, %v3495, %v3496
        %v3522 = vsel %vm690, %v3508, %v3495
        %v3523 = vpack.c.bf16 %v3520, %v3521
        %v3524 = vpack.c.bf16 %v3518, %v3519
        %v3525 = vpack.c.bf16 %v3516, %v3517
        %v3526 = vpack.c.bf16 %v3514, %v3515
        %v3527 = vpack.c.bf16 %v3512, %v3513
        %v3528 = vpack.c.bf16 %v3510, %v3511
        %v3529 = vpack.c.bf16 %v3522, %v3509
        %s3530 = scalar_lea.vmem %s7, 88
        %v3531 = vld [vmem:[%s3530] sm:$0xff]
        %v3532 = vld [vmem:[%s3530 + $0x8] sm:$0xff]
        %v3533 = vld [vmem:[%s3530 + $0x10] sm:$0xff]
        %v3534 = vld [vmem:[%s3530 + $0x18] sm:$0xff]
        %v3535 = vld [vmem:[%s3530 + $0x20] sm:$0xff]
        %v3536 = vld [vmem:[%s3530 + $0x28] sm:$0xff]
        %v3537 = vld [vmem:[%s3530 + $0x30] sm:$0xff]
        %v3538 = vld [vmem:[%s3530 + $0x38] sm:$0xff]
        %v3539 = vld [vmem:[%s3530 + $0x40] sm:$0xff]
        %v3540 = vld [vmem:[%s3530 + $0x48] sm:$0xff]
        %v3541 = vld [vmem:[%s3530 + $0x50] sm:$0x33]
        %v3553 = vunpack.c.l.b16 %v3531
        %v3554 = vunpack.c.h.b16 %v3531
        %v3555 = vunpack.c.l.b16 %v3532
        %v3556 = vunpack.c.h.b16 %v3532
        %v3557 = vunpack.c.l.b16 %v3533
        %v3558 = vunpack.c.h.b16 %v3533
        %v3559 = vunpack.c.l.b16 %v3534
        %v3560 = vunpack.c.h.b16 %v3534
        %v3561 = vunpack.c.l.b16 %v3535
        %v3562 = vunpack.c.h.b16 %v3535
        %v3563 = vunpack.c.l.b16 %v3536
        %v3564 = vunpack.c.h.b16 %v3536
        %v3565 = vunpack.c.l.b16 %v3537
        %v3566 = vunpack.c.h.b16 %v3537
        %v3567 = vunpack.c.l.b16 %v3538
        %v3568 = vunpack.c.h.b16 %v3538
        %v3569 = vunpack.c.l.b16 %v3539
        %v3570 = vunpack.c.h.b16 %v3539
        %v3571 = vunpack.c.l.b16 %v3540
        %v3572 = vunpack.c.h.b16 %v3540
        %v3573 = vunpack.c.l.b16 %v3541
        %v3574 = vunpack.c.h.b16 %v3541
        %v3575 = vpack.c.b16 %v3555, %v3553
        %v3576 = vpack.c.b16 %v3556, %v3554
        %v3577 = vpack.c.b16 %v3559, %v3557
        %v3578 = vpack.c.b16 %v3560, %v3558
        %v3579 = vpack.c.b16 %v3563, %v3561
        %v3580 = vpack.c.b16 %v3564, %v3562
        %v3581 = vpack.c.b16 %v3567, %v3565
        %v3582 = vpack.c.b16 %v3568, %v3566
        %v3583 = vpack.c.b16 %v3571, %v3569
        %v3584 = vpack.c.b16 %v3572, %v3570
        %v3585 = vpack.c.b16 %v3573, %v3573
        %v3586 = vpack.c.b16 %v3574, %v3574
        %vm3597 = vcmask 687104
        %v3599 = vsel %vm3597, %v3523, 0
        %v3602 = vsel %vm3597, %v3524, 0
        %v3605 = vsel %vm3597, %v3525, 0
        %v3608 = vsel %vm3597, %v3526, 0
        %v3611 = vsel %vm3597, %v3527, 0
        %v3614 = vsel %vm3597, %v3528, 0
        %v3617 = vsel %vm3597, %v3529, 0
        %vm3619 = vcmask 1041408
        %v3621 = vsel %vm3619, %v3585, 0
        %v3624 = vsel %vm3619, %v3586, 0
        %3626 = vmatprep.subr.bf16.mxu0 %v3576
        %3627 = vmatpush1.bf16.msra.mxu0 %v3575
        %3628 = vmatprep.subr.bf16.mxu0 %v3578
        %3629 = vmatpush1.bf16.msra.mxu0 %v3577
        %3630 = vmatprep.subr.bf16.mxu0 %v3580
        %3631 = vmatpush1.bf16.msra.mxu0 %v3579
        %3632 = vmatprep.subr.bf16.mxu0 %v3582
        %3633 = vmatpush1.bf16.msra.mxu0 %v3581
        %3634 = vmatprep.subr.bf16.mxu0 %v3584
        %3635 = vmatpush1.bf16.msra.mxu0 %v3583
        %3636 = vmatprep.subr.bf16.mxu0 %v3624
        %3637 = vmatpush1.bf16.msra.mxu0 %v3621
        %3638 = vmatprep.subr.bf16.mxu0 0
        %3639 = vmatpush1.bf16.msra.mxu0 0
        %3640 = vmatprep.subr.bf16.mxu0 0
        %3641 = vmatpush1.bf16.msra.mxu0 0
        %3642 = vmatprep.subr.bf16.mxu0 0
        %3643 = vmatpush1.bf16.msra.mxu0 0
        %3644 = vmatprep.subr.bf16.mxu0 0
        %3645 = vmatpush1.bf16.msra.mxu0 0
        %3646 = vmatprep.subr.bf16.mxu0 0
        %3647 = vmatpush1.bf16.msra.mxu0 0
        %3648 = vmatprep.subr.bf16.mxu0 0
        %3649 = vmatpush1.bf16.msra.mxu0 0
        %3650 = vmatprep.subr.bf16.mxu0 0
        %3651 = vmatpush1.bf16.msra.mxu0 0
        %3652 = vmatprep.subr.bf16.mxu0 0
        %3653 = vmatpush1.bf16.msra.mxu0 0
        %3654 = vmatprep.subr.bf16.mxu0 0
        %3655 = vmatpush1.bf16.msra.mxu0 0
        %3656 = vmatprep.subr.bf16.mxu0 0
        %3657 = vmatpush1.bf16.msra.mxu0 0
        %3658 = vmatprep.mubr.bf16.mxu0 0
        %3659 = vmatmul.mubr.bf16.gmra.mrb[0].mxu0 %v3599
        %v3660 = vpop.f32.mrb[0].mxu0
        %v3661 = vadd.f32 0.0, %v3660
        %v3662 = vpop.f32.mrb[0].mxu0
        %v3663 = vadd.f32 0.0, %v3662
        %v3664 = vpop.f32.mrb[0].mxu0
        %v3665 = vadd.f32 0.0, %v3664
        %v3666 = vpop.f32.mrb[0].mxu0
        %v3667 = vadd.f32 0.0, %v3666
        %3668 = vmatprep.mubr.bf16.mxu0 0
        %3669 = vmatmul.mubr.bf16.gmra.mrb[0].mxu0 %v3602
        %v3670 = vpop.f32.mrb[0].mxu0
        %v3671 = vadd.f32 0.0, %v3670
        %v3672 = vpop.f32.mrb[0].mxu0
        %v3673 = vadd.f32 0.0, %v3672
        %v3674 = vpop.f32.mrb[0].mxu0
        %v3675 = vadd.f32 0.0, %v3674
        %v3676 = vpop.f32.mrb[0].mxu0
        %v3677 = vadd.f32 0.0, %v3676
        %3678 = vmatprep.mubr.bf16.mxu0 0
        %3679 = vmatmul.mubr.bf16.gmra.mrb[0].mxu0 %v3605
        %v3680 = vpop.f32.mrb[0].mxu0
        %v3681 = vadd.f32 0.0, %v3680
        %v3682 = vpop.f32.mrb[0].mxu0
        %v3683 = vadd.f32 0.0, %v3682
        %v3684 = vpop.f32.mrb[0].mxu0
        %v3685 = vadd.f32 0.0, %v3684
        %v3686 = vpop.f32.mrb[0].mxu0
        %v3687 = vadd.f32 0.0, %v3686
        %3688 = vmatprep.mubr.bf16.mxu0 0
        %3689 = vmatmul.mubr.bf16.gmra.mrb[0].mxu0 %v3608
        %v3690 = vpop.f32.mrb[0].mxu0
        %v3691 = vadd.f32 0.0, %v3690
        %v3692 = vpop.f32.mrb[0].mxu0
        %v3693 = vadd.f32 0.0, %v3692
        %v3694 = vpop.f32.mrb[0].mxu0
        %v3695 = vadd.f32 0.0, %v3694
        %v3696 = vpop.f32.mrb[0].mxu0
        %v3697 = vadd.f32 0.0, %v3696
        %3698 = vmatprep.mubr.bf16.mxu0 0
        %3699 = vmatmul.mubr.bf16.gmra.mrb[0].mxu0 %v3611
        %v3700 = vpop.f32.mrb[0].mxu0
        %v3701 = vadd.f32 0.0, %v3700
        %v3702 = vpop.f32.mrb[0].mxu0
        %v3703 = vadd.f32 0.0, %v3702
        %v3704 = vpop.f32.mrb[0].mxu0
        %v3705 = vadd.f32 0.0, %v3704
        %v3706 = vpop.f32.mrb[0].mxu0
        %v3707 = vadd.f32 0.0, %v3706
        %3708 = vmatprep.mubr.bf16.mxu0 0
        %3709 = vmatmul.mubr.bf16.gmra.mrb[0].mxu0 %v3614
        %v3710 = vpop.f32.mrb[0].mxu0
        %v3711 = vadd.f32 0.0, %v3710
        %v3712 = vpop.f32.mrb[0].mxu0
        %v3713 = vadd.f32 0.0, %v3712
        %v3714 = vpop.f32.mrb[0].mxu0
        %v3715 = vadd.f32 0.0, %v3714
        %v3716 = vpop.f32.mrb[0].mxu0
        %v3717 = vadd.f32 0.0, %v3716
        %3718 = vmatprep.mubr.bf16.mxu0 0
        %3719 = vmatmul.mubr.bf16.gmra.mrb[0].mxu0 %v3617
        %v3720 = vpop.f32.mrb[0].mxu0
        %v3721 = vadd.f32 0.0, %v3720
        %v3722 = vpop.f32.mrb[0].mxu0
        %v3723 = vadd.f32 0.0, %v3722
        %v3724 = vpop.f32.mrb[0].mxu0
        %v3725 = vadd.f32 0.0, %v3724
        %v3726 = vpop.f32.mrb[0].mxu0
        %v3727 = vadd.f32 0.0, %v3726
        %3728 = vdwg.mxu0
        %v3740 = vunpack.c.l.b16 %v3484
        %v3741 = vunpack.c.h.b16 %v3484
        %v3742 = vunpack.c.l.b16 %v3485
        %v3743 = vunpack.c.h.b16 %v3485
        %v3744 = vunpack.c.l.b16 %v3486
        %v3745 = vunpack.c.h.b16 %v3486
        %v3746 = vunpack.c.l.b16 %v3487
        %v3747 = vunpack.c.h.b16 %v3487
        %v3748 = vunpack.c.l.b16 %v3488
        %v3749 = vunpack.c.h.b16 %v3488
        %v3750 = vunpack.c.l.b16 %v3489
        %v3751 = vunpack.c.h.b16 %v3489
        %v3752 = vunpack.c.l.b16 %v3490
        %v3753 = vunpack.c.h.b16 %v3490
        %v3754 = vunpack.c.l.b16 %v3491
        %v3755 = vunpack.c.h.b16 %v3491
        %v3756 = vunpack.c.l.b16 %v3492
        %v3757 = vunpack.c.h.b16 %v3492
        %v3758 = vunpack.c.l.b16 %v3493
        %v3759 = vunpack.c.h.b16 %v3493
        %v3760 = vunpack.c.l.b16 %v3494
        %v3761 = vunpack.c.h.b16 %v3494
        %v3762 = vpack.c.b16 %v3742, %v3740
        %v3763 = vpack.c.b16 %v3743, %v3741
        %v3764 = vpack.c.b16 %v3746, %v3744
        %v3765 = vpack.c.b16 %v3747, %v3745
        %v3766 = vpack.c.b16 %v3750, %v3748
        %v3767 = vpack.c.b16 %v3751, %v3749
        %v3768 = vpack.c.b16 %v3754, %v3752
        %v3769 = vpack.c.b16 %v3755, %v3753
        %v3770 = vpack.c.b16 %v3758, %v3756
        %v3771 = vpack.c.b16 %v3759, %v3757
        %v3772 = vpack.c.b16 %v3760, %v3760
        %v3773 = vpack.c.b16 %v3761, %v3761
        %v3785 = vsel %vm3597, %v3477, 0
        %v3788 = vsel %vm3597, %v3478, 0
        %v3791 = vsel %vm3597, %v3479, 0
        %v3794 = vsel %vm3597, %v3480, 0
        %v3797 = vsel %vm3597, %v3481, 0
        %v3800 = vsel %vm3597, %v3482, 0
        %v3803 = vsel %vm3597, %v3483, 0
        %v3806 = vsel %vm3619, %v3772, 0
        %v3809 = vsel %vm3619, %v3773, 0
        %3811 = vmatprep.subr.bf16.mxu0 %v3763
        %3812 = vmatpush1.bf16.msra.mxu0 %v3762
        %3813 = vmatprep.subr.bf16.mxu0 %v3765
        %3814 = vmatpush1.bf16.msra.mxu0 %v3764
        %3815 = vmatprep.subr.bf16.mxu0 %v3767
        %3816 = vmatpush1.bf16.msra.mxu0 %v3766
        %3817 = vmatprep.subr.bf16.mxu0 %v3769
        %3818 = vmatpush1.bf16.msra.mxu0 %v3768
        %3819 = vmatprep.subr.bf16.mxu0 %v3771
        %3820 = vmatpush1.bf16.msra.mxu0 %v3770
        %3821 = vmatprep.subr.bf16.mxu0 %v3809
        %3822 = vmatpush1.bf16.msra.mxu0 %v3806
        %3823 = vmatprep.subr.bf16.mxu0 0
        %3824 = vmatpush1.bf16.msra.mxu0 0
        %3825 = vmatprep.subr.bf16.mxu0 0
        %3826 = vmatpush1.bf16.msra.mxu0 0
        %3827 = vmatprep.subr.bf16.mxu0 0
        %3828 = vmatpush1.bf16.msra.mxu0 0
        %3829 = vmatprep.subr.bf16.mxu0 0
        %3830 = vmatpush1.bf16.msra.mxu0 0
        %3831 = vmatprep.subr.bf16.mxu0 0
        %3832 = vmatpush1.bf16.msra.mxu0 0
        %3833 = vmatprep.subr.bf16.mxu0 0
        %3834 = vmatpush1.bf16.msra.mxu0 0
        %3835 = vmatprep.subr.bf16.mxu0 0
        %3836 = vmatpush1.bf16.msra.mxu0 0
        %3837 = vmatprep.subr.bf16.mxu0 0
        %3838 = vmatpush1.bf16.msra.mxu0 0
        %3839 = vmatprep.subr.bf16.mxu0 0
        %3840 = vmatpush1.bf16.msra.mxu0 0
        %3841 = vmatprep.subr.bf16.mxu0 0
        %3842 = vmatpush1.bf16.msra.mxu0 0
        %3843 = vmatprep.mubr.bf16.mxu0 0
        %3844 = vmatmul.mubr.bf16.gmra.mrb[0].mxu0 %v3785
        %v3845 = vpop.f32.mrb[0].mxu0
        %v3846 = vadd.f32 %v3661, %v3845
        %v3847 = vpop.f32.mrb[0].mxu0
        %v3848 = vadd.f32 %v3663, %v3847
        %v3849 = vpop.f32.mrb[0].mxu0
        %v3850 = vadd.f32 %v3665, %v3849
        %v3851 = vpop.f32.mrb[0].mxu0
        %v3852 = vadd.f32 %v3667, %v3851
        %3853 = vmatprep.mubr.bf16.mxu0 0
        %3854 = vmatmul.mubr.bf16.gmra.mrb[0].mxu0 %v3788
        %v3855 = vpop.f32.mrb[0].mxu0
        %v3856 = vadd.f32 %v3671, %v3855
        %v3857 = vpop.f32.mrb[0].mxu0
        %v3858 = vadd.f32 %v3673, %v3857
        %v3859 = vpop.f32.mrb[0].mxu0
        %v3860 = vadd.f32 %v3675, %v3859
        %v3861 = vpop.f32.mrb[0].mxu0
        %v3862 = vadd.f32 %v3677, %v3861
        %3863 = vmatprep.mubr.bf16.mxu0 0
        %3864 = vmatmul.mubr.bf16.gmra.mrb[0].mxu0 %v3791
        %v3865 = vpop.f32.mrb[0].mxu0
        %v3866 = vadd.f32 %v3681, %v3865
        %v3867 = vpop.f32.mrb[0].mxu0
        %v3868 = vadd.f32 %v3683, %v3867
        %v3869 = vpop.f32.mrb[0].mxu0
        %v3870 = vadd.f32 %v3685, %v3869
        %v3871 = vpop.f32.mrb[0].mxu0
        %v3872 = vadd.f32 %v3687, %v3871
        %3873 = vmatprep.mubr.bf16.mxu0 0
        %3874 = vmatmul.mubr.bf16.gmra.mrb[0].mxu0 %v3794
        %v3875 = vpop.f32.mrb[0].mxu0
        %v3876 = vadd.f32 %v3691, %v3875
        %v3877 = vpop.f32.mrb[0].mxu0
        %v3878 = vadd.f32 %v3693, %v3877
        %v3879 = vpop.f32.mrb[0].mxu0
        %v3880 = vadd.f32 %v3695, %v3879
        %v3881 = vpop.f32.mrb[0].mxu0
        %v3882 = vadd.f32 %v3697, %v3881
        %3883 = vmatprep.mubr.bf16.mxu0 0
        %3884 = vmatmul.mubr.bf16.gmra.mrb[0].mxu0 %v3797
        %v3885 = vpop.f32.mrb[0].mxu0
        %v3886 = vadd.f32 %v3701, %v3885
        %v3887 = vpop.f32.mrb[0].mxu0
        %v3888 = vadd.f32 %v3703, %v3887
        %v3889 = vpop.f32.mrb[0].mxu0
        %v3890 = vadd.f32 %v3705, %v3889
        %v3891 = vpop.f32.mrb[0].mxu0
        %v3892 = vadd.f32 %v3707, %v3891
        %3893 = vmatprep.mubr.bf16.mxu0 0
        %3894 = vmatmul.mubr.bf16.gmra.mrb[0].mxu0 %v3800
        %v3895 = vpop.f32.mrb[0].mxu0
        %v3896 = vadd.f32 %v3711, %v3895
        %v3897 = vpop.f32.mrb[0].mxu0
        %v3898 = vadd.f32 %v3713, %v3897
        %v3899 = vpop.f32.mrb[0].mxu0
        %v3900 = vadd.f32 %v3715, %v3899
        %v3901 = vpop.f32.mrb[0].mxu0
        %v3902 = vadd.f32 %v3717, %v3901
        %3903 = vmatprep.mubr.bf16.mxu0 0
        %3904 = vmatmul.mubr.bf16.gmra.mrb[0].mxu0 %v3803
        %v3905 = vpop.f32.mrb[0].mxu0
        %v3906 = vadd.f32 %v3721, %v3905
        %v3907 = vpop.f32.mrb[0].mxu0
        %v3908 = vadd.f32 %v3723, %v3907
        %v3909 = vpop.f32.mrb[0].mxu0
        %v3910 = vadd.f32 %v3725, %v3909
        %v3911 = vpop.f32.mrb[0].mxu0
        %v3912 = vadd.f32 %v3727, %v3911
        %3913 = vdwg.mxu0
        %v3914 = vrot.slane %v3463, 2
        %v3915 = vrot.slane %v3464, 2
        %v3916 = vrot.slane %v3465, 2
        %v3917 = vrot.slane %v3466, 2
        %v3918 = vrot.slane %v3467, 2
        %v3919 = vrot.slane %v3468, 2
        %v3920 = vrot.slane %v3469, 2
        %v3921 = vrot.slane %v3470, 2
        %v3922 = vrot.slane %v3471, 2
        %v3923 = vrot.slane %v3472, 2
        %v3924 = vrot.slane %v3473, 2
        %v3925 = vrot.slane %v3474, 2
        %v3926 = vrot.slane %v3475, 2
        %v3927 = vrot.slane %v3476, 2
        %v3928 = vsel %vm1299, %v3926, %v3927
        %v3929 = vsel %vm1299, %v3925, %v3926
        %v3930 = vsel %vm1299, %v3924, %v3925
        %v3931 = vsel %vm1299, %v3923, %v3924
        %v3932 = vsel %vm1299, %v3922, %v3923
        %v3933 = vsel %vm1299, %v3921, %v3922
        %v3934 = vsel %vm1299, %v3920, %v3921
        %v3935 = vsel %vm1299, %v3919, %v3920
        %v3936 = vsel %vm1299, %v3918, %v3919
        %v3937 = vsel %vm1299, %v3917, %v3918
        %v3938 = vsel %vm1299, %v3916, %v3917
        %v3939 = vsel %vm1299, %v3915, %v3916
        %v3940 = vsel %vm1299, %v3914, %v3915
        %v3941 = vsel %vm1299, %v3927, %v3914
        %v3942 = vpack.c.bf16 %v3939, %v3940
        %v3943 = vpack.c.bf16 %v3937, %v3938
        %v3944 = vpack.c.bf16 %v3935, %v3936
        %v3945 = vpack.c.bf16 %v3933, %v3934
        %v3946 = vpack.c.bf16 %v3931, %v3932
        %v3947 = vpack.c.bf16 %v3929, %v3930
        %v3948 = vpack.c.bf16 %v3941, %v3928
        %s3949 = scalar_lea.vmem %s7, 176
        %v3950 = vld [vmem:[%s3949] sm:$0xff]
        %v3951 = vld [vmem:[%s3949 + $0x8] sm:$0xff]
        %v3952 = vld [vmem:[%s3949 + $0x10] sm:$0xff]
        %v3953 = vld [vmem:[%s3949 + $0x18] sm:$0xff]
        %v3954 = vld [vmem:[%s3949 + $0x20] sm:$0xff]
        %v3955 = vld [vmem:[%s3949 + $0x28] sm:$0xff]
        %v3956 = vld [vmem:[%s3949 + $0x30] sm:$0xff]
        %v3957 = vld [vmem:[%s3949 + $0x38] sm:$0xff]
        %v3958 = vld [vmem:[%s3949 + $0x40] sm:$0xff]
        %v3959 = vld [vmem:[%s3949 + $0x48] sm:$0xff]
        %v3960 = vld [vmem:[%s3949 + $0x50] sm:$0x33]
        %v3972 = vunpack.c.l.b16 %v3950
        %v3973 = vunpack.c.h.b16 %v3950
        %v3974 = vunpack.c.l.b16 %v3951
        %v3975 = vunpack.c.h.b16 %v3951
        %v3976 = vunpack.c.l.b16 %v3952
        %v3977 = vunpack.c.h.b16 %v3952
        %v3978 = vunpack.c.l.b16 %v3953
        %v3979 = vunpack.c.h.b16 %v3953
        %v3980 = vunpack.c.l.b16 %v3954
        %v3981 = vunpack.c.h.b16 %v3954
        %v3982 = vunpack.c.l.b16 %v3955
        %v3983 = vunpack.c.h.b16 %v3955
        %v3984 = vunpack.c.l.b16 %v3956
        %v3985 = vunpack.c.h.b16 %v3956
        %v3986 = vunpack.c.l.b16 %v3957
        %v3987 = vunpack.c.h.b16 %v3957
        %v3988 = vunpack.c.l.b16 %v3958
        %v3989 = vunpack.c.h.b16 %v3958
        %v3990 = vunpack.c.l.b16 %v3959
        %v3991 = vunpack.c.h.b16 %v3959
        %v3992 = vunpack.c.l.b16 %v3960
        %v3993 = vunpack.c.h.b16 %v3960
        %v3994 = vpack.c.b16 %v3974, %v3972
        %v3995 = vpack.c.b16 %v3975, %v3973
        %v3996 = vpack.c.b16 %v3978, %v3976
        %v3997 = vpack.c.b16 %v3979, %v3977
        %v3998 = vpack.c.b16 %v3982, %v3980
        %v3999 = vpack.c.b16 %v3983, %v3981
        %v4000 = vpack.c.b16 %v3986, %v3984
        %v4001 = vpack.c.b16 %v3987, %v3985
        %v4002 = vpack.c.b16 %v3990, %v3988
        %v4003 = vpack.c.b16 %v3991, %v3989
        %v4004 = vpack.c.b16 %v3992, %v3992
        %v4005 = vpack.c.b16 %v3993, %v3993
        %v4017 = vsel %vm3597, %v3942, 0
        %v4020 = vsel %vm3597, %v3943, 0
        %v4023 = vsel %vm3597, %v3944, 0
        %v4026 = vsel %vm3597, %v3945, 0
        %v4029 = vsel %vm3597, %v3946, 0
        %v4032 = vsel %vm3597, %v3947, 0
        %v4035 = vsel %vm3597, %v3948, 0
        %v4038 = vsel %vm3619, %v4004, 0
        %v4041 = vsel %vm3619, %v4005, 0
        %4043 = vmatprep.subr.bf16.mxu0 %v3995
        %4044 = vmatpush1.bf16.msra.mxu0 %v3994
        %4045 = vmatprep.subr.bf16.mxu0 %v3997
        %4046 = vmatpush1.bf16.msra.mxu0 %v3996
        %4047 = vmatprep.subr.bf16.mxu0 %v3999
        %4048 = vmatpush1.bf16.msra.mxu0 %v3998
        %4049 = vmatprep.subr.bf16.mxu0 %v4001
        %4050 = vmatpush1.bf16.msra.mxu0 %v4000
        %4051 = vmatprep.subr.bf16.mxu0 %v4003
        %4052 = vmatpush1.bf16.msra.mxu0 %v4002
        %4053 = vmatprep.subr.bf16.mxu0 %v4041
        %4054 = vmatpush1.bf16.msra.mxu0 %v4038
        %4055 = vmatprep.subr.bf16.mxu0 0
        %4056 = vmatpush1.bf16.msra.mxu0 0
        %4057 = vmatprep.subr.bf16.mxu0 0
        %4058 = vmatpush1.bf16.msra.mxu0 0
        %4059 = vmatprep.subr.bf16.mxu0 0
        %4060 = vmatpush1.bf16.msra.mxu0 0
        %4061 = vmatprep.subr.bf16.mxu0 0
        %4062 = vmatpush1.bf16.msra.mxu0 0
        %4063 = vmatprep.subr.bf16.mxu0 0
        %4064 = vmatpush1.bf16.msra.mxu0 0
        %4065 = vmatprep.subr.bf16.mxu0 0
        %4066 = vmatpush1.bf16.msra.mxu0 0
        %4067 = vmatprep.subr.bf16.mxu0 0
        %4068 = vmatpush1.bf16.msra.mxu0 0
        %4069 = vmatprep.subr.bf16.mxu0 0
        %4070 = vmatpush1.bf16.msra.mxu0 0
        %4071 = vmatprep.subr.bf16.mxu0 0
        %4072 = vmatpush1.bf16.msra.mxu0 0
        %4073 = vmatprep.subr.bf16.mxu0 0
        %4074 = vmatpush1.bf16.msra.mxu0 0
        %4075 = vmatprep.mubr.bf16.mxu0 0
        %4076 = vmatmul.mubr.bf16.gmra.mrb[0].mxu0 %v4017
        %v4077 = vpop.f32.mrb[0].mxu0
        %v4078 = vadd.f32 0.0, %v4077
        %v4079 = vpop.f32.mrb[0].mxu0
        %v4080 = vadd.f32 0.0, %v4079
        %v4081 = vpop.f32.mrb[0].mxu0
        %v4082 = vadd.f32 0.0, %v4081
        %v4083 = vpop.f32.mrb[0].mxu0
        %v4084 = vadd.f32 0.0, %v4083
        %4085 = vmatprep.mubr.bf16.mxu0 0
        %4086 = vmatmul.mubr.bf16.gmra.mrb[0].mxu0 %v4020
        %v4087 = vpop.f32.mrb[0].mxu0
        %v4088 = vadd.f32 0.0, %v4087
        %v4089 = vpop.f32.mrb[0].mxu0
        %v4090 = vadd.f32 0.0, %v4089
        %v4091 = vpop.f32.mrb[0].mxu0
        %v4092 = vadd.f32 0.0, %v4091
        %v4093 = vpop.f32.mrb[0].mxu0
        %v4094 = vadd.f32 0.0, %v4093
        %4095 = vmatprep.mubr.bf16.mxu0 0
        %4096 = vmatmul.mubr.bf16.gmra.mrb[0].mxu0 %v4023
        %v4097 = vpop.f32.mrb[0].mxu0
        %v4098 = vadd.f32 0.0, %v4097
        %v4099 = vpop.f32.mrb[0].mxu0
        %v4100 = vadd.f32 0.0, %v4099
        %v4101 = vpop.f32.mrb[0].mxu0
        %v4102 = vadd.f32 0.0, %v4101
        %v4103 = vpop.f32.mrb[0].mxu0
        %v4104 = vadd.f32 0.0, %v4103
        %4105 = vmatprep.mubr.bf16.mxu0 0
        %4106 = vmatmul.mubr.bf16.gmra.mrb[0].mxu0 %v4026
        %v4107 = vpop.f32.mrb[0].mxu0
        %v4108 = vadd.f32 0.0, %v4107
        %v4109 = vpop.f32.mrb[0].mxu0
        %v4110 = vadd.f32 0.0, %v4109
        %v4111 = vpop.f32.mrb[0].mxu0
        %v4112 = vadd.f32 0.0, %v4111
        %v4113 = vpop.f32.mrb[0].mxu0
        %v4114 = vadd.f32 0.0, %v4113
        %4115 = vmatprep.mubr.bf16.mxu0 0
        %4116 = vmatmul.mubr.bf16.gmra.mrb[0].mxu0 %v4029
        %v4117 = vpop.f32.mrb[0].mxu0
        %v4118 = vadd.f32 0.0, %v4117
        %v4119 = vpop.f32.mrb[0].mxu0
        %v4120 = vadd.f32 0.0, %v4119
        %v4121 = vpop.f32.mrb[0].mxu0
        %v4122 = vadd.f32 0.0, %v4121
        %v4123 = vpop.f32.mrb[0].mxu0
        %v4124 = vadd.f32 0.0, %v4123
        %4125 = vmatprep.mubr.bf16.mxu0 0
        %4126 = vmatmul.mubr.bf16.gmra.mrb[0].mxu0 %v4032
        %v4127 = vpop.f32.mrb[0].mxu0
        %v4128 = vadd.f32 0.0, %v4127
        %v4129 = vpop.f32.mrb[0].mxu0
        %v4130 = vadd.f32 0.0, %v4129
        %v4131 = vpop.f32.mrb[0].mxu0
        %v4132 = vadd.f32 0.0, %v4131
        %v4133 = vpop.f32.mrb[0].mxu0
        %v4134 = vadd.f32 0.0, %v4133
        %4135 = vmatprep.mubr.bf16.mxu0 0
        %4136 = vmatmul.mubr.bf16.gmra.mrb[0].mxu0 %v4035
        %v4137 = vpop.f32.mrb[0].mxu0
        %v4138 = vadd.f32 0.0, %v4137
        %v4139 = vpop.f32.mrb[0].mxu0
        %v4140 = vadd.f32 0.0, %v4139
        %v4141 = vpop.f32.mrb[0].mxu0
        %v4142 = vadd.f32 0.0, %v4141
        %v4143 = vpop.f32.mrb[0].mxu0
        %v4144 = vadd.f32 0.0, %v4143
        %4145 = vdwg.mxu0
        %v4146 = vadd.f32 %v3846, %v4078
        %v4147 = vadd.f32 %v3848, %v4080
        %v4148 = vadd.f32 %v3850, %v4082
        %v4149 = vadd.f32 %v3852, %v4084
        %v4150 = vadd.f32 %v3856, %v4088
        %v4151 = vadd.f32 %v3858, %v4090
        %v4152 = vadd.f32 %v3860, %v4092
        %v4153 = vadd.f32 %v3862, %v4094
        %v4154 = vadd.f32 %v3866, %v4098
        %v4155 = vadd.f32 %v3868, %v4100
        %v4156 = vadd.f32 %v3870, %v4102
        %v4157 = vadd.f32 %v3872, %v4104
        %v4158 = vadd.f32 %v3876, %v4108
        %v4159 = vadd.f32 %v3878, %v4110
        %v4160 = vadd.f32 %v3880, %v4112
        %v4161 = vadd.f32 %v3882, %v4114
        %v4162 = vadd.f32 %v3886, %v4118
        %v4163 = vadd.f32 %v3888, %v4120
        %v4164 = vadd.f32 %v3890, %v4122
        %v4165 = vadd.f32 %v3892, %v4124
        %v4166 = vadd.f32 %v3896, %v4128
        %v4167 = vadd.f32 %v3898, %v4130
        %v4168 = vadd.f32 %v3900, %v4132
        %v4169 = vadd.f32 %v3902, %v4134
        %v4170 = vadd.f32 %v3906, %v4138
        %v4171 = vadd.f32 %v3908, %v4140
        %v4172 = vadd.f32 %v3910, %v4142
        %v4173 = vadd.f32 %v3912, %v4144
        %v4174 = vrot.slane %v3463, 3
        %v4175 = vrot.slane %v3464, 3
        %v4176 = vrot.slane %v3465, 3
        %v4177 = vrot.slane %v3466, 3
        %v4178 = vrot.slane %v3467, 3
        %v4179 = vrot.slane %v3468, 3
        %v4180 = vrot.slane %v3469, 3
        %v4181 = vrot.slane %v3470, 3
        %v4182 = vrot.slane %v3471, 3
        %v4183 = vrot.slane %v3472, 3
        %v4184 = vrot.slane %v3473, 3
        %v4185 = vrot.slane %v3474, 3
        %v4186 = vrot.slane %v3475, 3
        %v4187 = vrot.slane %v3476, 3
        %v4188 = vsel %vm1710, %v4186, %v4187
        %v4189 = vsel %vm1710, %v4185, %v4186
        %v4190 = vsel %vm1710, %v4184, %v4185
        %v4191 = vsel %vm1710, %v4183, %v4184
        %v4192 = vsel %vm1710, %v4182, %v4183
        %v4193 = vsel %vm1710, %v4181, %v4182
        %v4194 = vsel %vm1710, %v4180, %v4181
        %v4195 = vsel %vm1710, %v4179, %v4180
        %v4196 = vsel %vm1710, %v4178, %v4179
        %v4197 = vsel %vm1710, %v4177, %v4178
        %v4198 = vsel %vm1710, %v4176, %v4177
        %v4199 = vsel %vm1710, %v4175, %v4176
        %v4200 = vsel %vm1710, %v4174, %v4175
        %v4201 = vsel %vm1710, %v4187, %v4174
        %v4202 = vpack.c.bf16 %v4199, %v4200
        %v4203 = vpack.c.bf16 %v4197, %v4198
        %v4204 = vpack.c.bf16 %v4195, %v4196
        %v4205 = vpack.c.bf16 %v4193, %v4194
        %v4206 = vpack.c.bf16 %v4191, %v4192
        %v4207 = vpack.c.bf16 %v4189, %v4190
        %v4208 = vpack.c.bf16 %v4201, %v4188
        %s4209 = scalar_lea.vmem %s7, 264
        %v4210 = vld [vmem:[%s4209] sm:$0xff]
        %v4211 = vld [vmem:[%s4209 + $0x8] sm:$0xff]
        %v4212 = vld [vmem:[%s4209 + $0x10] sm:$0xff]
        %v4213 = vld [vmem:[%s4209 + $0x18] sm:$0xff]
        %v4214 = vld [vmem:[%s4209 + $0x20] sm:$0xff]
        %v4215 = vld [vmem:[%s4209 + $0x28] sm:$0xff]
        %v4216 = vld [vmem:[%s4209 + $0x30] sm:$0xff]
        %v4217 = vld [vmem:[%s4209 + $0x38] sm:$0xff]
        %v4218 = vld [vmem:[%s4209 + $0x40] sm:$0xff]
        %v4219 = vld [vmem:[%s4209 + $0x48] sm:$0xff]
        %v4220 = vld [vmem:[%s4209 + $0x50] sm:$0x33]
        %v4232 = vunpack.c.l.b16 %v4210
        %v4233 = vunpack.c.h.b16 %v4210
        %v4234 = vunpack.c.l.b16 %v4211
        %v4235 = vunpack.c.h.b16 %v4211
        %v4236 = vunpack.c.l.b16 %v4212
        %v4237 = vunpack.c.h.b16 %v4212
        %v4238 = vunpack.c.l.b16 %v4213
        %v4239 = vunpack.c.h.b16 %v4213
        %v4240 = vunpack.c.l.b16 %v4214
        %v4241 = vunpack.c.h.b16 %v4214
        %v4242 = vunpack.c.l.b16 %v4215
        %v4243 = vunpack.c.h.b16 %v4215
        %v4244 = vunpack.c.l.b16 %v4216
        %v4245 = vunpack.c.h.b16 %v4216
        %v4246 = vunpack.c.l.b16 %v4217
        %v4247 = vunpack.c.h.b16 %v4217
        %v4248 = vunpack.c.l.b16 %v4218
        %v4249 = vunpack.c.h.b16 %v4218
        %v4250 = vunpack.c.l.b16 %v4219
        %v4251 = vunpack.c.h.b16 %v4219
        %v4252 = vunpack.c.l.b16 %v4220
        %v4253 = vunpack.c.h.b16 %v4220
        %v4254 = vpack.c.b16 %v4234, %v4232
        %v4255 = vpack.c.b16 %v4235, %v4233
        %v4256 = vpack.c.b16 %v4238, %v4236
        %v4257 = vpack.c.b16 %v4239, %v4237
        %v4258 = vpack.c.b16 %v4242, %v4240
        %v4259 = vpack.c.b16 %v4243, %v4241
        %v4260 = vpack.c.b16 %v4246, %v4244
        %v4261 = vpack.c.b16 %v4247, %v4245
        %v4262 = vpack.c.b16 %v4250, %v4248
        %v4263 = vpack.c.b16 %v4251, %v4249
        %v4264 = vpack.c.b16 %v4252, %v4252
        %v4265 = vpack.c.b16 %v4253, %v4253
        %v4277 = vsel %vm3597, %v4202, 0
        %v4280 = vsel %vm3597, %v4203, 0
        %v4283 = vsel %vm3597, %v4204, 0
        %v4286 = vsel %vm3597, %v4205, 0
        %v4289 = vsel %vm3597, %v4206, 0
        %v4292 = vsel %vm3597, %v4207, 0
        %v4295 = vsel %vm3597, %v4208, 0
        %v4298 = vsel %vm3619, %v4264, 0
        %v4301 = vsel %vm3619, %v4265, 0
        %4303 = vmatprep.subr.bf16.mxu0 %v4255
        %4304 = vmatpush1.bf16.msra.mxu0 %v4254
        %4305 = vmatprep.subr.bf16.mxu0 %v4257
        %4306 = vmatpush1.bf16.msra.mxu0 %v4256
        %4307 = vmatprep.subr.bf16.mxu0 %v4259
        %4308 = vmatpush1.bf16.msra.mxu0 %v4258
        %4309 = vmatprep.subr.bf16.mxu0 %v4261
        %4310 = vmatpush1.bf16.msra.mxu0 %v4260
        %4311 = vmatprep.subr.bf16.mxu0 %v4263
        %4312 = vmatpush1.bf16.msra.mxu0 %v4262
        %4313 = vmatprep.subr.bf16.mxu0 %v4301
        %4314 = vmatpush1.bf16.msra.mxu0 %v4298
        %4315 = vmatprep.subr.bf16.mxu0 0
        %4316 = vmatpush1.bf16.msra.mxu0 0
        %4317 = vmatprep.subr.bf16.mxu0 0
        %4318 = vmatpush1.bf16.msra.mxu0 0
        %4319 = vmatprep.subr.bf16.mxu0 0
        %4320 = vmatpush1.bf16.msra.mxu0 0
        %4321 = vmatprep.subr.bf16.mxu0 0
        %4322 = vmatpush1.bf16.msra.mxu0 0
        %4323 = vmatprep.subr.bf16.mxu0 0
        %4324 = vmatpush1.bf16.msra.mxu0 0
        %4325 = vmatprep.subr.bf16.mxu0 0
        %4326 = vmatpush1.bf16.msra.mxu0 0
        %4327 = vmatprep.subr.bf16.mxu0 0
        %4328 = vmatpush1.bf16.msra.mxu0 0
        %4329 = vmatprep.subr.bf16.mxu0 0
        %4330 = vmatpush1.bf16.msra.mxu0 0
        %4331 = vmatprep.subr.bf16.mxu0 0
        %4332 = vmatpush1.bf16.msra.mxu0 0
        %4333 = vmatprep.subr.bf16.mxu0 0
        %4334 = vmatpush1.bf16.msra.mxu0 0
        %4335 = vmatprep.mubr.bf16.mxu0 0
        %4336 = vmatmul.mubr.bf16.gmra.mrb[0].mxu0 %v4277
        %v4337 = vpop.f32.mrb[0].mxu0
        %v4338 = vadd.f32 0.0, %v4337
        %v4339 = vpop.f32.mrb[0].mxu0
        %v4340 = vadd.f32 0.0, %v4339
        %v4341 = vpop.f32.mrb[0].mxu0
        %v4342 = vadd.f32 0.0, %v4341
        %v4343 = vpop.f32.mrb[0].mxu0
        %v4344 = vadd.f32 0.0, %v4343
        %4345 = vmatprep.mubr.bf16.mxu0 0
        %4346 = vmatmul.mubr.bf16.gmra.mrb[0].mxu0 %v4280
        %v4347 = vpop.f32.mrb[0].mxu0
        %v4348 = vadd.f32 0.0, %v4347
        %v4349 = vpop.f32.mrb[0].mxu0
        %v4350 = vadd.f32 0.0, %v4349
        %v4351 = vpop.f32.mrb[0].mxu0
        %v4352 = vadd.f32 0.0, %v4351
        %v4353 = vpop.f32.mrb[0].mxu0
        %v4354 = vadd.f32 0.0, %v4353
        %4355 = vmatprep.mubr.bf16.mxu0 0
        %4356 = vmatmul.mubr.bf16.gmra.mrb[0].mxu0 %v4283
        %v4357 = vpop.f32.mrb[0].mxu0
        %v4358 = vadd.f32 0.0, %v4357
        %v4359 = vpop.f32.mrb[0].mxu0
        %v4360 = vadd.f32 0.0, %v4359
        %v4361 = vpop.f32.mrb[0].mxu0
        %v4362 = vadd.f32 0.0, %v4361
        %v4363 = vpop.f32.mrb[0].mxu0
        %v4364 = vadd.f32 0.0, %v4363
        %4365 = vmatprep.mubr.bf16.mxu0 0
        %4366 = vmatmul.mubr.bf16.gmra.mrb[0].mxu0 %v4286
        %v4367 = vpop.f32.mrb[0].mxu0
        %v4368 = vadd.f32 0.0, %v4367
        %v4369 = vpop.f32.mrb[0].mxu0
        %v4370 = vadd.f32 0.0, %v4369
        %v4371 = vpop.f32.mrb[0].mxu0
        %v4372 = vadd.f32 0.0, %v4371
        %v4373 = vpop.f32.mrb[0].mxu0
        %v4374 = vadd.f32 0.0, %v4373
        %4375 = vmatprep.mubr.bf16.mxu0 0
        %4376 = vmatmul.mubr.bf16.gmra.mrb[0].mxu0 %v4289
        %v4377 = vpop.f32.mrb[0].mxu0
        %v4378 = vadd.f32 0.0, %v4377
        %v4379 = vpop.f32.mrb[0].mxu0
        %v4380 = vadd.f32 0.0, %v4379
        %v4381 = vpop.f32.mrb[0].mxu0
        %v4382 = vadd.f32 0.0, %v4381
        %v4383 = vpop.f32.mrb[0].mxu0
        %v4384 = vadd.f32 0.0, %v4383
        %4385 = vmatprep.mubr.bf16.mxu0 0
        %4386 = vmatmul.mubr.bf16.gmra.mrb[0].mxu0 %v4292
        %v4387 = vpop.f32.mrb[0].mxu0
        %v4388 = vadd.f32 0.0, %v4387
        %v4389 = vpop.f32.mrb[0].mxu0
        %v4390 = vadd.f32 0.0, %v4389
        %v4391 = vpop.f32.mrb[0].mxu0
        %v4392 = vadd.f32 0.0, %v4391
        %v4393 = vpop.f32.mrb[0].mxu0
        %v4394 = vadd.f32 0.0, %v4393
        %4395 = vmatprep.mubr.bf16.mxu0 0
        %4396 = vmatmul.mubr.bf16.gmra.mrb[0].mxu0 %v4295
        %v4397 = vpop.f32.mrb[0].mxu0
        %v4398 = vadd.f32 0.0, %v4397
        %v4399 = vpop.f32.mrb[0].mxu0
        %v4400 = vadd.f32 0.0, %v4399
        %v4401 = vpop.f32.mrb[0].mxu0
        %v4402 = vadd.f32 0.0, %v4401
        %v4403 = vpop.f32.mrb[0].mxu0
        %v4404 = vadd.f32 0.0, %v4403
        %4405 = vdwg.mxu0
        %v4406 = vadd.f32 %v4146, %v4338
        %v4407 = vadd.f32 %v4147, %v4340
        %v4408 = vadd.f32 %v4148, %v4342
        %v4409 = vadd.f32 %v4149, %v4344
        %v4410 = vadd.f32 %v4150, %v4348
        %v4411 = vadd.f32 %v4151, %v4350
        %v4412 = vadd.f32 %v4152, %v4352
        %v4413 = vadd.f32 %v4153, %v4354
        %v4414 = vadd.f32 %v4154, %v4358
        %v4415 = vadd.f32 %v4155, %v4360
        %v4416 = vadd.f32 %v4156, %v4362
        %v4417 = vadd.f32 %v4157, %v4364
        %v4418 = vadd.f32 %v4158, %v4368
        %v4419 = vadd.f32 %v4159, %v4370
        %v4420 = vadd.f32 %v4160, %v4372
        %v4421 = vadd.f32 %v4161, %v4374
        %v4422 = vadd.f32 %v4162, %v4378
        %v4423 = vadd.f32 %v4163, %v4380
        %v4424 = vadd.f32 %v4164, %v4382
        %v4425 = vadd.f32 %v4165, %v4384
        %v4426 = vadd.f32 %v4166, %v4388
        %v4427 = vadd.f32 %v4167, %v4390
        %v4428 = vadd.f32 %v4168, %v4392
        %v4429 = vadd.f32 %v4169, %v4394
        %v4430 = vadd.f32 %v4170, %v4398
        %v4431 = vadd.f32 %v4171, %v4400
        %v4432 = vadd.f32 %v4172, %v4402
        %v4433 = vadd.f32 %v4173, %v4404
        %v4434 = vrot.slane %v3463, 4
        %v4435 = vrot.slane %v3464, 4
        %v4436 = vrot.slane %v3465, 4
        %v4437 = vrot.slane %v3466, 4
        %v4438 = vrot.slane %v3467, 4
        %v4439 = vrot.slane %v3468, 4
        %v4440 = vrot.slane %v3469, 4
        %v4441 = vrot.slane %v3470, 4
        %v4442 = vrot.slane %v3471, 4
        %v4443 = vrot.slane %v3472, 4
        %v4444 = vrot.slane %v3473, 4
        %v4445 = vrot.slane %v3474, 4
        %v4446 = vrot.slane %v3475, 4
        %v4447 = vrot.slane %v3476, 4
        %v4448 = vsel %vm2121, %v4446, %v4447
        %v4449 = vsel %vm2121, %v4445, %v4446
        %v4450 = vsel %vm2121, %v4444, %v4445
        %v4451 = vsel %vm2121, %v4443, %v4444
        %v4452 = vsel %vm2121, %v4442, %v4443
        %v4453 = vsel %vm2121, %v4441, %v4442
        %v4454 = vsel %vm2121, %v4440, %v4441
        %v4455 = vsel %vm2121, %v4439, %v4440
        %v4456 = vsel %vm2121, %v4438, %v4439
        %v4457 = vsel %vm2121, %v4437, %v4438
        %v4458 = vsel %vm2121, %v4436, %v4437
        %v4459 = vsel %vm2121, %v4435, %v4436
        %v4460 = vsel %vm2121, %v4434, %v4435
        %v4461 = vsel %vm2121, %v4447, %v4434
        %v4462 = vpack.c.bf16 %v4459, %v4460
        %v4463 = vpack.c.bf16 %v4457, %v4458
        %v4464 = vpack.c.bf16 %v4455, %v4456
        %v4465 = vpack.c.bf16 %v4453, %v4454
        %v4466 = vpack.c.bf16 %v4451, %v4452
        %v4467 = vpack.c.bf16 %v4449, %v4450
        %v4468 = vpack.c.bf16 %v4461, %v4448
        %s4469 = scalar_lea.vmem %s7, 352
        %v4470 = vld [vmem:[%s4469] sm:$0xff]
        %v4471 = vld [vmem:[%s4469 + $0x8] sm:$0xff]
        %v4472 = vld [vmem:[%s4469 + $0x10] sm:$0xff]
        %v4473 = vld [vmem:[%s4469 + $0x18] sm:$0xff]
        %v4474 = vld [vmem:[%s4469 + $0x20] sm:$0xff]
        %v4475 = vld [vmem:[%s4469 + $0x28] sm:$0xff]
        %v4476 = vld [vmem:[%s4469 + $0x30] sm:$0xff]
        %v4477 = vld [vmem:[%s4469 + $0x38] sm:$0xff]
        %v4478 = vld [vmem:[%s4469 + $0x40] sm:$0xff]
        %v4479 = vld [vmem:[%s4469 + $0x48] sm:$0xff]
        %v4480 = vld [vmem:[%s4469 + $0x50] sm:$0x33]
        %v4492 = vunpack.c.l.b16 %v4470
        %v4493 = vunpack.c.h.b16 %v4470
        %v4494 = vunpack.c.l.b16 %v4471
        %v4495 = vunpack.c.h.b16 %v4471
        %v4496 = vunpack.c.l.b16 %v4472
        %v4497 = vunpack.c.h.b16 %v4472
        %v4498 = vunpack.c.l.b16 %v4473
        %v4499 = vunpack.c.h.b16 %v4473
        %v4500 = vunpack.c.l.b16 %v4474
        %v4501 = vunpack.c.h.b16 %v4474
        %v4502 = vunpack.c.l.b16 %v4475
        %v4503 = vunpack.c.h.b16 %v4475
        %v4504 = vunpack.c.l.b16 %v4476
        %v4505 = vunpack.c.h.b16 %v4476
        %v4506 = vunpack.c.l.b16 %v4477
        %v4507 = vunpack.c.h.b16 %v4477
        %v4508 = vunpack.c.l.b16 %v4478
        %v4509 = vunpack.c.h.b16 %v4478
        %v4510 = vunpack.c.l.b16 %v4479
        %v4511 = vunpack.c.h.b16 %v4479
        %v4512 = vunpack.c.l.b16 %v4480
        %v4513 = vunpack.c.h.b16 %v4480
        %v4514 = vpack.c.b16 %v4494, %v4492
        %v4515 = vpack.c.b16 %v4495, %v4493
        %v4516 = vpack.c.b16 %v4498, %v4496
        %v4517 = vpack.c.b16 %v4499, %v4497
        %v4518 = vpack.c.b16 %v4502, %v4500
        %v4519 = vpack.c.b16 %v4503, %v4501
        %v4520 = vpack.c.b16 %v4506, %v4504
        %v4521 = vpack.c.b16 %v4507, %v4505
        %v4522 = vpack.c.b16 %v4510, %v4508
        %v4523 = vpack.c.b16 %v4511, %v4509
        %v4524 = vpack.c.b16 %v4512, %v4512
        %v4525 = vpack.c.b16 %v4513, %v4513
        %v4537 = vsel %vm3597, %v4462, 0
        %v4540 = vsel %vm3597, %v4463, 0
        %v4543 = vsel %vm3597, %v4464, 0
        %v4546 = vsel %vm3597, %v4465, 0
        %v4549 = vsel %vm3597, %v4466, 0
        %v4552 = vsel %vm3597, %v4467, 0
        %v4555 = vsel %vm3597, %v4468, 0
        %v4558 = vsel %vm3619, %v4524, 0
        %v4561 = vsel %vm3619, %v4525, 0
        %4563 = vmatprep.subr.bf16.mxu0 %v4515
        %4564 = vmatpush1.bf16.msra.mxu0 %v4514
        %4565 = vmatprep.subr.bf16.mxu0 %v4517
        %4566 = vmatpush1.bf16.msra.mxu0 %v4516
        %4567 = vmatprep.subr.bf16.mxu0 %v4519
        %4568 = vmatpush1.bf16.msra.mxu0 %v4518
        %4569 = vmatprep.subr.bf16.mxu0 %v4521
        %4570 = vmatpush1.bf16.msra.mxu0 %v4520
        %4571 = vmatprep.subr.bf16.mxu0 %v4523
        %4572 = vmatpush1.bf16.msra.mxu0 %v4522
        %4573 = vmatprep.subr.bf16.mxu0 %v4561
        %4574 = vmatpush1.bf16.msra.mxu0 %v4558
        %4575 = vmatprep.subr.bf16.mxu0 0
        %4576 = vmatpush1.bf16.msra.mxu0 0
        %4577 = vmatprep.subr.bf16.mxu0 0
        %4578 = vmatpush1.bf16.msra.mxu0 0
        %4579 = vmatprep.subr.bf16.mxu0 0
        %4580 = vmatpush1.bf16.msra.mxu0 0
        %4581 = vmatprep.subr.bf16.mxu0 0
        %4582 = vmatpush1.bf16.msra.mxu0 0
        %4583 = vmatprep.subr.bf16.mxu0 0
        %4584 = vmatpush1.bf16.msra.mxu0 0
        %4585 = vmatprep.subr.bf16.mxu0 0
        %4586 = vmatpush1.bf16.msra.mxu0 0
        %4587 = vmatprep.subr.bf16.mxu0 0
        %4588 = vmatpush1.bf16.msra.mxu0 0
        %4589 = vmatprep.subr.bf16.mxu0 0
        %4590 = vmatpush1.bf16.msra.mxu0 0
        %4591 = vmatprep.subr.bf16.mxu0 0
        %4592 = vmatpush1.bf16.msra.mxu0 0
        %4593 = vmatprep.subr.bf16.mxu0 0
        %4594 = vmatpush1.bf16.msra.mxu0 0
        %4595 = vmatprep.mubr.bf16.mxu0 0
        %4596 = vmatmul.mubr.bf16.gmra.mrb[0].mxu0 %v4537
        %v4597 = vpop.f32.mrb[0].mxu0
        %v4598 = vadd.f32 0.0, %v4597
        %v4599 = vpop.f32.mrb[0].mxu0
        %v4600 = vadd.f32 0.0, %v4599
        %v4601 = vpop.f32.mrb[0].mxu0
        %v4602 = vadd.f32 0.0, %v4601
        %v4603 = vpop.f32.mrb[0].mxu0
        %v4604 = vadd.f32 0.0, %v4603
        %4605 = vmatprep.mubr.bf16.mxu0 0
        %4606 = vmatmul.mubr.bf16.gmra.mrb[0].mxu0 %v4540
        %v4607 = vpop.f32.mrb[0].mxu0
        %v4608 = vadd.f32 0.0, %v4607
        %v4609 = vpop.f32.mrb[0].mxu0
        %v4610 = vadd.f32 0.0, %v4609
        %v4611 = vpop.f32.mrb[0].mxu0
        %v4612 = vadd.f32 0.0, %v4611
        %v4613 = vpop.f32.mrb[0].mxu0
        %v4614 = vadd.f32 0.0, %v4613
        %4615 = vmatprep.mubr.bf16.mxu0 0
        %4616 = vmatmul.mubr.bf16.gmra.mrb[0].mxu0 %v4543
        %v4617 = vpop.f32.mrb[0].mxu0
        %v4618 = vadd.f32 0.0, %v4617
        %v4619 = vpop.f32.mrb[0].mxu0
        %v4620 = vadd.f32 0.0, %v4619
        %v4621 = vpop.f32.mrb[0].mxu0
        %v4622 = vadd.f32 0.0, %v4621
        %v4623 = vpop.f32.mrb[0].mxu0
        %v4624 = vadd.f32 0.0, %v4623
        %4625 = vmatprep.mubr.bf16.mxu0 0
        %4626 = vmatmul.mubr.bf16.gmra.mrb[0].mxu0 %v4546
        %v4627 = vpop.f32.mrb[0].mxu0
        %v4628 = vadd.f32 0.0, %v4627
        %v4629 = vpop.f32.mrb[0].mxu0
        %v4630 = vadd.f32 0.0, %v4629
        %v4631 = vpop.f32.mrb[0].mxu0
        %v4632 = vadd.f32 0.0, %v4631
        %v4633 = vpop.f32.mrb[0].mxu0
        %v4634 = vadd.f32 0.0, %v4633
        %4635 = vmatprep.mubr.bf16.mxu0 0
        %4636 = vmatmul.mubr.bf16.gmra.mrb[0].mxu0 %v4549
        %v4637 = vpop.f32.mrb[0].mxu0
        %v4638 = vadd.f32 0.0, %v4637
        %v4639 = vpop.f32.mrb[0].mxu0
        %v4640 = vadd.f32 0.0, %v4639
        %v4641 = vpop.f32.mrb[0].mxu0
        %v4642 = vadd.f32 0.0, %v4641
        %v4643 = vpop.f32.mrb[0].mxu0
        %v4644 = vadd.f32 0.0, %v4643
        %4645 = vmatprep.mubr.bf16.mxu0 0
        %4646 = vmatmul.mubr.bf16.gmra.mrb[0].mxu0 %v4552
        %v4647 = vpop.f32.mrb[0].mxu0
        %v4648 = vadd.f32 0.0, %v4647
        %v4649 = vpop.f32.mrb[0].mxu0
        %v4650 = vadd.f32 0.0, %v4649
        %v4651 = vpop.f32.mrb[0].mxu0
        %v4652 = vadd.f32 0.0, %v4651
        %v4653 = vpop.f32.mrb[0].mxu0
        %v4654 = vadd.f32 0.0, %v4653
        %4655 = vmatprep.mubr.bf16.mxu0 0
        %4656 = vmatmul.mubr.bf16.gmra.mrb[0].mxu0 %v4555
        %v4657 = vpop.f32.mrb[0].mxu0
        %v4658 = vadd.f32 0.0, %v4657
        %v4659 = vpop.f32.mrb[0].mxu0
        %v4660 = vadd.f32 0.0, %v4659
        %v4661 = vpop.f32.mrb[0].mxu0
        %v4662 = vadd.f32 0.0, %v4661
        %v4663 = vpop.f32.mrb[0].mxu0
        %v4664 = vadd.f32 0.0, %v4663
        %4665 = vdwg.mxu0
        %v4666 = vadd.f32 %v4406, %v4598
        %v4667 = vadd.f32 %v4407, %v4600
        %v4668 = vadd.f32 %v4408, %v4602
        %v4669 = vadd.f32 %v4409, %v4604
        %v4670 = vadd.f32 %v4410, %v4608
        %v4671 = vadd.f32 %v4411, %v4610
        %v4672 = vadd.f32 %v4412, %v4612
        %v4673 = vadd.f32 %v4413, %v4614
        %v4674 = vadd.f32 %v4414, %v4618
        %v4675 = vadd.f32 %v4415, %v4620
        %v4676 = vadd.f32 %v4416, %v4622
        %v4677 = vadd.f32 %v4417, %v4624
        %v4678 = vadd.f32 %v4418, %v4628
        %v4679 = vadd.f32 %v4419, %v4630
        %v4680 = vadd.f32 %v4420, %v4632
        %v4681 = vadd.f32 %v4421, %v4634
        %v4682 = vadd.f32 %v4422, %v4638
        %v4683 = vadd.f32 %v4423, %v4640
        %v4684 = vadd.f32 %v4424, %v4642
        %v4685 = vadd.f32 %v4425, %v4644
        %v4686 = vadd.f32 %v4426, %v4648
        %v4687 = vadd.f32 %v4427, %v4650
        %v4688 = vadd.f32 %v4428, %v4652
        %v4689 = vadd.f32 %v4429, %v4654
        %v4690 = vadd.f32 %v4430, %v4658
        %v4691 = vadd.f32 %v4431, %v4660
        %v4692 = vadd.f32 %v4432, %v4662
        %v4693 = vadd.f32 %v4433, %v4664
        %v4694 = vld [vmem:[%s8] sm:$0x3]
        %v4696 = vlaneseq
        %v4697 = vshrl.u32 %v4696, 7
        %v4698 = vsub.s32 0, %v4697
        %v4699 = vrot.slane %v4694, %v4698
        %v4700 = vlaneseq
        %v4701 = vshrl.u32 %v4700, 7
        %v4702 = vsub.s32 1, %v4701
        %v4703 = vrot.slane %v4694, %v4702
        %v4706 = vadd.f32 %v4666, %v4699
        %v4707 = vadd.f32 %v4667, %v4703
        %v4708 = vadd.f32 %v4668, %v4699
        %v4709 = vadd.f32 %v4669, %v4703
        %v4710 = vadd.f32 %v4670, %v4699
        %v4711 = vadd.f32 %v4671, %v4703
        %v4712 = vadd.f32 %v4672, %v4699
        %v4713 = vadd.f32 %v4673, %v4703
        %v4714 = vadd.f32 %v4674, %v4699
        %v4715 = vadd.f32 %v4675, %v4703
        %v4716 = vadd.f32 %v4676, %v4699
        %v4717 = vadd.f32 %v4677, %v4703
        %v4718 = vadd.f32 %v4678, %v4699
        %v4719 = vadd.f32 %v4679, %v4703
        %v4720 = vadd.f32 %v4680, %v4699
        %v4721 = vadd.f32 %v4681, %v4703
        %v4722 = vadd.f32 %v4682, %v4699
        %v4723 = vadd.f32 %v4683, %v4703
        %v4724 = vadd.f32 %v4684, %v4699
        %v4725 = vadd.f32 %v4685, %v4703
        %v4726 = vadd.f32 %v4686, %v4699
        %v4727 = vadd.f32 %v4687, %v4703
        %v4728 = vadd.f32 %v4688, %v4699
        %v4729 = vadd.f32 %v4689, %v4703
        %v4730 = vadd.f32 %v4690, %v4699
        %v4731 = vadd.f32 %v4691, %v4703
        %v4732 = vadd.f32 %v4692, %v4699
        %v4733 = vadd.f32 %v4693, %v4703
        %v4734 = vmax.f32 %v4706, 0.0
        %v4735 = vmax.f32 %v4707, 0.0
        %v4736 = vmax.f32 %v4708, 0.0
        %v4737 = vmax.f32 %v4709, 0.0
        %v4738 = vmax.f32 %v4710, 0.0
        %v4739 = vmax.f32 %v4711, 0.0
        %v4740 = vmax.f32 %v4712, 0.0
        %v4741 = vmax.f32 %v4713, 0.0
        %v4742 = vmax.f32 %v4714, 0.0
        %v4743 = vmax.f32 %v4715, 0.0
        %v4744 = vmax.f32 %v4716, 0.0
        %v4745 = vmax.f32 %v4717, 0.0
        %v4746 = vmax.f32 %v4718, 0.0
        %v4747 = vmax.f32 %v4719, 0.0
        %v4748 = vmax.f32 %v4720, 0.0
        %v4749 = vmax.f32 %v4721, 0.0
        %v4750 = vmax.f32 %v4722, 0.0
        %v4751 = vmax.f32 %v4723, 0.0
        %v4752 = vmax.f32 %v4724, 0.0
        %v4753 = vmax.f32 %v4725, 0.0
        %v4754 = vmax.f32 %v4726, 0.0
        %v4755 = vmax.f32 %v4727, 0.0
        %v4756 = vmax.f32 %v4728, 0.0
        %v4757 = vmax.f32 %v4729, 0.0
        %v4758 = vmax.f32 %v4730, 0.0
        %v4759 = vmax.f32 %v4731, 0.0
        %v4760 = vmax.f32 %v4732, 0.0
        %v4761 = vmax.f32 %v4733, 0.0
        %v4762 = vpack.c.bf16 %v4736, %v4734
        %v4763 = vpack.c.bf16 %v4737, %v4735
        %v4764 = vpack.c.bf16 %v4740, %v4738
        %v4765 = vpack.c.bf16 %v4741, %v4739
        %v4766 = vpack.c.bf16 %v4744, %v4742
        %v4767 = vpack.c.bf16 %v4745, %v4743
        %v4768 = vpack.c.bf16 %v4748, %v4746
        %v4769 = vpack.c.bf16 %v4749, %v4747
        %v4770 = vpack.c.bf16 %v4752, %v4750
        %v4771 = vpack.c.bf16 %v4753, %v4751
        %v4772 = vpack.c.bf16 %v4756, %v4754
        %v4773 = vpack.c.bf16 %v4757, %v4755
        %v4774 = vpack.c.bf16 %v4760, %v4758
        %v4775 = vpack.c.bf16 %v4761, %v4759
        %v4776 = vld [vmem:[%s9] sm:$0xf]
        %v4777 = vld [vmem:[%s9 + $0x4] sm:$0xf]
        %v4778 = vld [vmem:[%s9 + $0x8] sm:$0xf]
        %v4779 = vld [vmem:[%s9 + $0xc] sm:$0xf]
        %v4780 = vld [vmem:[%s9 + $0x10] sm:$0xf]
        %v4786 = vunpack.c.l.b16 %v4776
        %v4787 = vunpack.c.l.b16 %v4777
        %v4788 = vunpack.c.l.b16 %v4778
        %v4789 = vunpack.c.l.b16 %v4779
        %v4790 = vunpack.c.l.b16 %v4780
        %v4791 = vpack.c.b16 %v4787, %v4786
        %v4792 = vpack.c.b16 %v4789, %v4788
        %v4793 = vpack.c.b16 %v4790, %v4790
        %vm4794 = vcmask 916480
        %v4796 = vsel %vm4794, %v4791, 0
        %v4799 = vsel %vm4794, %v4792, 0
        %v4802 = vsel %vm4794, %v4793, 0
        %4804 = vmatprep.subr.bf16.mxu0 %v4763
        %4805 = vmatpush1.bf16.msra.mxu0 %v4762
        %4806 = vmatprep.subr.bf16.mxu0 %v4765
        %4807 = vmatpush1.bf16.msra.mxu0 %v4764
        %4808 = vmatprep.subr.bf16.mxu0 %v4767
        %4809 = vmatpush1.bf16.msra.mxu0 %v4766
        %4810 = vmatprep.subr.bf16.mxu0 %v4769
        %4811 = vmatpush1.bf16.msra.mxu0 %v4768
        %4812 = vmatprep.subr.bf16.mxu0 %v4771
        %4813 = vmatpush1.bf16.msra.mxu0 %v4770
        %4814 = vmatprep.subr.bf16.mxu0 %v4773
        %4815 = vmatpush1.bf16.msra.mxu0 %v4772
        %4816 = vmatprep.subr.bf16.mxu0 %v4775
        %4817 = vmatpush1.bf16.msra.mxu0 %v4774
        %4818 = vmatprep.subr.bf16.mxu0 0
        %4819 = vmatpush1.bf16.msra.mxu0 0
        %4820 = vmatprep.subr.bf16.mxu0 0
        %4821 = vmatpush1.bf16.msra.mxu0 0
        %4822 = vmatprep.subr.bf16.mxu0 0
        %4823 = vmatpush1.bf16.msra.mxu0 0
        %4824 = vmatprep.subr.bf16.mxu0 0
        %4825 = vmatpush1.bf16.msra.mxu0 0
        %4826 = vmatprep.subr.bf16.mxu0 0
        %4827 = vmatpush1.bf16.msra.mxu0 0
        %4828 = vmatprep.subr.bf16.mxu0 0
        %4829 = vmatpush1.bf16.msra.mxu0 0
        %4830 = vmatprep.subr.bf16.mxu0 0
        %4831 = vmatpush1.bf16.msra.mxu0 0
        %4832 = vmatprep.subr.bf16.mxu0 0
        %4833 = vmatpush1.bf16.msra.mxu0 0
        %4834 = vmatprep.subr.bf16.mxu0 0
        %4835 = vmatpush1.bf16.msra.mxu0 0
        %4836 = vmatprep.mubr.bf16.mxu0 0
        %4837 = vmatmul.mubr.bf16.gmra.mrb[0].mxu0 %v4796
        %v4838 = vpop.f32.mrb[0].mxu0
        %v4839 = vadd.f32 0.0, %v4838
        %v4840 = vpop.f32.mrb[0].mxu0
        %v4841 = vadd.f32 0.0, %v4840
        %v4842 = vpop.f32.mrb[0].mxu0
        %v4843 = vadd.f32 0.0, %v4842
        %v4844 = vpop.f32.mrb[0].mxu0
        %v4845 = vadd.f32 0.0, %v4844
        %4846 = vmatprep.mubr.bf16.mxu0 0
        %4847 = vmatmul.mubr.bf16.gmra.mrb[0].mxu0 %v4799
        %v4848 = vpop.f32.mrb[0].mxu0
        %v4849 = vadd.f32 0.0, %v4848
        %v4850 = vpop.f32.mrb[0].mxu0
        %v4851 = vadd.f32 0.0, %v4850
        %v4852 = vpop.f32.mrb[0].mxu0
        %v4853 = vadd.f32 0.0, %v4852
        %v4854 = vpop.f32.mrb[0].mxu0
        %v4855 = vadd.f32 0.0, %v4854
        %4856 = vmatprep.mubr.bf16.mxu0 0
        %4857 = vmatmul.mubr.bf16.gmra.mrb[0].mxu0 %v4802
        %v4858 = vpop.f32.mrb[0].mxu0
        %v4859 = vadd.f32 0.0, %v4858
        %v4860 = vpop.f32.mrb[0].mxu0
        %v4861 = vadd.f32 0.0, %v4860
        %v4862 = vpop.f32.mrb[0].mxu0
        %v4863 = vpop.f32.mrb[0].mxu0
        %4864 = vdwg.mxu0
        %v4865 = vld [vmem:[%s10] sm:$0xf]
        %v4866 = vld [vmem:[%s10 + $0x4] sm:$0xf]
        %v4867 = vld [vmem:[%s10 + $0x8] sm:$0xf]
        %v4868 = vld [vmem:[%s10 + $0xc] sm:$0xf]
        %v4869 = vld [vmem:[%s10 + $0x10] sm:$0xf]
        %v4875 = vunpack.c.l.b16 %v4865
        %v4876 = vunpack.c.l.b16 %v4866
        %v4877 = vunpack.c.l.b16 %v4867
        %v4878 = vunpack.c.l.b16 %v4868
        %v4879 = vunpack.c.l.b16 %v4869
        %v4880 = vpack.c.b16 %v4876, %v4875
        %v4881 = vpack.c.b16 %v4878, %v4877
        %v4882 = vpack.c.b16 %v4879, %v4879
        %v4884 = vsel %vm4794, %v4880, 0
        %v4887 = vsel %vm4794, %v4881, 0
        %v4890 = vsel %vm4794, %v4882, 0
        %4892 = vmatprep.subr.bf16.mxu0 %v4763
        %4893 = vmatpush1.bf16.msra.mxu0 %v4762
        %4894 = vmatprep.subr.bf16.mxu0 %v4765
        %4895 = vmatpush1.bf16.msra.mxu0 %v4764
        %4896 = vmatprep.subr.bf16.mxu0 %v4767
        %4897 = vmatpush1.bf16.msra.mxu0 %v4766
        %4898 = vmatprep.subr.bf16.mxu0 %v4769
        %4899 = vmatpush1.bf16.msra.mxu0 %v4768
        %4900 = vmatprep.subr.bf16.mxu0 %v4771
        %4901 = vmatpush1.bf16.msra.mxu0 %v4770
        %4902 = vmatprep.subr.bf16.mxu0 %v4773
        %4903 = vmatpush1.bf16.msra.mxu0 %v4772
        %4904 = vmatprep.subr.bf16.mxu0 %v4775
        %4905 = vmatpush1.bf16.msra.mxu0 %v4774
        %4906 = vmatprep.subr.bf16.mxu0 0
        %4907 = vmatpush1.bf16.msra.mxu0 0
        %4908 = vmatprep.subr.bf16.mxu0 0
        %4909 = vmatpush1.bf16.msra.mxu0 0
        %4910 = vmatprep.subr.bf16.mxu0 0
        %4911 = vmatpush1.bf16.msra.mxu0 0
        %4912 = vmatprep.subr.bf16.mxu0 0
        %4913 = vmatpush1.bf16.msra.mxu0 0
        %4914 = vmatprep.subr.bf16.mxu0 0
        %4915 = vmatpush1.bf16.msra.mxu0 0
        %4916 = vmatprep.subr.bf16.mxu0 0
        %4917 = vmatpush1.bf16.msra.mxu0 0
        %4918 = vmatprep.subr.bf16.mxu0 0
        %4919 = vmatpush1.bf16.msra.mxu0 0
        %4920 = vmatprep.subr.bf16.mxu0 0
        %4921 = vmatpush1.bf16.msra.mxu0 0
        %4922 = vmatprep.subr.bf16.mxu0 0
        %4923 = vmatpush1.bf16.msra.mxu0 0
        %4924 = vmatprep.mubr.bf16.mxu0 0
        %4925 = vmatmul.mubr.bf16.gmra.mrb[0].mxu0 %v4884
        %v4926 = vpop.f32.mrb[0].mxu0
        %v4927 = vadd.f32 0.0, %v4926
        %v4928 = vpop.f32.mrb[0].mxu0
        %v4929 = vadd.f32 0.0, %v4928
        %v4930 = vpop.f32.mrb[0].mxu0
        %v4931 = vadd.f32 0.0, %v4930
        %v4932 = vpop.f32.mrb[0].mxu0
        %v4933 = vadd.f32 0.0, %v4932
        %4934 = vmatprep.mubr.bf16.mxu0 0
        %4935 = vmatmul.mubr.bf16.gmra.mrb[0].mxu0 %v4887
        %v4936 = vpop.f32.mrb[0].mxu0
        %v4937 = vadd.f32 0.0, %v4936
        %v4938 = vpop.f32.mrb[0].mxu0
        %v4939 = vadd.f32 0.0, %v4938
        %v4940 = vpop.f32.mrb[0].mxu0
        %v4941 = vadd.f32 0.0, %v4940
        %v4942 = vpop.f32.mrb[0].mxu0
        %v4943 = vadd.f32 0.0, %v4942
        %4944 = vmatprep.mubr.bf16.mxu0 0
        %4945 = vmatmul.mubr.bf16.gmra.mrb[0].mxu0 %v4890
        %v4946 = vpop.f32.mrb[0].mxu0
        %v4947 = vadd.f32 0.0, %v4946
        %v4948 = vpop.f32.mrb[0].mxu0
        %v4949 = vadd.f32 0.0, %v4948
        %v4950 = vpop.f32.mrb[0].mxu0
        %v4951 = vpop.f32.mrb[0].mxu0
        %4952 = vdwg.mxu0
        %v4953 = vmax.f32 %v4839, %v4927
        %v4954 = vmax.f32 %v4841, %v4929
        %v4955 = vmax.f32 %v4843, %v4931
        %v4956 = vmax.f32 %v4845, %v4933
        %v4957 = vmax.f32 %v4849, %v4937
        %v4958 = vmax.f32 %v4851, %v4939
        %v4959 = vmax.f32 %v4853, %v4941
        %v4960 = vmax.f32 %v4855, %v4943
        %v4961 = vmax.f32 %v4859, %v4947
        %v4962 = vmax.f32 %v4861, %v4949
        %v4963 = vpack.c.bf16 %v4955, %v4953
        %v4964 = vpack.c.bf16 %v4956, %v4954
        %v4965 = vpack.c.bf16 %v4959, %v4957
        %v4966 = vpack.c.bf16 %v4960, %v4958
        %v4967 = vpack.c.bf16 %v4961, %v4961
        %v4968 = vpack.c.bf16 %v4962, %v4962
        %v4969 = vld [vmem:[%s11] sm:$0xf]
        %v4970 = vld [vmem:[%s11 + $0x4] sm:$0xf]
        %v4971 = vld [vmem:[%s11 + $0x8] sm:$0xf]
        %v4972 = vld [vmem:[%s11 + $0xc] sm:$0xf]
        %v4973 = vld [vmem:[%s11 + $0x10] sm:$0xf]
        %v4974 = vld [vmem:[%s11 + $0x14] sm:$0xf]
        %v4975 = vld [vmem:[%s11 + $0x18] sm:$0xf]
        %v4976 = vld [vmem:[%s11 + $0x1c] sm:$0xf]
        %v4977 = vld [vmem:[%s11 + $0x20] sm:$0xf]
        %v4978 = vld [vmem:[%s11 + $0x24] sm:$0xf]
        %v4979 = vld [vmem:[%s11 + $0x28] sm:$0xf]
        %v4980 = vld [vmem:[%s11 + $0x2c] sm:$0xf]
        %v4981 = vld [vmem:[%s11 + $0x30] sm:$0xf]
        %v4982 = vld [vmem:[%s11 + $0x34] sm:$0xf]
        %v4983 = vld [vmem:[%s11 + $0x38] sm:$0xf]
        %v4984 = vld [vmem:[%s11 + $0x3c] sm:$0xf]
        %v4985 = vld [vmem:[%s11 + $0x40] sm:$0xf]
        %v4986 = vld [vmem:[%s11 + $0x44] sm:$0xf]
        %v4987 = vld [vmem:[%s11 + $0x48] sm:$0xf]
        %v4988 = vld [vmem:[%s11 + $0x4c] sm:$0xf]
        %v5009 = vunpack.c.l.b16 %v4969
        %v5010 = vunpack.c.l.b16 %v4970
        %v5011 = vunpack.c.l.b16 %v4971
        %v5012 = vunpack.c.l.b16 %v4972
        %v5013 = vunpack.c.l.b16 %v4973
        %v5014 = vunpack.c.l.b16 %v4974
        %v5015 = vunpack.c.l.b16 %v4975
        %v5016 = vunpack.c.l.b16 %v4976
        %v5017 = vunpack.c.l.b16 %v4977
        %v5018 = vunpack.c.l.b16 %v4978
        %v5019 = vunpack.c.l.b16 %v4979
        %v5020 = vunpack.c.l.b16 %v4980
        %v5021 = vunpack.c.l.b16 %v4981
        %v5022 = vunpack.c.l.b16 %v4982
        %v5023 = vunpack.c.l.b16 %v4983
        %v5024 = vunpack.c.l.b16 %v4984
        %v5025 = vunpack.c.l.b16 %v4985
        %v5026 = vunpack.c.l.b16 %v4986
        %v5027 = vunpack.c.l.b16 %v4987
        %v5028 = vunpack.c.l.b16 %v4988
        %v5029 = vpack.c.b16 %v5010, %v5009
        %v5030 = vpack.c.b16 %v5012, %v5011
        %v5031 = vpack.c.b16 %v5014, %v5013
        %v5032 = vpack.c.b16 %v5016, %v5015
        %v5033 = vpack.c.b16 %v5018, %v5017
        %v5034 = vpack.c.b16 %v5020, %v5019
        %v5035 = vpack.c.b16 %v5022, %v5021
        %v5036 = vpack.c.b16 %v5024, %v5023
        %v5037 = vpack.c.b16 %v5026, %v5025
        %v5038 = vpack.c.b16 %v5028, %v5027
        %v5050 = vsel %vm764, %v4964, 0
        %v5053 = vsel %vm764, %v4966, 0
        %v5056 = vsel %vm764, %v4968, 0
        %5058 = vmatprep.subr.bf16.mxu0 0
        %5059 = vmatpush1.bf16.msra.mxu0 %v5029
        %5060 = vmatprep.subr.bf16.mxu0 0
        %5061 = vmatpush1.bf16.msra.mxu0 %v5030
        %5062 = vmatprep.subr.bf16.mxu0 0
        %5063 = vmatpush1.bf16.msra.mxu0 %v5031
        %5064 = vmatprep.subr.bf16.mxu0 0
        %5065 = vmatpush1.bf16.msra.mxu0 %v5032
        %5066 = vmatprep.subr.bf16.mxu0 0
        %5067 = vmatpush1.bf16.msra.mxu0 %v5033
        %5068 = vmatprep.subr.bf16.mxu0 0
        %5069 = vmatpush1.bf16.msra.mxu0 %v5034
        %5070 = vmatprep.subr.bf16.mxu0 0
        %5071 = vmatpush1.bf16.msra.mxu0 %v5035
        %5072 = vmatprep.subr.bf16.mxu0 0
        %5073 = vmatpush1.bf16.msra.mxu0 %v5036
        %5074 = vmatprep.subr.bf16.mxu0 0
        %5075 = vmatpush1.bf16.msra.mxu0 %v5037
        %5076 = vmatprep.subr.bf16.mxu0 0
        %5077 = vmatpush1.bf16.msra.mxu0 %v5038
        %5078 = vmatprep.subr.bf16.mxu0 0
        %5079 = vmatpush1.bf16.msra.mxu0 0
        %5080 = vmatprep.subr.bf16.mxu0 0
        %5081 = vmatpush1.bf16.msra.mxu0 0
        %5082 = vmatprep.subr.bf16.mxu0 0
        %5083 = vmatpush1.bf16.msra.mxu0 0
        %5084 = vmatprep.subr.bf16.mxu0 0
        %5085 = vmatpush1.bf16.msra.mxu0 0
        %5086 = vmatprep.subr.bf16.mxu0 0
        %5087 = vmatpush1.bf16.msra.mxu0 0
        %5088 = vmatprep.subr.bf16.mxu0 0
        %5089 = vmatpush1.bf16.msra.mxu0 0
        %5090 = vmatprep.mubr.bf16.mxu0 %v5050
        %5091 = vmatmul.mubr.bf16.gmra.mrb[0].mxu0 %v4963
        %v5092 = vpop.f32.mrb[0].mxu0
        %v5093 = vadd.f32 0.0, %v5092
        %v5094 = vpop.f32.mrb[0].mxu0
        %v5095 = vpop.f32.mrb[0].mxu0
        %v5096 = vadd.f32 0.0, %v5095
        %v5097 = vpop.f32.mrb[0].mxu0
        %5098 = vmatprep.mubr.bf16.mxu0 %v5053
        %5099 = vmatmul.mubr.bf16.gmra.mrb[0].mxu0 %v4965
        %v5100 = vpop.f32.mrb[0].mxu0
        %v5101 = vadd.f32 0.0, %v5100
        %v5102 = vpop.f32.mrb[0].mxu0
        %v5103 = vpop.f32.mrb[0].mxu0
        %v5104 = vadd.f32 0.0, %v5103
        %v5105 = vpop.f32.mrb[0].mxu0
        %5106 = vmatprep.mubr.bf16.mxu0 %v5056
        %5107 = vmatmul.mubr.bf16.gmra.mrb[0].mxu0 %v4967
        %v5108 = vpop.f32.mrb[0].mxu0
        %v5109 = vadd.f32 0.0, %v5108
        %v5110 = vpop.f32.mrb[0].mxu0
        %v5111 = vpop.f32.mrb[0].mxu0
        %v5112 = vpop.f32.mrb[0].mxu0
        %5113 = vdwg.mxu0
        %v5114 = vld [vmem:[%s12] sm:$0xf]
        %v5115 = vld [vmem:[%s12 + $0x4] sm:$0xf]
        %v5116 = vld [vmem:[%s12 + $0x8] sm:$0xf]
        %v5117 = vld [vmem:[%s12 + $0xc] sm:$0xf]
        %v5118 = vld [vmem:[%s12 + $0x10] sm:$0xf]
        %v5119 = vld [vmem:[%s12 + $0x14] sm:$0xf]
        %v5120 = vld [vmem:[%s12 + $0x18] sm:$0xf]
        %v5121 = vld [vmem:[%s12 + $0x1c] sm:$0xf]
        %v5122 = vld [vmem:[%s12 + $0x20] sm:$0xf]
        %v5123 = vld [vmem:[%s12 + $0x24] sm:$0xf]
        %v5124 = vld [vmem:[%s12 + $0x28] sm:$0xf]
        %v5125 = vld [vmem:[%s12 + $0x2c] sm:$0xf]
        %v5126 = vld [vmem:[%s12 + $0x30] sm:$0xf]
        %v5127 = vld [vmem:[%s12 + $0x34] sm:$0xf]
        %v5128 = vld [vmem:[%s12 + $0x38] sm:$0xf]
        %v5129 = vld [vmem:[%s12 + $0x3c] sm:$0xf]
        %v5130 = vld [vmem:[%s12 + $0x40] sm:$0xf]
        %v5131 = vld [vmem:[%s12 + $0x44] sm:$0xf]
        %v5132 = vld [vmem:[%s12 + $0x48] sm:$0xf]
        %v5133 = vld [vmem:[%s12 + $0x4c] sm:$0xf]
        %v5154 = vunpack.c.l.b16 %v5114
        %v5155 = vunpack.c.l.b16 %v5115
        %v5156 = vunpack.c.l.b16 %v5116
        %v5157 = vunpack.c.l.b16 %v5117
        %v5158 = vunpack.c.l.b16 %v5118
        %v5159 = vunpack.c.l.b16 %v5119
        %v5160 = vunpack.c.l.b16 %v5120
        %v5161 = vunpack.c.l.b16 %v5121
        %v5162 = vunpack.c.l.b16 %v5122
        %v5163 = vunpack.c.l.b16 %v5123
        %v5164 = vunpack.c.l.b16 %v5124
        %v5165 = vunpack.c.l.b16 %v5125
        %v5166 = vunpack.c.l.b16 %v5126
        %v5167 = vunpack.c.l.b16 %v5127
        %v5168 = vunpack.c.l.b16 %v5128
        %v5169 = vunpack.c.l.b16 %v5129
        %v5170 = vunpack.c.l.b16 %v5130
        %v5171 = vunpack.c.l.b16 %v5131
        %v5172 = vunpack.c.l.b16 %v5132
        %v5173 = vunpack.c.l.b16 %v5133
        %v5174 = vpack.c.b16 %v5155, %v5154
        %v5175 = vpack.c.b16 %v5157, %v5156
        %v5176 = vpack.c.b16 %v5159, %v5158
        %v5177 = vpack.c.b16 %v5161, %v5160
        %v5178 = vpack.c.b16 %v5163, %v5162
        %v5179 = vpack.c.b16 %v5165, %v5164
        %v5180 = vpack.c.b16 %v5167, %v5166
        %v5181 = vpack.c.b16 %v5169, %v5168
        %v5182 = vpack.c.b16 %v5171, %v5170
        %v5183 = vpack.c.b16 %v5173, %v5172
        %5194 = vmatprep.subr.bf16.mxu0 0
        %5195 = vmatpush1.bf16.msra.mxu0 %v5174
        %5196 = vmatprep.subr.bf16.mxu0 0
        %5197 = vmatpush1.bf16.msra.mxu0 %v5175
        %5198 = vmatprep.subr.bf16.mxu0 0
        %5199 = vmatpush1.bf16.msra.mxu0 %v5176
        %5200 = vmatprep.subr.bf16.mxu0 0
        %5201 = vmatpush1.bf16.msra.mxu0 %v5177
        %5202 = vmatprep.subr.bf16.mxu0 0
        %5203 = vmatpush1.bf16.msra.mxu0 %v5178
        %5204 = vmatprep.subr.bf16.mxu0 0
        %5205 = vmatpush1.bf16.msra.mxu0 %v5179
        %5206 = vmatprep.subr.bf16.mxu0 0
        %5207 = vmatpush1.bf16.msra.mxu0 %v5180
        %5208 = vmatprep.subr.bf16.mxu0 0
        %5209 = vmatpush1.bf16.msra.mxu0 %v5181
        %5210 = vmatprep.subr.bf16.mxu0 0
        %5211 = vmatpush1.bf16.msra.mxu0 %v5182
        %5212 = vmatprep.subr.bf16.mxu0 0
        %5213 = vmatpush1.bf16.msra.mxu0 %v5183
        %5214 = vmatprep.subr.bf16.mxu0 0
        %5215 = vmatpush1.bf16.msra.mxu0 0
        %5216 = vmatprep.subr.bf16.mxu0 0
        %5217 = vmatpush1.bf16.msra.mxu0 0
        %5218 = vmatprep.subr.bf16.mxu0 0
        %5219 = vmatpush1.bf16.msra.mxu0 0
        %5220 = vmatprep.subr.bf16.mxu0 0
        %5221 = vmatpush1.bf16.msra.mxu0 0
        %5222 = vmatprep.subr.bf16.mxu0 0
        %5223 = vmatpush1.bf16.msra.mxu0 0
        %5224 = vmatprep.subr.bf16.mxu0 0
        %5225 = vmatpush1.bf16.msra.mxu0 0
        %5226 = vmatprep.mubr.bf16.mxu0 %v5050
        %5227 = vmatmul.mubr.bf16.gmra.mrb[0].mxu0 %v4963
        %v5228 = vpop.f32.mrb[0].mxu0
        %v5229 = vadd.f32 0.0, %v5228
        %v5230 = vpop.f32.mrb[0].mxu0
        %v5231 = vpop.f32.mrb[0].mxu0
        %v5232 = vadd.f32 0.0, %v5231
        %v5233 = vpop.f32.mrb[0].mxu0
        %5234 = vmatprep.mubr.bf16.mxu0 %v5053
        %5235 = vmatmul.mubr.bf16.gmra.mrb[0].mxu0 %v4965
        %v5236 = vpop.f32.mrb[0].mxu0
        %v5237 = vadd.f32 0.0, %v5236
        %v5238 = vpop.f32.mrb[0].mxu0
        %v5239 = vpop.f32.mrb[0].mxu0
        %v5240 = vadd.f32 0.0, %v5239
        %v5241 = vpop.f32.mrb[0].mxu0
        %5242 = vmatprep.mubr.bf16.mxu0 %v5056
        %5243 = vmatmul.mubr.bf16.gmra.mrb[0].mxu0 %v4967
        %v5244 = vpop.f32.mrb[0].mxu0
        %v5245 = vadd.f32 0.0, %v5244
        %v5246 = vpop.f32.mrb[0].mxu0
        %v5247 = vpop.f32.mrb[0].mxu0
        %v5248 = vpop.f32.mrb[0].mxu0
        %5249 = vdwg.mxu0
        %v5250 = vmax.f32 %v5093, %v5229
        %v5251 = vmax.f32 %v5096, %v5232
        %v5252 = vmax.f32 %v5101, %v5237
        %v5253 = vmax.f32 %v5104, %v5240
        %v5254 = vmax.f32 %v5109, %v5245
        %v5255 = vpack.c.bf16 %v5250, %v5250
        %v5256 = vld [vmem:[%s13] sm:$0xf]
        %v5257 = vld [vmem:[%s13 + $0x4] sm:$0xf]
        %v5258 = vld [vmem:[%s13 + $0x8] sm:$0xf]
        %v5259 = vld [vmem:[%s13 + $0xc] sm:$0xf]
        %v5260 = vld [vmem:[%s13 + $0x10] sm:$0xf]
        %v5261 = vld [vmem:[%s13 + $0x14] sm:$0xf]
        %v5262 = vld [vmem:[%s13 + $0x18] sm:$0xf]
        %v5263 = vld [vmem:[%s13 + $0x1c] sm:$0xf]
        %v5264 = vld [vmem:[%s13 + $0x20] sm:$0xf]
        %v5265 = vld [vmem:[%s13 + $0x24] sm:$0xf]
        %v5266 = vpack.c.bf16 %v5251, %v5251
        %s5267 = scalar_lea.vmem %s13, 40
        %v5268 = vld [vmem:[%s5267] sm:$0xf]
        %v5269 = vld [vmem:[%s5267 + $0x4] sm:$0xf]
        %v5270 = vld [vmem:[%s5267 + $0x8] sm:$0xf]
        %v5271 = vld [vmem:[%s5267 + $0xc] sm:$0xf]
        %v5272 = vld [vmem:[%s5267 + $0x10] sm:$0xf]
        %v5273 = vld [vmem:[%s5267 + $0x14] sm:$0xf]
        %v5274 = vld [vmem:[%s5267 + $0x18] sm:$0xf]
        %v5275 = vld [vmem:[%s5267 + $0x1c] sm:$0xf]
        %v5276 = vld [vmem:[%s5267 + $0x20] sm:$0xf]
        %v5277 = vld [vmem:[%s5267 + $0x24] sm:$0xf]
        %v5288 = vunpack.c.l.b16 %v5268
        %v5289 = vunpack.c.l.b16 %v5269
        %v5290 = vunpack.c.l.b16 %v5270
        %v5291 = vunpack.c.l.b16 %v5271
        %v5292 = vunpack.c.l.b16 %v5272
        %v5293 = vunpack.c.l.b16 %v5273
        %v5294 = vunpack.c.l.b16 %v5274
        %v5295 = vunpack.c.l.b16 %v5275
        %v5296 = vunpack.c.l.b16 %v5276
        %v5297 = vunpack.c.l.b16 %v5277
        %v5298 = vpack.c.b16 %v5289, %v5288
        %v5299 = vpack.c.b16 %v5291, %v5290
        %v5300 = vpack.c.b16 %v5293, %v5292
        %v5301 = vpack.c.b16 %v5295, %v5294
        %v5302 = vpack.c.b16 %v5297, %v5296
        %vm5308 = vcmask 654336
        %v5310 = vsel %vm5308, %v5266, 0
        %5312 = vmatprep.subr.bf16.mxu0 0
        %5313 = vmatpush1.bf16.msra.mxu0 %v5298
        %5314 = vmatprep.subr.bf16.mxu0 0
        %5315 = vmatpush1.bf16.msra.mxu0 %v5299
        %5316 = vmatprep.subr.bf16.mxu0 0
        %5317 = vmatpush1.bf16.msra.mxu0 %v5300
        %5318 = vmatprep.subr.bf16.mxu0 0
        %5319 = vmatpush1.bf16.msra.mxu0 %v5301
        %5320 = vmatprep.subr.bf16.mxu0 0
        %5321 = vmatpush1.bf16.msra.mxu0 %v5302
        %5322 = vmatprep.subr.bf16.mxu0 0
        %5323 = vmatpush1.bf16.msra.mxu0 0
        %5324 = vmatprep.subr.bf16.mxu0 0
        %5325 = vmatpush1.bf16.msra.mxu0 0
        %5326 = vmatprep.subr.bf16.mxu0 0
        %5327 = vmatpush1.bf16.msra.mxu0 0
        %5328 = vmatprep.subr.bf16.mxu0 0
        %5329 = vmatpush1.bf16.msra.mxu0 0
        %5330 = vmatprep.subr.bf16.mxu0 0
        %5331 = vmatpush1.bf16.msra.mxu0 0
        %5332 = vmatprep.subr.bf16.mxu0 0
        %5333 = vmatpush1.bf16.msra.mxu0 0
        %5334 = vmatprep.subr.bf16.mxu0 0
        %5335 = vmatpush1.bf16.msra.mxu0 0
        %5336 = vmatprep.subr.bf16.mxu0 0
        %5337 = vmatpush1.bf16.msra.mxu0 0
        %5338 = vmatprep.subr.bf16.mxu0 0
        %5339 = vmatpush1.bf16.msra.mxu0 0
        %5340 = vmatprep.subr.bf16.mxu0 0
        %5341 = vmatpush1.bf16.msra.mxu0 0
        %5342 = vmatprep.subr.bf16.mxu0 0
        %5343 = vmatpush1.bf16.msra.mxu0 0
        %5344 = vmatprep.mubr.bf16.mxu0 0
        %5345 = vmatmul.mubr.bf16.gmra.mrb[0].mxu0 %v5310
        %v5346 = vpop.f32.mrb[0].mxu0
        %v5347 = vadd.f32 0.0, %v5346
        %v5348 = vpop.f32.mrb[0].mxu0
        %v5349 = vpop.f32.mrb[0].mxu0
        %v5350 = vpop.f32.mrb[0].mxu0
        %5351 = vdwg.mxu0
        %v5362 = vunpack.c.l.b16 %v5256
        %v5363 = vunpack.c.l.b16 %v5257
        %v5364 = vunpack.c.l.b16 %v5258
        %v5365 = vunpack.c.l.b16 %v5259
        %v5366 = vunpack.c.l.b16 %v5260
        %v5367 = vunpack.c.l.b16 %v5261
        %v5368 = vunpack.c.l.b16 %v5262
        %v5369 = vunpack.c.l.b16 %v5263
        %v5370 = vunpack.c.l.b16 %v5264
        %v5371 = vunpack.c.l.b16 %v5265
        %v5372 = vpack.c.b16 %v5363, %v5362
        %v5373 = vpack.c.b16 %v5365, %v5364
        %v5374 = vpack.c.b16 %v5367, %v5366
        %v5375 = vpack.c.b16 %v5369, %v5368
        %v5376 = vpack.c.b16 %v5371, %v5370
        %v5383 = vsel %vm5308, %v5255, 0
        %5385 = vmatprep.subr.bf16.mxu0 0
        %5386 = vmatpush1.bf16.msra.mxu0 %v5372
        %5387 = vmatprep.subr.bf16.mxu0 0
        %5388 = vmatpush1.bf16.msra.mxu0 %v5373
        %5389 = vmatprep.subr.bf16.mxu0 0
        %5390 = vmatpush1.bf16.msra.mxu0 %v5374
        %5391 = vmatprep.subr.bf16.mxu0 0
        %5392 = vmatpush1.bf16.msra.mxu0 %v5375
        %5393 = vmatprep.subr.bf16.mxu0 0
        %5394 = vmatpush1.bf16.msra.mxu0 %v5376
        %5395 = vmatprep.subr.bf16.mxu0 0
        %5396 = vmatpush1.bf16.msra.mxu0 0
        %5397 = vmatprep.subr.bf16.mxu0 0
        %5398 = vmatpush1.bf16.msra.mxu0 0
        %5399 = vmatprep.subr.bf16.mxu0 0
        %5400 = vmatpush1.bf16.msra.mxu0 0
        %5401 = vmatprep.subr.bf16.mxu0 0
        %5402 = vmatpush1.bf16.msra.mxu0 0
        %5403 = vmatprep.subr.bf16.mxu0 0
        %5404 = vmatpush1.bf16.msra.mxu0 0
        %5405 = vmatprep.subr.bf16.mxu0 0
        %5406 = vmatpush1.bf16.msra.mxu0 0
        %5407 = vmatprep.subr.bf16.mxu0 0
        %5408 = vmatpush1.bf16.msra.mxu0 0
        %5409 = vmatprep.subr.bf16.mxu0 0
        %5410 = vmatpush1.bf16.msra.mxu0 0
        %5411 = vmatprep.subr.bf16.mxu0 0
        %5412 = vmatpush1.bf16.msra.mxu0 0
        %5413 = vmatprep.subr.bf16.mxu0 0
        %5414 = vmatpush1.bf16.msra.mxu0 0
        %5415 = vmatprep.subr.bf16.mxu0 0
        %5416 = vmatpush1.bf16.msra.mxu0 0
        %5417 = vmatprep.mubr.bf16.mxu0 0
        %5418 = vmatmul.mubr.bf16.gmra.mrb[0].mxu0 %v5383
        %v5419 = vpop.f32.mrb[0].mxu0
        %v5420 = vadd.f32 %v5347, %v5419
        %v5421 = vpop.f32.mrb[0].mxu0
        %v5422 = vpop.f32.mrb[0].mxu0
        %v5423 = vpop.f32.mrb[0].mxu0
        %5424 = vdwg.mxu0
        %v5425 = vpack.c.bf16 %v5252, %v5252
        %s5426 = scalar_lea.vmem %s13, 80
        %v5427 = vld [vmem:[%s5426] sm:$0xf]
        %v5428 = vld [vmem:[%s5426 + $0x4] sm:$0xf]
        %v5429 = vld [vmem:[%s5426 + $0x8] sm:$0xf]
        %v5430 = vld [vmem:[%s5426 + $0xc] sm:$0xf]
        %v5431 = vld [vmem:[%s5426 + $0x10] sm:$0xf]
        %v5432 = vld [vmem:[%s5426 + $0x14] sm:$0xf]
        %v5433 = vld [vmem:[%s5426 + $0x18] sm:$0xf]
        %v5434 = vld [vmem:[%s5426 + $0x1c] sm:$0xf]
        %v5435 = vld [vmem:[%s5426 + $0x20] sm:$0xf]
        %v5436 = vld [vmem:[%s5426 + $0x24] sm:$0xf]
        %v5447 = vunpack.c.l.b16 %v5427
        %v5448 = vunpack.c.l.b16 %v5428
        %v5449 = vunpack.c.l.b16 %v5429
        %v5450 = vunpack.c.l.b16 %v5430
        %v5451 = vunpack.c.l.b16 %v5431
        %v5452 = vunpack.c.l.b16 %v5432
        %v5453 = vunpack.c.l.b16 %v5433
        %v5454 = vunpack.c.l.b16 %v5434
        %v5455 = vunpack.c.l.b16 %v5435
        %v5456 = vunpack.c.l.b16 %v5436
        %v5457 = vpack.c.b16 %v5448, %v5447
        %v5458 = vpack.c.b16 %v5450, %v5449
        %v5459 = vpack.c.b16 %v5452, %v5451
        %v5460 = vpack.c.b16 %v5454, %v5453
        %v5461 = vpack.c.b16 %v5456, %v5455
        %v5468 = vsel %vm5308, %v5425, 0
        %5470 = vmatprep.subr.bf16.mxu0 0
        %5471 = vmatpush1.bf16.msra.mxu0 %v5457
        %5472 = vmatprep.subr.bf16.mxu0 0
        %5473 = vmatpush1.bf16.msra.mxu0 %v5458
        %5474 = vmatprep.subr.bf16.mxu0 0
        %5475 = vmatpush1.bf16.msra.mxu0 %v5459
        %5476 = vmatprep.subr.bf16.mxu0 0
        %5477 = vmatpush1.bf16.msra.mxu0 %v5460
        %5478 = vmatprep.subr.bf16.mxu0 0
        %5479 = vmatpush1.bf16.msra.mxu0 %v5461
        %5480 = vmatprep.subr.bf16.mxu0 0
        %5481 = vmatpush1.bf16.msra.mxu0 0
        %5482 = vmatprep.subr.bf16.mxu0 0
        %5483 = vmatpush1.bf16.msra.mxu0 0
        %5484 = vmatprep.subr.bf16.mxu0 0
        %5485 = vmatpush1.bf16.msra.mxu0 0
        %5486 = vmatprep.subr.bf16.mxu0 0
        %5487 = vmatpush1.bf16.msra.mxu0 0
        %5488 = vmatprep.subr.bf16.mxu0 0
        %5489 = vmatpush1.bf16.msra.mxu0 0
        %5490 = vmatprep.subr.bf16.mxu0 0
        %5491 = vmatpush1.bf16.msra.mxu0 0
        %5492 = vmatprep.subr.bf16.mxu0 0
        %5493 = vmatpush1.bf16.msra.mxu0 0
        %5494 = vmatprep.subr.bf16.mxu0 0
        %5495 = vmatpush1.bf16.msra.mxu0 0
        %5496 = vmatprep.subr.bf16.mxu0 0
        %5497 = vmatpush1.bf16.msra.mxu0 0
        %5498 = vmatprep.subr.bf16.mxu0 0
        %5499 = vmatpush1.bf16.msra.mxu0 0
        %5500 = vmatprep.subr.bf16.mxu0 0
        %5501 = vmatpush1.bf16.msra.mxu0 0
        %5502 = vmatprep.mubr.bf16.mxu0 0
        %5503 = vmatmul.mubr.bf16.gmra.mrb[0].mxu0 %v5468
        %v5504 = vpop.f32.mrb[0].mxu0
        %v5505 = vadd.f32 0.0, %v5504
        %v5506 = vpop.f32.mrb[0].mxu0
        %v5507 = vpop.f32.mrb[0].mxu0
        %v5508 = vpop.f32.mrb[0].mxu0
        %5509 = vdwg.mxu0
        %v5510 = vadd.f32 %v5420, %v5505
        %v5511 = vpack.c.bf16 %v5253, %v5253
        %s5512 = scalar_lea.vmem %s13, 120
        %v5513 = vld [vmem:[%s5512] sm:$0xf]
        %v5514 = vld [vmem:[%s5512 + $0x4] sm:$0xf]
        %v5515 = vld [vmem:[%s5512 + $0x8] sm:$0xf]
        %v5516 = vld [vmem:[%s5512 + $0xc] sm:$0xf]
        %v5517 = vld [vmem:[%s5512 + $0x10] sm:$0xf]
        %v5518 = vld [vmem:[%s5512 + $0x14] sm:$0xf]
        %v5519 = vld [vmem:[%s5512 + $0x18] sm:$0xf]
        %v5520 = vld [vmem:[%s5512 + $0x1c] sm:$0xf]
        %v5521 = vld [vmem:[%s5512 + $0x20] sm:$0xf]
        %v5522 = vld [vmem:[%s5512 + $0x24] sm:$0xf]
        %v5533 = vunpack.c.l.b16 %v5513
        %v5534 = vunpack.c.l.b16 %v5514
        %v5535 = vunpack.c.l.b16 %v5515
        %v5536 = vunpack.c.l.b16 %v5516
        %v5537 = vunpack.c.l.b16 %v5517
        %v5538 = vunpack.c.l.b16 %v5518
        %v5539 = vunpack.c.l.b16 %v5519
        %v5540 = vunpack.c.l.b16 %v5520
        %v5541 = vunpack.c.l.b16 %v5521
        %v5542 = vunpack.c.l.b16 %v5522
        %v5543 = vpack.c.b16 %v5534, %v5533
        %v5544 = vpack.c.b16 %v5536, %v5535
        %v5545 = vpack.c.b16 %v5538, %v5537
        %v5546 = vpack.c.b16 %v5540, %v5539
        %v5547 = vpack.c.b16 %v5542, %v5541
        %v5554 = vsel %vm5308, %v5511, 0
        %5556 = vmatprep.subr.bf16.mxu0 0
        %5557 = vmatpush1.bf16.msra.mxu0 %v5543
        %5558 = vmatprep.subr.bf16.mxu0 0
        %5559 = vmatpush1.bf16.msra.mxu0 %v5544
        %5560 = vmatprep.subr.bf16.mxu0 0
        %5561 = vmatpush1.bf16.msra.mxu0 %v5545
        %5562 = vmatprep.subr.bf16.mxu0 0
        %5563 = vmatpush1.bf16.msra.mxu0 %v5546
        %5564 = vmatprep.subr.bf16.mxu0 0
        %5565 = vmatpush1.bf16.msra.mxu0 %v5547
        %5566 = vmatprep.subr.bf16.mxu0 0
        %5567 = vmatpush1.bf16.msra.mxu0 0
        %5568 = vmatprep.subr.bf16.mxu0 0
        %5569 = vmatpush1.bf16.msra.mxu0 0
        %5570 = vmatprep.subr.bf16.mxu0 0
        %5571 = vmatpush1.bf16.msra.mxu0 0
        %5572 = vmatprep.subr.bf16.mxu0 0
        %5573 = vmatpush1.bf16.msra.mxu0 0
        %5574 = vmatprep.subr.bf16.mxu0 0
        %5575 = vmatpush1.bf16.msra.mxu0 0
        %5576 = vmatprep.subr.bf16.mxu0 0
        %5577 = vmatpush1.bf16.msra.mxu0 0
        %5578 = vmatprep.subr.bf16.mxu0 0
        %5579 = vmatpush1.bf16.msra.mxu0 0
        %5580 = vmatprep.subr.bf16.mxu0 0
        %5581 = vmatpush1.bf16.msra.mxu0 0
        %5582 = vmatprep.subr.bf16.mxu0 0
        %5583 = vmatpush1.bf16.msra.mxu0 0
        %5584 = vmatprep.subr.bf16.mxu0 0
        %5585 = vmatpush1.bf16.msra.mxu0 0
        %5586 = vmatprep.subr.bf16.mxu0 0
        %5587 = vmatpush1.bf16.msra.mxu0 0
        %5588 = vmatprep.mubr.bf16.mxu0 0
        %5589 = vmatmul.mubr.bf16.gmra.mrb[0].mxu0 %v5554
        %v5590 = vpop.f32.mrb[0].mxu0
        %v5591 = vadd.f32 0.0, %v5590
        %v5592 = vpop.f32.mrb[0].mxu0
        %v5593 = vpop.f32.mrb[0].mxu0
        %v5594 = vpop.f32.mrb[0].mxu0
        %5595 = vdwg.mxu0
        %v5596 = vadd.f32 %v5510, %v5591
        %v5597 = vpack.c.bf16 %v5254, %v5254
        %s5598 = scalar_lea.vmem %s13, 160
        %v5599 = vld [vmem:[%s5598] sm:$0xf]
        %v5600 = vld [vmem:[%s5598 + $0x4] sm:$0xf]
        %v5601 = vld [vmem:[%s5598 + $0x8] sm:$0xf]
        %v5602 = vld [vmem:[%s5598 + $0xc] sm:$0xf]
        %v5603 = vld [vmem:[%s5598 + $0x10] sm:$0xf]
        %v5604 = vld [vmem:[%s5598 + $0x14] sm:$0xf]
        %v5605 = vld [vmem:[%s5598 + $0x18] sm:$0xf]
        %v5606 = vld [vmem:[%s5598 + $0x1c] sm:$0xf]
        %v5607 = vld [vmem:[%s5598 + $0x20] sm:$0xf]
        %v5608 = vld [vmem:[%s5598 + $0x24] sm:$0xf]
        %v5619 = vunpack.c.l.b16 %v5599
        %v5620 = vunpack.c.l.b16 %v5600
        %v5621 = vunpack.c.l.b16 %v5601
        %v5622 = vunpack.c.l.b16 %v5602
        %v5623 = vunpack.c.l.b16 %v5603
        %v5624 = vunpack.c.l.b16 %v5604
        %v5625 = vunpack.c.l.b16 %v5605
        %v5626 = vunpack.c.l.b16 %v5606
        %v5627 = vunpack.c.l.b16 %v5607
        %v5628 = vunpack.c.l.b16 %v5608
        %v5629 = vpack.c.b16 %v5620, %v5619
        %v5630 = vpack.c.b16 %v5622, %v5621
        %v5631 = vpack.c.b16 %v5624, %v5623
        %v5632 = vpack.c.b16 %v5626, %v5625
        %v5633 = vpack.c.b16 %v5628, %v5627
        %v5640 = vsel %vm5308, %v5597, 0
        %5642 = vmatprep.subr.bf16.mxu0 0
        %5643 = vmatpush1.bf16.msra.mxu0 %v5629
        %5644 = vmatprep.subr.bf16.mxu0 0
        %5645 = vmatpush1.bf16.msra.mxu0 %v5630
        %5646 = vmatprep.subr.bf16.mxu0 0
        %5647 = vmatpush1.bf16.msra.mxu0 %v5631
        %5648 = vmatprep.subr.bf16.mxu0 0
        %5649 = vmatpush1.bf16.msra.mxu0 %v5632
        %5650 = vmatprep.subr.bf16.mxu0 0
        %5651 = vmatpush1.bf16.msra.mxu0 %v5633
        %5652 = vmatprep.subr.bf16.mxu0 0
        %5653 = vmatpush1.bf16.msra.mxu0 0
        %5654 = vmatprep.subr.bf16.mxu0 0
        %5655 = vmatpush1.bf16.msra.mxu0 0
        %5656 = vmatprep.subr.bf16.mxu0 0
        %5657 = vmatpush1.bf16.msra.mxu0 0
        %5658 = vmatprep.subr.bf16.mxu0 0
        %5659 = vmatpush1.bf16.msra.mxu0 0
        %5660 = vmatprep.subr.bf16.mxu0 0
        %5661 = vmatpush1.bf16.msra.mxu0 0
        %5662 = vmatprep.subr.bf16.mxu0 0
        %5663 = vmatpush1.bf16.msra.mxu0 0
        %5664 = vmatprep.subr.bf16.mxu0 0
        %5665 = vmatpush1.bf16.msra.mxu0 0
        %5666 = vmatprep.subr.bf16.mxu0 0
        %5667 = vmatpush1.bf16.msra.mxu0 0
        %5668 = vmatprep.subr.bf16.mxu0 0
        %5669 = vmatpush1.bf16.msra.mxu0 0
        %5670 = vmatprep.subr.bf16.mxu0 0
        %5671 = vmatpush1.bf16.msra.mxu0 0
        %5672 = vmatprep.subr.bf16.mxu0 0
        %5673 = vmatpush1.bf16.msra.mxu0 0
        %5674 = vmatprep.mubr.bf16.mxu0 0
        %5675 = vmatmul.mubr.bf16.gmra.mrb[0].mxu0 %v5640
        %v5676 = vpop.f32.mrb[0].mxu0
        %v5677 = vadd.f32 0.0, %v5676
        %v5678 = vpop.f32.mrb[0].mxu0
        %v5679 = vpop.f32.mrb[0].mxu0
        %v5680 = vpop.f32.mrb[0].mxu0
        %5681 = vdwg.mxu0
        %v5682 = vadd.f32 %v5596, %v5677
        %v5683 = vld [vmem:[%s14] sm:$0x1]
        %v5685 = vlaneseq
        %v5686 = vshrl.u32 %v5685, 7
        %v5687 = vsub.s32 0, %v5686
        %v5688 = vrot.slane %v5683, %v5687
        %v5690 = vadd.f32 %v5682, %v5688
        %v5691 = vmax.f32 %v5690, 0.0
        %v5692 = vpack.c.bf16 %v5691, %v5691
        %v5693 = vld [vmem:[%s15] sm:$0xf]
        %v5694 = vld [vmem:[%s15 + $0x4] sm:$0xf]
        %v5695 = vld [vmem:[%s15 + $0x8] sm:$0xf]
        %v5696 = vld [vmem:[%s15 + $0xc] sm:$0xf]
        %v5697 = vld [vmem:[%s15 + $0x10] sm:$0xf]
        %v5698 = vld [vmem:[%s15 + $0x14] sm:$0xf]
        %v5699 = vld [vmem:[%s15 + $0x18] sm:$0xf]
        %v5700 = vld [vmem:[%s15 + $0x1c] sm:$0xf]
        %v5701 = vld [vmem:[%s15 + $0x20] sm:$0xf]
        %v5702 = vld [vmem:[%s15 + $0x24] sm:$0xf]
        %v5703 = vld [vmem:[%s15 + $0x28] sm:$0xf]
        %v5704 = vld [vmem:[%s15 + $0x2c] sm:$0xf]
        %v5705 = vld [vmem:[%s15 + $0x30] sm:$0xf]
        %v5706 = vld [vmem:[%s15 + $0x34] sm:$0xf]
        %v5707 = vld [vmem:[%s15 + $0x38] sm:$0xf]
        %v5708 = vld [vmem:[%s16] sm:$0x1]
        %v5710 = vlaneseq
        %v5711 = vshrl.u32 %v5710, 7
        %v5712 = vsub.s32 0, %v5711
        %v5713 = vrot.slane %v5708, %v5712
        %v5730 = vunpack.c.l.b16 %v5693
        %v5731 = vunpack.c.l.b16 %v5694
        %v5732 = vunpack.c.l.b16 %v5695
        %v5733 = vunpack.c.l.b16 %v5696
        %v5734 = vunpack.c.l.b16 %v5697
        %v5735 = vunpack.c.l.b16 %v5698
        %v5736 = vunpack.c.l.b16 %v5699
        %v5737 = vunpack.c.l.b16 %v5700
        %v5738 = vunpack.c.l.b16 %v5701
        %v5739 = vunpack.c.l.b16 %v5702
        %v5740 = vunpack.c.l.b16 %v5703
        %v5741 = vunpack.c.l.b16 %v5704
        %v5742 = vunpack.c.l.b16 %v5705
        %v5743 = vunpack.c.l.b16 %v5706
        %v5744 = vunpack.c.l.b16 %v5707
        %v5745 = vpack.c.b16 %v5731, %v5730
        %v5746 = vpack.c.b16 %v5733, %v5732
        %v5747 = vpack.c.b16 %v5735, %v5734
        %v5748 = vpack.c.b16 %v5737, %v5736
        %v5749 = vpack.c.b16 %v5739, %v5738
        %v5750 = vpack.c.b16 %v5741, %v5740
        %v5751 = vpack.c.b16 %v5743, %v5742
        %v5752 = vpack.c.b16 %v5744, %v5744
        %vm5760 = vcmask 982016
        %v5762 = vsel %vm5760, %v5692, 0
        %v5765 = vsel %vm3194, %v5752, 0
        %5767 = vmatprep.subr.bf16.mxu0 0
        %5768 = vmatpush1.bf16.msra.mxu0 %v5745
        %5769 = vmatprep.subr.bf16.mxu0 0
        %5770 = vmatpush1.bf16.msra.mxu0 %v5746
        %5771 = vmatprep.subr.bf16.mxu0 0
        %5772 = vmatpush1.bf16.msra.mxu0 %v5747
        %5773 = vmatprep.subr.bf16.mxu0 0
        %5774 = vmatpush1.bf16.msra.mxu0 %v5748
        %5775 = vmatprep.subr.bf16.mxu0 0
        %5776 = vmatpush1.bf16.msra.mxu0 %v5749
        %5777 = vmatprep.subr.bf16.mxu0 0
        %5778 = vmatpush1.bf16.msra.mxu0 %v5750
        %5779 = vmatprep.subr.bf16.mxu0 0
        %5780 = vmatpush1.bf16.msra.mxu0 %v5751
        %5781 = vmatprep.subr.bf16.mxu0 0
        %5782 = vmatpush1.bf16.msra.mxu0 %v5765
        %5783 = vmatprep.subr.bf16.mxu0 0
        %5784 = vmatpush1.bf16.msra.mxu0 0
        %5785 = vmatprep.subr.bf16.mxu0 0
        %5786 = vmatpush1.bf16.msra.mxu0 0
        %5787 = vmatprep.subr.bf16.mxu0 0
        %5788 = vmatpush1.bf16.msra.mxu0 0
        %5789 = vmatprep.subr.bf16.mxu0 0
        %5790 = vmatpush1.bf16.msra.mxu0 0
        %5791 = vmatprep.subr.bf16.mxu0 0
        %5792 = vmatpush1.bf16.msra.mxu0 0
        %5793 = vmatprep.subr.bf16.mxu0 0
        %5794 = vmatpush1.bf16.msra.mxu0 0
        %5795 = vmatprep.subr.bf16.mxu0 0
        %5796 = vmatpush1.bf16.msra.mxu0 0
        %5797 = vmatprep.subr.bf16.mxu0 0
        %5798 = vmatpush1.bf16.msra.mxu0 0
        %5799 = vmatprep.mubr.bf16.mxu0 0
        %5800 = vmatmul.mubr.bf16.gmra.mrb[0].mxu0 %v5762
        %v5801 = vpop.f32.mrb[0].mxu0
        %v5802 = vadd.f32 %v5713, %v5801
        %v5803 = vpop.f32.mrb[0].mxu0
        %v5804 = vpop.f32.mrb[0].mxu0
        %v5805 = vpop.f32.mrb[0].mxu0
        %5806 = vdwg.mxu0
        %v5807 = vmax.f32 %v5802, 0.0
        %v5808 = vpack.c.bf16 %v5807, %v5807
        %v5809 = vld [vmem:[%s17] sm:$0xf]
        %v5810 = vld [vmem:[%s17 + $0x4] sm:$0xf]
        %v5811 = vld [vmem:[%s17 + $0x8] sm:$0xf]
        %v5812 = vld [vmem:[%s17 + $0xc] sm:$0xf]
        %v5813 = vld [vmem:[%s17 + $0x10] sm:$0xf]
        %v5814 = vld [vmem:[%s17 + $0x14] sm:$0xf]
        %v5815 = vld [vmem:[%s17 + $0x18] sm:$0xf]
        %v5816 = vld [vmem:[%s17 + $0x1c] sm:$0xf]
        %v5817 = vld [vmem:[%s17 + $0x20] sm:$0xf]
        %v5818 = vld [vmem:[%s17 + $0x24] sm:$0xf]
        %v5819 = vld [vmem:[%s17 + $0x28] sm:$0x3]
        %v5820 = vld [vmem:[%s18] sm:$0x1]
        %v5822 = vlaneseq
        %v5823 = vshrl.u32 %v5822, 7
        %v5824 = vsub.s32 0, %v5823
        %v5825 = vrot.slane %v5820, %v5824
        %v5838 = vunpack.c.l.b16 %v5809
        %v5839 = vunpack.c.l.b16 %v5810
        %v5840 = vunpack.c.l.b16 %v5811
        %v5841 = vunpack.c.l.b16 %v5812
        %v5842 = vunpack.c.l.b16 %v5813
        %v5843 = vunpack.c.l.b16 %v5814
        %v5844 = vunpack.c.l.b16 %v5815
        %v5845 = vunpack.c.l.b16 %v5816
        %v5846 = vunpack.c.l.b16 %v5817
        %v5847 = vunpack.c.l.b16 %v5818
        %v5848 = vunpack.c.l.b16 %v5819
        %v5849 = vpack.c.b16 %v5839, %v5838
        %v5850 = vpack.c.b16 %v5841, %v5840
        %v5851 = vpack.c.b16 %v5843, %v5842
        %v5852 = vpack.c.b16 %v5845, %v5844
        %v5853 = vpack.c.b16 %v5847, %v5846
        %v5854 = vpack.c.b16 %v5848, %v5848
        %v5861 = vsel %vm3597, %v5808, 0
        %v5864 = vsel %vm3619, %v5854, 0
        %5866 = vmatprep.subr.bf16.mxu0 0
        %5867 = vmatpush1.bf16.msra.mxu0 %v5849
        %5868 = vmatprep.subr.bf16.mxu0 0
        %5869 = vmatpush1.bf16.msra.mxu0 %v5850
        %5870 = vmatprep.subr.bf16.mxu0 0
        %5871 = vmatpush1.bf16.msra.mxu0 %v5851
        %5872 = vmatprep.subr.bf16.mxu0 0
        %5873 = vmatpush1.bf16.msra.mxu0 %v5852
        %5874 = vmatprep.subr.bf16.mxu0 0
        %5875 = vmatpush1.bf16.msra.mxu0 %v5853
        %5876 = vmatprep.subr.bf16.mxu0 0
        %5877 = vmatpush1.bf16.msra.mxu0 %v5864
        %5878 = vmatprep.subr.bf16.mxu0 0
        %5879 = vmatpush1.bf16.msra.mxu0 0
        %5880 = vmatprep.subr.bf16.mxu0 0
        %5881 = vmatpush1.bf16.msra.mxu0 0
        %5882 = vmatprep.subr.bf16.mxu0 0
        %5883 = vmatpush1.bf16.msra.mxu0 0
        %5884 = vmatprep.subr.bf16.mxu0 0
        %5885 = vmatpush1.bf16.msra.mxu0 0
        %5886 = vmatprep.subr.bf16.mxu0 0
        %5887 = vmatpush1.bf16.msra.mxu0 0
        %5888 = vmatprep.subr.bf16.mxu0 0
        %5889 = vmatpush1.bf16.msra.mxu0 0
        %5890 = vmatprep.subr.bf16.mxu0 0
        %5891 = vmatpush1.bf16.msra.mxu0 0
        %5892 = vmatprep.subr.bf16.mxu0 0
        %5893 = vmatpush1.bf16.msra.mxu0 0
        %5894 = vmatprep.subr.bf16.mxu0 0
        %5895 = vmatpush1.bf16.msra.mxu0 0
        %5896 = vmatprep.subr.bf16.mxu0 0
        %5897 = vmatpush1.bf16.msra.mxu0 0
        %5898 = vmatprep.mubr.bf16.mxu0 0
        %5899 = vmatmul.mubr.bf16.gmra.mrb[0].mxu0 %v5861
        %v5900 = vpop.f32.mrb[0].mxu0
        %v5901 = vadd.f32 %v5825, %v5900
        %v5902 = vpop.f32.mrb[0].mxu0
        %v5903 = vpop.f32.mrb[0].mxu0
        %v5904 = vpop.f32.mrb[0].mxu0
        %5905 = vdwg.mxu0
        %vm5906 = vcmask 80896
        %v5907 = vsel %vm5906, %v5901, -inf
        %5908 = vmax.xlane.f32.xlu0 %v5907
        %v5909 = vpop.xlane.xlu0 %5908
        %v5910 = vsub.f32 %v5901, %v5909
        %v5911 = vmul.f32 %v5910, 1.442695
        %v5912 = vpow.pop %v5911
        %v5913 = vsel %vm5906, %v5912, 0.0
        %5914 = vadd.xlane.f32.xlu0 %v5913
        %v5915 = vpop.xlane.xlu0 %5914
        %v5916 = vrcp.pop %v5915
        %v5917 = vmul.f32 %v5912, %v5916
        %5918 = vst.msk [vmem:[%s596] sm:$0xff] %vm5906, %v5917
        %s5919 = sand.u32 %s445, 1
        %s5920 = scalar_lea.sflag [#allocation3], %s5919
        %s5921 = sand.u32 %s445, 1
        %s5922 = smul.addr %s5921, 8
        %s5923 = scalar_lea.vmem [#allocation2], %s5922
        // Predicated region
        $region97: #{cnn_forward.1} parent=95 // pred_check
          %p5924 = pneg %p455
        $region98: #{cnn_forward.1} parent=95 // pred_check_branch
          %5926 = sbr.rel (%p5924) target = $region100
        $region99: #{cnn_forward.1} parent=95 // pred_region
          %s5928 = ssub.s32 128, 128
          %5929 = vsyncadd %s5920, %s5928
          %s5930 = smul.addr %s33, 128
          %s5931 = scalar_lea.hbm %s19, %s5930
          %s5933 = sshll.u32 %s5923, 4
          %s5934 = int_to_ptr.vmem [resolvable:$true] %s5933
          %5936 = dma.vmem_to_hbm [thread:$0]  %s5934, 128, %s5931, %s5920
        $region100: #{cnn_forward.1} parent=95 // pred_fallthru
          _
      $region96: #{cnn_forward.1} parent=5 // pred_fallthru
        _
      %p5937 = scmp.le.s32.totalorder 2, %s28
      // Predicated region
      $region101: #{cnn_forward.1} parent=5 // pred_check
        %p5938 = pneg %p5937
      $region102: #{cnn_forward.1} parent=5 // pred_check_branch
        %5940 = sbr.rel (%p5938) target = $region104
      $region103: #{cnn_forward.1} parent=5 // pred_region
        %s5941 = ssub.s32 %s28, 2
        // Predicated region
        $region105: #{cnn_forward.1} parent=103 // pred_check
          %p5942 = pneg %p461
        $region106: #{cnn_forward.1} parent=103 // pred_check_branch
          %5944 = sbr.rel (%p5942) target = $region108
        $region107: #{cnn_forward.1} parent=103 // pred_region
          %s5945 = sand.u32 %s446, 1
          %s5946 = scalar_lea.sflag [#allocation3], %s5945
          %s5947 = sand.u32 %s446, 1
          %s5948 = smul.addr %s5947, 8
          %s5949 = scalar_lea.vmem [#allocation2], %s5948
          %5950 = dma.done %s5946, 128
        $region108: #{cnn_forward.1} parent=103 // pred_fallthru
          _
      $region104: #{cnn_forward.1} parent=5 // pred_fallthru
        _
    $region6: #{cnn_forward.1} parent=1 // loop_footer
      %s32 = sadd.s32 1, %s28
    $region7: #{cnn_forward.1} parent=1 // loop_footer_branch
      %27 = sbr.rel target = $region3
    $region8: #{cnn_forward.1} parent=1 // loop_exit
      _
    %5951 = vsyncpa [#allocation3], 1
    %s5952 = scalar_lea.sflag [#allocation3], 1
    %5953 = vsyncpa %s5952, 1

</llo_original>
